<compile_context>
chip_gen: v7x
topology: tpu7x:2x2x1
jax: 0.10.0
libtpu: 0.0.40
codegen_flags: <defaults>
</compile_context>

<pallas_src>
import functools

import jax
import jax.numpy as jnp
from jax.experimental import pallas as pl
from jax.experimental.pallas import tpu as pltpu

L_POS = 6
L_DIR = 4
POS_FEATS = 3 + 3 * 2 * L_POS    # 39
DIR_FEATS = 3 + 3 * 2 * L_DIR    # 27
ENC_FEATS = POS_FEATS + DIR_FEATS
WIDTH = 256
PACKED_IN = 128                  # lane-aligned input slab width (39 + 27 + zero pad)
HEAD_LANES = 128                 # color-head weight padded to a full lane tile
OUT_LANES = 8                    # lanes 0..2 = color, lane 3 = sigma, lanes 4..7 = pad


def _tiny_nerf_kernel(slab_ref, w1_ref, w3b_ref, w2f_ref, w3a_ref, wc_ref,
                      wh_ref, b_ref, out_ref):
    slab = slab_ref[...]                       # [TM, 128] bf16 (xs_enc | ds_enc | 0-pad)
    b = b_ref[...]                             # [8, 256] f32  (merged biases)
    wh = wh_ref[...]                           # [8, 256] f32  (row 3 = sigma weights)

    # Early MLP layer 1: [TM,128] @ [128,256] bf16 -> f32 accumulation.
    h1 = jnp.maximum(
        jnp.dot(slab, w1_ref[...], preferred_element_type=jnp.float32) + b[0:1, :], 0.0)

    # Sigma head: only 1 useful output lane -> VPU multiply + XLU lane reduce on the
    # f32 h1 (computed now so the f32 h1 can die immediately after the bf16 cast).
    sigma = jnp.maximum(
        jnp.sum(h1 * wh[3:4, :], axis=-1, keepdims=True) + b[3:4, 3:4], 0.0)   # [TM, 1]

    h1b = h1.astype(jnp.bfloat16)

    # Early MLP layer 2, feature head (256-wide -> MXU).
    feat = jnp.maximum(
        jnp.dot(h1b, w2f_ref[...], preferred_element_type=jnp.float32) + b[1:2, :], 0.0)
    featb = feat.astype(jnp.bfloat16)

    # ds_enc contribution to late-MLP layer 1, issued just before its use to keep
    # the 256-wide f32 intermediate's live range short.
    de_contrib = jnp.dot(slab, w3b_ref[...], preferred_element_type=jnp.float32)

    # Late MLP layer 1: feat @ w3a + ds_enc @ w3b + b3 (concat decomposed).
    h3 = jnp.maximum(
        jnp.dot(featb, w3a_ref[...], preferred_element_type=jnp.float32)
        + de_contrib + b[2:3, :], 0.0)

    # Color head on the MXU: [TM,256] @ [256,128] bf16 (cols 0..2 = w4, rest zero),
    # then one 3-lane bias add + sigmoid.
    logits = jnp.dot(h3.astype(jnp.bfloat16), wc_ref[...],
                     preferred_element_type=jnp.float32)                        # [TM, 128]
    color = jax.nn.sigmoid(logits[:, 0:3] + b[3:4, 0:3])                        # [TM, 3]

    tm = slab.shape[0]
    # Single lane-dense packed output: [color(3) | sigma(1) | zeros(4)].
    out_ref[...] = jnp.concatenate(
        [color, sigma, jnp.zeros((tm, OUT_LANES - 4), jnp.float32)], axis=-1)   # [TM, 8]


def _positional_encode(x, n_freqs):
    feats = [x]
    for l in range(n_freqs):
        feats.append(jnp.sin((2.0 ** l) * jnp.pi * x))
        feats.append(jnp.cos((2.0 ** l) * jnp.pi * x))
    return jnp.concatenate(feats, axis=-1)


def _round_up(x, m):
    return ((x + m - 1) // m) * m


@functools.partial(jax.jit, static_argnames=("tile_m",))
def tiny_nerf_forward(xs, ds, params, tile_m=4096):
    assert tile_m % 128 == 0, "tile_m must be a multiple of 128"
    n = xs.shape[0]

    # Tile selection (static, from the static shape):
    #  * cap so the grid has >= 2 iterations when possible (v7x has 2 TensorCores
    #    and the single "parallel" grid axis is what gets sharded across them);
    #  * keep tiles multiples of 128 rows (MXU / bf16 sublane friendly).
    half = _round_up(max((n + 1) // 2, 1), 128)
    tm_eff = min(tile_m, half)
    n_pad = _round_up(max(n, 1), tm_eff)

    # TODO(synk): optionally fuse the positional encoding / direction normalization
    # into the kernel (VPU/EUP slack under the MXU now that the color heads are back
    # on the MXU); kept in the wrapper since building the 66-lane encoding from
    # 3-lane pieces in-kernel is lane-layout heavy.
    xs_enc = _positional_encode(xs, L_POS)                                     # [N, 39]
    ds_norm = jnp.maximum(jnp.linalg.norm(ds, axis=-1, keepdims=True), 1e-12)  # zero-norm guard
    ds_enc = _positional_encode(ds / ds_norm, L_DIR)                           # [N, 27]

    # Lane-dense packed bf16 input slab; one fused concatenate + pad (padded rows /
    # lanes are zeros and are sliced off / ignored later).
    slab = jnp.pad(
        jnp.concatenate([xs_enc, ds_enc], axis=-1).astype(jnp.bfloat16),
        ((0, n_pad - n), (0, PACKED_IN - ENC_FEATS)))                          # [n_pad, 128]

    w1, b1, w2, b2, w3, b3, w4, b4 = (params[k] for k in
                                      ("w1", "b1", "w2", "b2", "w3", "b3", "w4", "b4"))

    # Layer-1 weight, zero-padded to the 128-lane slab (K axis).
    w1_pad = jnp.zeros((PACKED_IN, WIDTH), jnp.float32)
    w1_pad = w1_pad.at[:POS_FEATS, :].set(w1).astype(jnp.bfloat16)             # [128, 256]
    # ds_enc part of late-MLP layer 1, zero-padded to the same K axis.
    w3b_pad = jnp.zeros((PACKED_IN, WIDTH), jnp.float32)
    w3b_pad = w3b_pad.at[POS_FEATS:ENC_FEATS, :].set(w3[WIDTH:, :]).astype(jnp.bfloat16)

    w2f = w2[:, 1:].astype(jnp.bfloat16)            # [256, 256] feature head
    w3a = w3[:WIDTH, :].astype(jnp.bfloat16)        # [256, 256] feat part of layer 3

    # Color-head weight on the MXU, lane-padded to 128 output lanes (cols 0..2 = w4).
    wc = jnp.zeros((WIDTH, HEAD_LANES), jnp.float32)
    wc = wc.at[:, 0:3].set(w4).astype(jnp.bfloat16)                            # [256, 128]

    # Sigma head weights kept f32 for the VPU/XLU path (row 3 = w2[:, 0]).
    wh = jnp.zeros((8, WIDTH), jnp.float32)
    wh = wh.at[3, :].set(w2[:, 0])

    # All biases merged into one [8, 256] f32 array.
    b_all = jnp.zeros((8, WIDTH), jnp.float32)
    b_all = b_all.at[0, :].set(b1[0])               # layer 1 bias
    b_all = b_all.at[1, :].set(b2[0, 1:])           # feature-head bias
    b_all = b_all.at[2, :].set(b3[0])               # layer 3 bias
    b_all = b_all.at[3, 0:3].set(b4[0])             # color bias
    b_all = b_all.at[3, 3].set(b2[0, 0])            # sigma bias

    resident = lambda i: (0, 0)     # weights/biases stay resident across the grid
    tiled = lambda i: (i, 0)        # tile over the sample (row) axis

    out8 = pl.pallas_call(
        _tiny_nerf_kernel,
        grid=(n_pad // tm_eff,),
        in_specs=[
            pl.BlockSpec((tm_eff, PACKED_IN), tiled),
            pl.BlockSpec((PACKED_IN, WIDTH), resident),
            pl.BlockSpec((PACKED_IN, WIDTH), resident),
            pl.BlockSpec((WIDTH, WIDTH), resident),
            pl.BlockSpec((WIDTH, WIDTH), resident),
            pl.BlockSpec((WIDTH, HEAD_LANES), resident),
            pl.BlockSpec((8, WIDTH), resident),
            pl.BlockSpec((8, WIDTH), resident),
        ],
        out_specs=pl.BlockSpec((tm_eff, OUT_LANES), tiled),
        out_shape=jax.ShapeDtypeStruct((n_pad, OUT_LANES), jnp.float32),
        compiler_params=pltpu.CompilerParams(
            dimension_semantics=("parallel",),
            # ~21 MiB peak at tm_eff=4096; 48 MiB leaves headroom on v7x (64 MiB
            # physical VMEM) while comfortably raising the v5e/v6e scoped default.
            vmem_limit_bytes=48 * 1024 * 1024,
        ),
    )(slab, w1_pad, w3b_pad, w2f, w3a, wc, wh, b_all)

    return {"color": out8[:n, 0:3], "density": out8[:n, 3]}


def init_params(key):
    """Deterministic synthetic init matching the nn.Linear shapes (stored as [in, out])."""
    def linear(k, fan_in, fan_out):
        kw, kb = jax.random.split(k)
        bound = 1.0 / jnp.sqrt(fan_in)
        w = jax.random.uniform(kw, (fan_in, fan_out), jnp.float32, -bound, bound)
        b = jax.random.uniform(kb, (1, fan_out), jnp.float32, -bound, bound)
        return w, b

    k1, k2, k3, k4 = jax.random.split(key, 4)
    w1, b1 = linear(k1, POS_FEATS, WIDTH)             # Linear(39, 256)
    w2, b2 = linear(k2, WIDTH, WIDTH + 1)             # Linear(256, 257)
    w3, b3 = linear(k3, WIDTH + DIR_FEATS, WIDTH)     # Linear(283, 256)
    w4, b4 = linear(k4, WIDTH, 3)                     # Linear(256, 3)
    return dict(w1=w1, b1=b1, w2=w2, b2=b2, w3=w3, b3=b3, w4=w4, b4=b4)


def tiny_nerf_reference(xs, ds, params):
    """Pure-JAX f32 reference mirroring the PyTorch forward exactly."""
    xs_enc = _positional_encode(xs, L_POS)
    ds_n = ds / jnp.linalg.norm(ds, axis=-1, keepdims=True)
    ds_enc = _positional_encode(ds_n, L_DIR)
    h1 = jnp.maximum(xs_enc @ params["w1"] + params["b1"], 0.0)
    out = jnp.maximum(h1 @ params["w2"] + params["b2"], 0.0)      # [N, 257]
    sigma = out[:, 0]
    late_in = jnp.concatenate([out[:, 1:], ds_enc], axis=-1)      # [N, 283]
    h3 = jnp.maximum(late_in @ params["w3"] + params["b3"], 0.0)
    color = jax.nn.sigmoid(h3 @ params["w4"] + params["b4"])
    return {"color": color, "density": sigma}


if __name__ == "__main__":
    key = jax.random.PRNGKey(0)
    k_xs, k_ds, k_params = jax.random.split(key, 3)

    N = 1000   # NOT a tile multiple: exercises padding + the 2-tile (megacore) path
    xs = jax.random.normal(k_xs, (N, 3), jnp.float32)
    ds = jax.random.normal(k_ds, (N, 3), jnp.float32) + 0.1   # avoid zero-norm directions
    params = init_params(k_params)

    out = tiny_nerf_forward(xs, ds, params)   # default tile_m -> tm_eff=512, grid=(2,)
    jax.block_until_ready(out)

    ref = tiny_nerf_reference(xs, ds, params)
    assert out["color"].shape == (N, 3) and out["density"].shape == (N,)
    # bf16 MXU operands with f32 accumulation -> relaxed tolerances vs the f32 reference.
    assert jnp.allclose(out["color"], ref["color"], atol=2e-2, rtol=2e-2), \
        float(jnp.max(jnp.abs(out["color"] - ref["color"])))
    assert jnp.allclose(out["density"], ref["density"], atol=5e-2, rtol=5e-2), \
        float(jnp.max(jnp.abs(out["density"] - ref["density"])))

    print("KERNEL_OK")
</pallas_src>

<mosaic_0001>
module attributes {stable_mosaic.version = 11 : i64} {
  func.func @_tiny_nerf_kernel(%arg0: i32, %arg1: memref<512x128xbf16, #tpu.memory_space<vmem>>, %arg2: memref<128x256xbf16, #tpu.memory_space<vmem>>, %arg3: memref<128x256xbf16, #tpu.memory_space<vmem>>, %arg4: memref<256x256xbf16, #tpu.memory_space<vmem>>, %arg5: memref<256x256xbf16, #tpu.memory_space<vmem>>, %arg6: memref<256x128xbf16, #tpu.memory_space<vmem>>, %arg7: memref<8x256xf32, #tpu.memory_space<vmem>>, %arg8: memref<8x256xf32, #tpu.memory_space<vmem>>, %arg9: memref<512x8xf32, #tpu.memory_space<vmem>>) attributes {dimension_semantics = [#tpu.dimension_semantics<parallel>], iteration_bounds = array<i64: 2>, scalar_prefetch = 0 : i64, scratch_operands = 0 : i64, tpu.core_type = #tpu.core_type<tc>, window_params = [{transform_indices = @transform_0, window_bounds = array<i64: 512, 128>}, {pipeline_mode = #tpu.pipeline_mode<synchronous>, transform_indices = @transform_1, window_bounds = array<i64: 128, 256>}, {pipeline_mode = #tpu.pipeline_mode<synchronous>, transform_indices = @transform_2, window_bounds = array<i64: 128, 256>}, {pipeline_mode = #tpu.pipeline_mode<synchronous>, transform_indices = @transform_3, window_bounds = array<i64: 256, 256>}, {pipeline_mode = #tpu.pipeline_mode<synchronous>, transform_indices = @transform_4, window_bounds = array<i64: 256, 256>}, {pipeline_mode = #tpu.pipeline_mode<synchronous>, transform_indices = @transform_5, window_bounds = array<i64: 256, 128>}, {pipeline_mode = #tpu.pipeline_mode<synchronous>, transform_indices = @transform_6, window_bounds = array<i64: 8, 256>}, {pipeline_mode = #tpu.pipeline_mode<synchronous>, transform_indices = @transform_7, window_bounds = array<i64: 8, 256>}, {transform_indices = @transform_8, window_bounds = array<i64: 512, 8>}]} {
    %c0 = arith.constant 0 : index
    %c0_0 = arith.constant 0 : index
    %0 = vector.load %arg1[%c0, %c0_0] : memref<512x128xbf16, #tpu.memory_space<vmem>>, vector<512x128xbf16>
    %c0_1 = arith.constant 0 : index
    %c0_2 = arith.constant 0 : index
    %1 = vector.load %arg8[%c0_1, %c0_2] : memref<8x256xf32, #tpu.memory_space<vmem>>, vector<8x256xf32>
    %c0_3 = arith.constant 0 : index
    %c0_4 = arith.constant 0 : index
    %2 = vector.load %arg7[%c0_3, %c0_4] : memref<8x256xf32, #tpu.memory_space<vmem>>, vector<8x256xf32>
    %c0_5 = arith.constant 0 : index
    %c0_6 = arith.constant 0 : index
    %3 = vector.load %arg2[%c0_5, %c0_6] : memref<128x256xbf16, #tpu.memory_space<vmem>>, vector<128x256xbf16>
    %cst = arith.constant dense<0.000000e+00> : vector<512x256xf32>
    %4 = tpu.matmul %0, %3, %cst {dimension_numbers = #tpu.dot_dimension_numbers<[1], [0], [0], [1], [0, 0, 1, 1], [], []>} : vector<512x128xbf16>, vector<128x256xbf16>, vector<512x256xf32> -> vector<512x256xf32>
    %5 = vector.extract_strided_slice %1 {offsets = [0, 0], sizes = [1, 256], strides = [1, 1]} : vector<8x256xf32> to vector<1x256xf32>
    %6 = vector.broadcast %5 : vector<1x256xf32> to vector<512x256xf32>
    %7 = arith.addf %4, %6 : vector<512x256xf32>
    %cst_7 = arith.constant 0.000000e+00 : f32
    %8 = vector.broadcast %cst_7 : f32 to vector<512x256xf32>
    %9 = arith.maximumf %7, %8 : vector<512x256xf32>
    %10 = vector.extract_strided_slice %2 {offsets = [3, 0], sizes = [1, 256], strides = [1, 1]} : vector<8x256xf32> to vector<1x256xf32>
    %11 = vector.broadcast %10 : vector<1x256xf32> to vector<512x256xf32>
    %12 = arith.mulf %9, %11 : vector<512x256xf32>
    %cst_8 = arith.constant dense<0.000000e+00> : vector<512xf32>
    %13 = vector.multi_reduction <add>, %12, %cst_8 [1] : vector<512x256xf32> to vector<512xf32>
    %14 = vector.shape_cast %13 : vector<512xf32> to vector<512x1xf32>
    %15 = vector.extract_strided_slice %1 {offsets = [3, 3], sizes = [1, 1], strides = [1, 1]} : vector<8x256xf32> to vector<1x1xf32>
    %16 = vector.broadcast %15 : vector<1x1xf32> to vector<512x1xf32>
    %17 = arith.addf %14, %16 : vector<512x1xf32>
    %cst_9 = arith.constant 0.000000e+00 : f32
    %18 = vector.broadcast %cst_9 : f32 to vector<512x1xf32>
    %19 = arith.maximumf %17, %18 : vector<512x1xf32>
    %20 = arith.truncf %9 : vector<512x256xf32> to vector<512x256xbf16>
    %c0_10 = arith.constant 0 : index
    %c0_11 = arith.constant 0 : index
    %21 = vector.load %arg4[%c0_10, %c0_11] : memref<256x256xbf16, #tpu.memory_space<vmem>>, vector<256x256xbf16>
    %cst_12 = arith.constant dense<0.000000e+00> : vector<512x256xf32>
    %22 = tpu.matmul %20, %21, %cst_12 {dimension_numbers = #tpu.dot_dimension_numbers<[1], [0], [0], [1], [0, 0, 1, 1], [], []>} : vector<512x256xbf16>, vector<256x256xbf16>, vector<512x256xf32> -> vector<512x256xf32>
    %23 = vector.extract_strided_slice %1 {offsets = [1, 0], sizes = [1, 256], strides = [1, 1]} : vector<8x256xf32> to vector<1x256xf32>
    %24 = vector.broadcast %23 : vector<1x256xf32> to vector<512x256xf32>
    %25 = arith.addf %22, %24 : vector<512x256xf32>
    %cst_13 = arith.constant 0.000000e+00 : f32
    %26 = vector.broadcast %cst_13 : f32 to vector<512x256xf32>
    %27 = arith.maximumf %25, %26 : vector<512x256xf32>
    %28 = arith.truncf %27 : vector<512x256xf32> to vector<512x256xbf16>
    %c0_14 = arith.constant 0 : index
    %c0_15 = arith.constant 0 : index
    %29 = vector.load %arg3[%c0_14, %c0_15] : memref<128x256xbf16, #tpu.memory_space<vmem>>, vector<128x256xbf16>
    %cst_16 = arith.constant dense<0.000000e+00> : vector<512x256xf32>
    %30 = tpu.matmul %0, %29, %cst_16 {dimension_numbers = #tpu.dot_dimension_numbers<[1], [0], [0], [1], [0, 0, 1, 1], [], []>} : vector<512x128xbf16>, vector<128x256xbf16>, vector<512x256xf32> -> vector<512x256xf32>
    %c0_17 = arith.constant 0 : index
    %c0_18 = arith.constant 0 : index
    %31 = vector.load %arg5[%c0_17, %c0_18] : memref<256x256xbf16, #tpu.memory_space<vmem>>, vector<256x256xbf16>
    %cst_19 = arith.constant dense<0.000000e+00> : vector<512x256xf32>
    %32 = tpu.matmul %28, %31, %cst_19 {dimension_numbers = #tpu.dot_dimension_numbers<[1], [0], [0], [1], [0, 0, 1, 1], [], []>} : vector<512x256xbf16>, vector<256x256xbf16>, vector<512x256xf32> -> vector<512x256xf32>
    %33 = arith.addf %32, %30 : vector<512x256xf32>
    %34 = vector.extract_strided_slice %1 {offsets = [2, 0], sizes = [1, 256], strides = [1, 1]} : vector<8x256xf32> to vector<1x256xf32>
    %35 = vector.broadcast %34 : vector<1x256xf32> to vector<512x256xf32>
    %36 = arith.addf %33, %35 : vector<512x256xf32>
    %cst_20 = arith.constant 0.000000e+00 : f32
    %37 = vector.broadcast %cst_20 : f32 to vector<512x256xf32>
    %38 = arith.maximumf %36, %37 : vector<512x256xf32>
    %39 = arith.truncf %38 : vector<512x256xf32> to vector<512x256xbf16>
    %c0_21 = arith.constant 0 : index
    %c0_22 = arith.constant 0 : index
    %40 = vector.load %arg6[%c0_21, %c0_22] : memref<256x128xbf16, #tpu.memory_space<vmem>>, vector<256x128xbf16>
    %cst_23 = arith.constant dense<0.000000e+00> : vector<512x128xf32>
    %41 = tpu.matmul %39, %40, %cst_23 {dimension_numbers = #tpu.dot_dimension_numbers<[1], [0], [0], [1], [0, 0, 1, 1], [], []>} : vector<512x256xbf16>, vector<256x128xbf16>, vector<512x128xf32> -> vector<512x128xf32>
    %42 = vector.extract_strided_slice %41 {offsets = [0, 0], sizes = [512, 3], strides = [1, 1]} : vector<512x128xf32> to vector<512x3xf32>
    %43 = vector.extract_strided_slice %1 {offsets = [3, 0], sizes = [1, 3], strides = [1, 1]} : vector<8x256xf32> to vector<1x3xf32>
    %44 = vector.broadcast %43 : vector<1x3xf32> to vector<512x3xf32>
    %45 = arith.addf %42, %44 : vector<512x3xf32>
    %46 = arith.negf %45 : vector<512x3xf32>
    %47 = math.exp %46 : vector<512x3xf32>
    %cst_24 = arith.constant 1.000000e+00 : f32
    %48 = vector.broadcast %cst_24 : f32 to vector<512x3xf32>
    %49 = arith.addf %48, %47 : vector<512x3xf32>
    %50 = arith.divf %48, %49 : vector<512x3xf32>
    %cst_25 = arith.constant 0.000000e+00 : f32
    %51 = vector.broadcast %cst_25 : f32 to vector<512x4xf32>
    %52 = tpu.concatenate %50, %19, %51 in 1 : vector<512x3xf32>, vector<512x1xf32>, vector<512x4xf32> -> vector<512x8xf32>
    %c0_26 = arith.constant 0 : index
    %c0_27 = arith.constant 0 : index
    %53 = vector.load %arg9[%c0_26, %c0_27] : memref<512x8xf32, #tpu.memory_space<vmem>>, vector<512x8xf32>
    tpu.vector_store %arg9[%c0_26, %c0_27], %52 {strides = array<i32>} : memref<512x8xf32, #tpu.memory_space<vmem>>, vector<512x8xf32>,
    return
  }
  func.func @transform_0(%arg0: i32) -> (i32, i32) {
    %c0_i32 = arith.constant 0 : i32
    %c0_i32_0 = arith.constant 0 : i32
    return %arg0, %c0_i32 : i32, i32
  }
  func.func @transform_1(%arg0: i32) -> (i32, i32) {
    %c0_i32 = arith.constant 0 : i32
    %c0_i32_0 = arith.constant 0 : i32
    %c0_i32_1 = arith.constant 0 : i32
    return %c0_i32, %c0_i32_0 : i32, i32
  }
  func.func @transform_2(%arg0: i32) -> (i32, i32) {
    %c0_i32 = arith.constant 0 : i32
    %c0_i32_0 = arith.constant 0 : i32
    %c0_i32_1 = arith.constant 0 : i32
    return %c0_i32, %c0_i32_0 : i32, i32
  }
  func.func @transform_3(%arg0: i32) -> (i32, i32) {
    %c0_i32 = arith.constant 0 : i32
    %c0_i32_0 = arith.constant 0 : i32
    %c0_i32_1 = arith.constant 0 : i32
    return %c0_i32, %c0_i32_0 : i32, i32
  }
  func.func @transform_4(%arg0: i32) -> (i32, i32) {
    %c0_i32 = arith.constant 0 : i32
    %c0_i32_0 = arith.constant 0 : i32
    %c0_i32_1 = arith.constant 0 : i32
    return %c0_i32, %c0_i32_0 : i32, i32
  }
  func.func @transform_5(%arg0: i32) -> (i32, i32) {
    %c0_i32 = arith.constant 0 : i32
    %c0_i32_0 = arith.constant 0 : i32
    %c0_i32_1 = arith.constant 0 : i32
    return %c0_i32, %c0_i32_0 : i32, i32
  }
  func.func @transform_6(%arg0: i32) -> (i32, i32) {
    %c0_i32 = arith.constant 0 : i32
    %c0_i32_0 = arith.constant 0 : i32
    %c0_i32_1 = arith.constant 0 : i32
    return %c0_i32, %c0_i32_0 : i32, i32
  }
  func.func @transform_7(%arg0: i32) -> (i32, i32) {
    %c0_i32 = arith.constant 0 : i32
    %c0_i32_0 = arith.constant 0 : i32
    %c0_i32_1 = arith.constant 0 : i32
    return %c0_i32, %c0_i32_0 : i32, i32
  }
  func.func @transform_8(%arg0: i32) -> (i32, i32) {
    %c0_i32 = arith.constant 0 : i32
    %c0_i32_0 = arith.constant 0 : i32
    return %arg0, %c0_i32 : i32, i32
  }
}

</mosaic_0001>

<llo_original>
// kernel: tiny_nerf_forward.1
$region0: #{tiny_nerf_forward.1}
  #allocation0 [shape = 'u32[]', space=smem, size = 0x4, offset = 0x4, fixed_abs, tag = 'smem constant byte address 0x4 - core index']
  #allocation1 [shape = 'u32[144,128]{1,0:T(1,128)}', space=vmem, size = 0x12000, scoped, tag = 'internal scratch']
  %s0 = inlined_call_operand.vmem [shape: bf16[1024,128], index: 0, kind: input, shape index: {}]
  %s1 = inlined_call_operand.vmem [shape: bf16[128,256], index: 1, kind: input, shape index: {}]
  %s2 = inlined_call_operand.vmem [shape: bf16[128,256], index: 2, kind: input, shape index: {}]
  %s3 = inlined_call_operand.vmem [shape: bf16[256,256], index: 3, kind: input, shape index: {}]
  %s4 = inlined_call_operand.vmem [shape: bf16[256,256], index: 4, kind: input, shape index: {}]
  %s5 = inlined_call_operand.vmem [shape: bf16[256,128], index: 5, kind: input, shape index: {}]
  %s6 = inlined_call_operand.vmem [shape: f32[8,256], index: 6, kind: input, shape index: {}]
  %s7 = inlined_call_operand.vmem [shape: f32[8,256], index: 7, kind: input, shape index: {}]
  %s8 = inlined_call_operand.vmem [shape: f32[1024,8], index: 8, kind: output, shape index: {}]
  %s9 = sld [smem:[#allocation0]]
  $region65: #{tiny_nerf_forward.1} parent=0
    _
  %s11 = ssub.s32 1, %s9
  %s12 = scalar_select 0, %s11, %s9
  loop: start=0, step=1, limit=4
  $region2: #{tiny_nerf_forward.1} parent=0 // loop_pre_header
    _
  $region3: #{tiny_nerf_forward.1} parent=0 // loop_header
    %s14 = sphi 0, %s18
    %p15 = scmp.ge.s32.totalorder %s14, 4
    %s24 = sphi 0, %s26
    %s27 = sphi 0, %s24
    %s28 = sphi 0, %s27
    %s44 = sphi 0, %s28
    %s48 = sphi 0, %s48
    %s50 = sphi 0, %s48
    %s51 = sphi 0, %s50
    %s65 = sphi 0, %s51
    %s69 = sphi 0, %s69
    %s71 = sphi 0, %s69
    %s72 = sphi 0, %s71
    %s86 = sphi 0, %s72
    %s90 = sphi 0, %s90
    %s92 = sphi 0, %s90
    %s93 = sphi 0, %s92
    %s107 = sphi 0, %s93
    %s111 = sphi 0, %s111
    %s113 = sphi 0, %s111
    %s114 = sphi 0, %s113
    %s128 = sphi 0, %s114
    %s132 = sphi 0, %s132
    %s134 = sphi 0, %s132
    %s135 = sphi 0, %s134
    %s149 = sphi 0, %s135
    %s153 = sphi 0, %s153
    %s155 = sphi 0, %s153
    %s156 = sphi 0, %s155
    %s170 = sphi 0, %s156
    %s174 = sphi 0, %s174
    %s176 = sphi 0, %s174
    %s177 = sphi 0, %s176
    %s191 = sphi 0, %s177
    %s197 = sphi 0, %s199
    %s200 = sphi 0, %s197
    %s201 = sphi 0, %s200
    %s217 = sphi 0, %s201
  $region4: #{tiny_nerf_forward.1} parent=0 // loop_header_branch
    %17 = sbr.rel (%p15) target = $region8
  $region5: #{tiny_nerf_forward.1} parent=0 // loop_body
    %s19 = ssub.s32 %s14, 1
    %s20 = ssub.s32 %s14, 2
    %s21 = sadd.s32 %s14, 1
    %s22 = ssub.s32 %s14, %s21
    %p23 = scmp.eq.s32.totalorder %s22, 0
    %s25 = sadd.s32 %s24, 1
    %s26 = scalar_select %p23, %s24, %s25
    %p29 = pneg %p23
    %p30 = scmp.eq.s32.totalorder %s14, 1
    %p31 = por %p29, %p30
    %p32 = scmp.ne.s32.totalorder %s24, %s27
    %p33 = scmp.eq.s32.totalorder %s14, 0
    %p34 = por %p32, %p33
    %p35 = scmp.ne.s32.totalorder %s24, %s27
    %p36 = scmp.eq.s32.totalorder %s19, 1
    %p37 = por %p35, %p36
    %p38 = scmp.ne.s32.totalorder %s27, %s28
    %p39 = scmp.eq.s32.totalorder %s19, 0
    %p40 = por %p38, %p39
    %p41 = scmp.ne.s32.totalorder %s27, %s28
    %p42 = scmp.eq.s32.totalorder %s20, 1
    %p43 = por %p41, %p42
    %p45 = scmp.ne.s32.totalorder %s28, %s44
    %p46 = scmp.eq.s32.totalorder %s20, 0
    %p47 = por %p45, %p46
    %s49 = sadd.s32 %s48, 1
    %p52 = scmp.eq.s32.totalorder %s14, 1
    %p53 = scmp.ne.s32.totalorder %s48, %s50
    %p54 = scmp.eq.s32.totalorder %s14, 0
    %p55 = por %p53, %p54
    %p56 = scmp.ne.s32.totalorder %s48, %s50
    %p57 = scmp.eq.s32.totalorder %s19, 1
    %p58 = por %p56, %p57
    %p59 = scmp.ne.s32.totalorder %s50, %s51
    %p60 = scmp.eq.s32.totalorder %s19, 0
    %p61 = por %p59, %p60
    %p62 = scmp.ne.s32.totalorder %s50, %s51
    %p63 = scmp.eq.s32.totalorder %s20, 1
    %p64 = por %p62, %p63
    %p66 = scmp.ne.s32.totalorder %s51, %s65
    %p67 = scmp.eq.s32.totalorder %s20, 0
    %p68 = por %p66, %p67
    %s70 = sadd.s32 %s69, 1
    %p73 = scmp.eq.s32.totalorder %s14, 1
    %p74 = scmp.ne.s32.totalorder %s69, %s71
    %p75 = scmp.eq.s32.totalorder %s14, 0
    %p76 = por %p74, %p75
    %p77 = scmp.ne.s32.totalorder %s69, %s71
    %p78 = scmp.eq.s32.totalorder %s19, 1
    %p79 = por %p77, %p78
    %p80 = scmp.ne.s32.totalorder %s71, %s72
    %p81 = scmp.eq.s32.totalorder %s19, 0
    %p82 = por %p80, %p81
    %p83 = scmp.ne.s32.totalorder %s71, %s72
    %p84 = scmp.eq.s32.totalorder %s20, 1
    %p85 = por %p83, %p84
    %p87 = scmp.ne.s32.totalorder %s72, %s86
    %p88 = scmp.eq.s32.totalorder %s20, 0
    %p89 = por %p87, %p88
    %s91 = sadd.s32 %s90, 1
    %p94 = scmp.eq.s32.totalorder %s14, 1
    %p95 = scmp.ne.s32.totalorder %s90, %s92
    %p96 = scmp.eq.s32.totalorder %s14, 0
    %p97 = por %p95, %p96
    %p98 = scmp.ne.s32.totalorder %s90, %s92
    %p99 = scmp.eq.s32.totalorder %s19, 1
    %p100 = por %p98, %p99
    %p101 = scmp.ne.s32.totalorder %s92, %s93
    %p102 = scmp.eq.s32.totalorder %s19, 0
    %p103 = por %p101, %p102
    %p104 = scmp.ne.s32.totalorder %s92, %s93
    %p105 = scmp.eq.s32.totalorder %s20, 1
    %p106 = por %p104, %p105
    %p108 = scmp.ne.s32.totalorder %s93, %s107
    %p109 = scmp.eq.s32.totalorder %s20, 0
    %p110 = por %p108, %p109
    %s112 = sadd.s32 %s111, 1
    %p115 = scmp.eq.s32.totalorder %s14, 1
    %p116 = scmp.ne.s32.totalorder %s111, %s113
    %p117 = scmp.eq.s32.totalorder %s14, 0
    %p118 = por %p116, %p117
    %p119 = scmp.ne.s32.totalorder %s111, %s113
    %p120 = scmp.eq.s32.totalorder %s19, 1
    %p121 = por %p119, %p120
    %p122 = scmp.ne.s32.totalorder %s113, %s114
    %p123 = scmp.eq.s32.totalorder %s19, 0
    %p124 = por %p122, %p123
    %p125 = scmp.ne.s32.totalorder %s113, %s114
    %p126 = scmp.eq.s32.totalorder %s20, 1
    %p127 = por %p125, %p126
    %p129 = scmp.ne.s32.totalorder %s114, %s128
    %p130 = scmp.eq.s32.totalorder %s20, 0
    %p131 = por %p129, %p130
    %s133 = sadd.s32 %s132, 1
    %p136 = scmp.eq.s32.totalorder %s14, 1
    %p137 = scmp.ne.s32.totalorder %s132, %s134
    %p138 = scmp.eq.s32.totalorder %s14, 0
    %p139 = por %p137, %p138
    %p140 = scmp.ne.s32.totalorder %s132, %s134
    %p141 = scmp.eq.s32.totalorder %s19, 1
    %p142 = por %p140, %p141
    %p143 = scmp.ne.s32.totalorder %s134, %s135
    %p144 = scmp.eq.s32.totalorder %s19, 0
    %p145 = por %p143, %p144
    %p146 = scmp.ne.s32.totalorder %s134, %s135
    %p147 = scmp.eq.s32.totalorder %s20, 1
    %p148 = por %p146, %p147
    %p150 = scmp.ne.s32.totalorder %s135, %s149
    %p151 = scmp.eq.s32.totalorder %s20, 0
    %p152 = por %p150, %p151
    %s154 = sadd.s32 %s153, 1
    %p157 = scmp.eq.s32.totalorder %s14, 1
    %p158 = scmp.ne.s32.totalorder %s153, %s155
    %p159 = scmp.eq.s32.totalorder %s14, 0
    %p160 = por %p158, %p159
    %p161 = scmp.ne.s32.totalorder %s153, %s155
    %p162 = scmp.eq.s32.totalorder %s19, 1
    %p163 = por %p161, %p162
    %p164 = scmp.ne.s32.totalorder %s155, %s156
    %p165 = scmp.eq.s32.totalorder %s19, 0
    %p166 = por %p164, %p165
    %p167 = scmp.ne.s32.totalorder %s155, %s156
    %p168 = scmp.eq.s32.totalorder %s20, 1
    %p169 = por %p167, %p168
    %p171 = scmp.ne.s32.totalorder %s156, %s170
    %p172 = scmp.eq.s32.totalorder %s20, 0
    %p173 = por %p171, %p172
    %s175 = sadd.s32 %s174, 1
    %p178 = scmp.eq.s32.totalorder %s14, 1
    %p179 = scmp.ne.s32.totalorder %s174, %s176
    %p180 = scmp.eq.s32.totalorder %s14, 0
    %p181 = por %p179, %p180
    %p182 = scmp.ne.s32.totalorder %s174, %s176
    %p183 = scmp.eq.s32.totalorder %s19, 1
    %p184 = por %p182, %p183
    %p185 = scmp.ne.s32.totalorder %s176, %s177
    %p186 = scmp.eq.s32.totalorder %s19, 0
    %p187 = por %p185, %p186
    %p188 = scmp.ne.s32.totalorder %s176, %s177
    %p189 = scmp.eq.s32.totalorder %s20, 1
    %p190 = por %p188, %p189
    %p192 = scmp.ne.s32.totalorder %s177, %s191
    %p193 = scmp.eq.s32.totalorder %s20, 0
    %p194 = por %p192, %p193
    %s195 = ssub.s32 %s14, %s21
    %p196 = scmp.eq.s32.totalorder %s195, 0
    %s198 = sadd.s32 %s197, 1
    %s199 = scalar_select %p196, %s197, %s198
    %p202 = pneg %p196
    %p203 = scmp.eq.s32.totalorder %s14, 1
    %p204 = por %p202, %p203
    %p205 = scmp.ne.s32.totalorder %s197, %s200
    %p206 = scmp.eq.s32.totalorder %s14, 0
    %p207 = por %p205, %p206
    %p208 = scmp.ne.s32.totalorder %s197, %s200
    %p209 = scmp.eq.s32.totalorder %s19, 1
    %p210 = por %p208, %p209
    %p211 = scmp.ne.s32.totalorder %s200, %s201
    %p212 = scmp.eq.s32.totalorder %s19, 0
    %p213 = por %p211, %p212
    %p214 = scmp.ne.s32.totalorder %s200, %s201
    %p215 = scmp.eq.s32.totalorder %s20, 1
    %p216 = por %p214, %p215
    %p218 = scmp.ne.s32.totalorder %s201, %s217
    %p219 = scmp.eq.s32.totalorder %s20, 0
    %p220 = por %p218, %p219
    %p221 = scmp.le.s32.totalorder 1, %s14
    %p222 = scmp.lt.s32.totalorder %s14, 3
    %p223 = pnand %p221, %p222
    %p224 = pneg %p223
    // Predicated region
    $region9: #{tiny_nerf_forward.1} parent=5 // pred_check
      _
    $region10: #{tiny_nerf_forward.1} parent=5 // pred_check_branch
      %226 = sbr.rel (%p223) target = $region12
    $region11: #{tiny_nerf_forward.1} parent=5 // pred_region
      %s227 = ssub.s32 %s14, 1
      // Predicated region
      $region13: #{tiny_nerf_forward.1} parent=11 // pred_check
        %p228 = pneg %p61
      $region14: #{tiny_nerf_forward.1} parent=11 // pred_check_branch
        %230 = sbr.rel (%p228) target = $region16
      $region15: #{tiny_nerf_forward.1} parent=11 // pred_region
        _
      $region16: #{tiny_nerf_forward.1} parent=11 // pred_fallthru
        _
      // Predicated region
      $region17: #{tiny_nerf_forward.1} parent=11 // pred_check
        %p231 = pneg %p82
      $region18: #{tiny_nerf_forward.1} parent=11 // pred_check_branch
        %233 = sbr.rel (%p231) target = $region20
      $region19: #{tiny_nerf_forward.1} parent=11 // pred_region
        _
      $region20: #{tiny_nerf_forward.1} parent=11 // pred_fallthru
        _
      // Predicated region
      $region21: #{tiny_nerf_forward.1} parent=11 // pred_check
        %p234 = pneg %p103
      $region22: #{tiny_nerf_forward.1} parent=11 // pred_check_branch
        %236 = sbr.rel (%p234) target = $region24
      $region23: #{tiny_nerf_forward.1} parent=11 // pred_region
        _
      $region24: #{tiny_nerf_forward.1} parent=11 // pred_fallthru
        _
      // Predicated region
      $region25: #{tiny_nerf_forward.1} parent=11 // pred_check
        %p237 = pneg %p124
      $region26: #{tiny_nerf_forward.1} parent=11 // pred_check_branch
        %239 = sbr.rel (%p237) target = $region28
      $region27: #{tiny_nerf_forward.1} parent=11 // pred_region
        _
      $region28: #{tiny_nerf_forward.1} parent=11 // pred_fallthru
        _
      // Predicated region
      $region29: #{tiny_nerf_forward.1} parent=11 // pred_check
        %p240 = pneg %p145
      $region30: #{tiny_nerf_forward.1} parent=11 // pred_check_branch
        %242 = sbr.rel (%p240) target = $region32
      $region31: #{tiny_nerf_forward.1} parent=11 // pred_region
        _
      $region32: #{tiny_nerf_forward.1} parent=11 // pred_fallthru
        _
      // Predicated region
      $region33: #{tiny_nerf_forward.1} parent=11 // pred_check
        %p243 = pneg %p166
      $region34: #{tiny_nerf_forward.1} parent=11 // pred_check_branch
        %245 = sbr.rel (%p243) target = $region36
      $region35: #{tiny_nerf_forward.1} parent=11 // pred_region
        _
      $region36: #{tiny_nerf_forward.1} parent=11 // pred_fallthru
        _
      // Predicated region
      $region37: #{tiny_nerf_forward.1} parent=11 // pred_check
        %p246 = pneg %p187
      $region38: #{tiny_nerf_forward.1} parent=11 // pred_check_branch
        %248 = sbr.rel (%p246) target = $region40
      $region39: #{tiny_nerf_forward.1} parent=11 // pred_region
        _
      $region40: #{tiny_nerf_forward.1} parent=11 // pred_fallthru
        _
    $region12: #{tiny_nerf_forward.1} parent=5 // pred_fallthru
      _
    %p249 = scmp.lt.s32.totalorder %s14, 2
    // Predicated region
    $region41: #{tiny_nerf_forward.1} parent=5 // pred_check
      %p250 = pneg %p249
    $region42: #{tiny_nerf_forward.1} parent=5 // pred_check_branch
      %252 = sbr.rel (%p250) target = $region44
    $region43: #{tiny_nerf_forward.1} parent=5 // pred_region
      // Predicated region
      $region45: #{tiny_nerf_forward.1} parent=43 // pred_check
        %p253 = pneg %p34
      $region46: #{tiny_nerf_forward.1} parent=43 // pred_check_branch
        %255 = sbr.rel (%p253) target = $region48
      $region47: #{tiny_nerf_forward.1} parent=43 // pred_region
        %s256 = smul.u32 64, %s14
        %p257 = scmp.lt.s32.totalorder %s256, 127
        %s258 = scalar_select %p257, %s256, 127
        %s259 = smul.addr %s258, 4
        %s260 = scalar_lea.vmem %s0, %s259
        %s261 = smul.u32 64, %s14
      $region48: #{tiny_nerf_forward.1} parent=43 // pred_fallthru
        _
    $region44: #{tiny_nerf_forward.1} parent=5 // pred_fallthru
      _
    %p262 = scmp.le.s32.totalorder 1, %s14
    %p263 = scmp.lt.s32.totalorder %s14, 3
    %p264 = pnand %p262, %p263
    %p265 = pneg %p264
    // Predicated region
    $region49: #{tiny_nerf_forward.1} parent=5 // pred_check
      _
    $region50: #{tiny_nerf_forward.1} parent=5 // pred_check_branch
      %267 = sbr.rel (%p264) target = $region52
    $region51: #{tiny_nerf_forward.1} parent=5 // pred_region
      %s268 = ssub.s32 %s14, 1
      %s269 = smul.u32 64, %s19
      %p270 = scmp.lt.s32.totalorder %s269, 127
      %s271 = scalar_select %p270, %s269, 127
      %s272 = smul.addr %s271, 4
      %s273 = scalar_lea.vmem %s0, %s272
      %p274 = pneg %p40
      %p275 = pneg %p37
      %p276 = pneg %p61
      %p277 = pneg %p58
      %p278 = pneg %p82
      %p279 = pneg %p79
      %p280 = pneg %p103
      %p281 = pneg %p100
      %p282 = pneg %p124
      %p283 = pneg %p121
      %p284 = pneg %p145
      %p285 = pneg %p142
      %p286 = pneg %p166
      %p287 = pneg %p163
      %p288 = pneg %p187
      %p289 = pneg %p184
      %p290 = pneg %p213
      %p291 = pneg %p210
      %s292 = smul.u32 64, %s19
      %p293 = scmp.lt.s32.totalorder %s292, 127
      %s294 = scalar_select %p293, %s292, 127
      %s295 = smul.addr %s294, 8
      %s296 = scalar_lea.vmem %s8, %s295
      %s297 = smul.u32 64, %s19
      %p298 = scmp.lt.s32.totalorder %s297, 127
      %s299 = scalar_select %p298, %s297, 127
      %s300 = smul.addr %s299, 4
      %s301 = scalar_lea.vmem %s0, %s300
      %s302 = smul.u32 64, %s19
      %s303 = smul.u32 64, %s19
      %p304 = scmp.lt.s32.totalorder %s303, 127
      %s305 = scalar_select %p304, %s303, 127
      %s306 = smul.addr %s305, 8
      %s307 = scalar_lea.vmem %s8, %s306
      %s308 = smul.u32 64, %s19
      %v310 = vld [vmem:[%s301] sm:$0xf]
      %v311 = vld [vmem:[%s301 + $0x4] sm:$0xf]
      %v312 = vld [vmem:[%s301 + $0x8] sm:$0xf]
      %v313 = vld [vmem:[%s301 + $0xc] sm:$0xf]
      %v314 = vld [vmem:[%s301 + $0x10] sm:$0xf]
      %v315 = vld [vmem:[%s301 + $0x14] sm:$0xf]
      %v316 = vld [vmem:[%s301 + $0x18] sm:$0xf]
      %v317 = vld [vmem:[%s301 + $0x1c] sm:$0xf]
      %v318 = vld [vmem:[%s301 + $0x20] sm:$0xf]
      %v319 = vld [vmem:[%s301 + $0x24] sm:$0xf]
      %v320 = vld [vmem:[%s301 + $0x28] sm:$0xf]
      %v321 = vld [vmem:[%s301 + $0x2c] sm:$0xf]
      %v322 = vld [vmem:[%s301 + $0x30] sm:$0xf]
      %v323 = vld [vmem:[%s301 + $0x34] sm:$0xf]
      %v324 = vld [vmem:[%s301 + $0x38] sm:$0xf]
      %v325 = vld [vmem:[%s301 + $0x3c] sm:$0xf]
      %v326 = vld [vmem:[%s301 + $0x40] sm:$0xf]
      %v327 = vld [vmem:[%s301 + $0x44] sm:$0xf]
      %v328 = vld [vmem:[%s301 + $0x48] sm:$0xf]
      %v329 = vld [vmem:[%s301 + $0x4c] sm:$0xf]
      %v330 = vld [vmem:[%s301 + $0x50] sm:$0xf]
      %v331 = vld [vmem:[%s301 + $0x54] sm:$0xf]
      %v332 = vld [vmem:[%s301 + $0x58] sm:$0xf]
      %v333 = vld [vmem:[%s301 + $0x5c] sm:$0xf]
      %v334 = vld [vmem:[%s301 + $0x60] sm:$0xf]
      %v335 = vld [vmem:[%s301 + $0x64] sm:$0xf]
      %v336 = vld [vmem:[%s301 + $0x68] sm:$0xf]
      %v337 = vld [vmem:[%s301 + $0x6c] sm:$0xf]
      %v338 = vld [vmem:[%s301 + $0x70] sm:$0xf]
      %v339 = vld [vmem:[%s301 + $0x74] sm:$0xf]
      %v340 = vld [vmem:[%s301 + $0x78] sm:$0xf]
      %v341 = vld [vmem:[%s301 + $0x7c] sm:$0xf]
      %v342 = vld [vmem:[%s301 + $0x80] sm:$0xf]
      %v343 = vld [vmem:[%s301 + $0x84] sm:$0xf]
      %v344 = vld [vmem:[%s301 + $0x88] sm:$0xf]
      %v345 = vld [vmem:[%s301 + $0x8c] sm:$0xf]
      %v346 = vld [vmem:[%s301 + $0x90] sm:$0xf]
      %v347 = vld [vmem:[%s301 + $0x94] sm:$0xf]
      %v348 = vld [vmem:[%s301 + $0x98] sm:$0xf]
      %v349 = vld [vmem:[%s301 + $0x9c] sm:$0xf]
      %v350 = vld [vmem:[%s301 + $0xa0] sm:$0xf]
      %v351 = vld [vmem:[%s301 + $0xa4] sm:$0xf]
      %v352 = vld [vmem:[%s301 + $0xa8] sm:$0xf]
      %v353 = vld [vmem:[%s301 + $0xac] sm:$0xf]
      %v354 = vld [vmem:[%s301 + $0xb0] sm:$0xf]
      %v355 = vld [vmem:[%s301 + $0xb4] sm:$0xf]
      %v356 = vld [vmem:[%s301 + $0xb8] sm:$0xf]
      %v357 = vld [vmem:[%s301 + $0xbc] sm:$0xf]
      %v358 = vld [vmem:[%s301 + $0xc0] sm:$0xf]
      %v359 = vld [vmem:[%s301 + $0xc4] sm:$0xf]
      %v360 = vld [vmem:[%s301 + $0xc8] sm:$0xf]
      %v361 = vld [vmem:[%s301 + $0xcc] sm:$0xf]
      %v362 = vld [vmem:[%s301 + $0xd0] sm:$0xf]
      %v363 = vld [vmem:[%s301 + $0xd4] sm:$0xf]
      %v364 = vld [vmem:[%s301 + $0xd8] sm:$0xf]
      %v365 = vld [vmem:[%s301 + $0xdc] sm:$0xf]
      %v366 = vld [vmem:[%s301 + $0xe0] sm:$0xf]
      %v367 = vld [vmem:[%s301 + $0xe4] sm:$0xf]
      %v368 = vld [vmem:[%s301 + $0xe8] sm:$0xf]
      %v369 = vld [vmem:[%s301 + $0xec] sm:$0xf]
      %v370 = vld [vmem:[%s301 + $0xf0] sm:$0xf]
      %v371 = vld [vmem:[%s301 + $0xf4] sm:$0xf]
      %v372 = vld [vmem:[%s301 + $0xf8] sm:$0xf]
      %v373 = vld [vmem:[%s301 + $0xfc] sm:$0xf]
      %v374 = vld [vmem:[%s7] sm:$0xff]
      %v375 = vld [vmem:[%s7 + $0x8] sm:$0xff]
      %v376 = vld [vmem:[%s6] sm:$0xff]
      %v377 = vld [vmem:[%s6 + $0x8] sm:$0xff]
      %v378 = vld [vmem:[%s1] sm:$0xff]
      %v379 = vld [vmem:[%s1 + $0x8] sm:$0xff]
      %v380 = vld [vmem:[%s1 + $0x10] sm:$0xff]
      %v381 = vld [vmem:[%s1 + $0x18] sm:$0xff]
      %v382 = vld [vmem:[%s1 + $0x20] sm:$0xff]
      %v383 = vld [vmem:[%s1 + $0x28] sm:$0xff]
      %v384 = vld [vmem:[%s1 + $0x30] sm:$0xff]
      %v385 = vld [vmem:[%s1 + $0x38] sm:$0xff]
      %v386 = vld [vmem:[%s1 + $0x40] sm:$0xff]
      %v387 = vld [vmem:[%s1 + $0x48] sm:$0xff]
      %v388 = vld [vmem:[%s1 + $0x50] sm:$0xff]
      %v389 = vld [vmem:[%s1 + $0x58] sm:$0xff]
      %v390 = vld [vmem:[%s1 + $0x60] sm:$0xff]
      %v391 = vld [vmem:[%s1 + $0x68] sm:$0xff]
      %v392 = vld [vmem:[%s1 + $0x70] sm:$0xff]
      %v393 = vld [vmem:[%s1 + $0x78] sm:$0xff]
      %v394 = vlaneseq
      %v395 = vshrl.u32 %v394, 7
      %v396 = vsub.s32 0, %v395
      %v397 = vrot.slane %v374, %v396
      %v398 = vlaneseq
      %v399 = vshrl.u32 %v398, 7
      %v400 = vsub.s32 0, %v399
      %v401 = vrot.slane %v375, %v400
      %v466 = vunpack.c.l.b16 %v310
      %v467 = vunpack.c.l.b16 %v311
      %v468 = vunpack.c.l.b16 %v312
      %v469 = vunpack.c.l.b16 %v313
      %v470 = vunpack.c.l.b16 %v314
      %v471 = vunpack.c.l.b16 %v315
      %v472 = vunpack.c.l.b16 %v316
      %v473 = vunpack.c.l.b16 %v317
      %v474 = vunpack.c.l.b16 %v318
      %v475 = vunpack.c.l.b16 %v319
      %v476 = vunpack.c.l.b16 %v320
      %v477 = vunpack.c.l.b16 %v321
      %v478 = vunpack.c.l.b16 %v322
      %v479 = vunpack.c.l.b16 %v323
      %v480 = vunpack.c.l.b16 %v324
      %v481 = vunpack.c.l.b16 %v325
      %v482 = vunpack.c.l.b16 %v326
      %v483 = vunpack.c.l.b16 %v327
      %v484 = vunpack.c.l.b16 %v328
      %v485 = vunpack.c.l.b16 %v329
      %v486 = vunpack.c.l.b16 %v330
      %v487 = vunpack.c.l.b16 %v331
      %v488 = vunpack.c.l.b16 %v332
      %v489 = vunpack.c.l.b16 %v333
      %v490 = vunpack.c.l.b16 %v334
      %v491 = vunpack.c.l.b16 %v335
      %v492 = vunpack.c.l.b16 %v336
      %v493 = vunpack.c.l.b16 %v337
      %v494 = vunpack.c.l.b16 %v338
      %v495 = vunpack.c.l.b16 %v339
      %v496 = vunpack.c.l.b16 %v340
      %v497 = vunpack.c.l.b16 %v341
      %v498 = vunpack.c.l.b16 %v342
      %v499 = vunpack.c.l.b16 %v343
      %v500 = vunpack.c.l.b16 %v344
      %v501 = vunpack.c.l.b16 %v345
      %v502 = vunpack.c.l.b16 %v346
      %v503 = vunpack.c.l.b16 %v347
      %v504 = vunpack.c.l.b16 %v348
      %v505 = vunpack.c.l.b16 %v349
      %v506 = vunpack.c.l.b16 %v350
      %v507 = vunpack.c.l.b16 %v351
      %v508 = vunpack.c.l.b16 %v352
      %v509 = vunpack.c.l.b16 %v353
      %v510 = vunpack.c.l.b16 %v354
      %v511 = vunpack.c.l.b16 %v355
      %v512 = vunpack.c.l.b16 %v356
      %v513 = vunpack.c.l.b16 %v357
      %v514 = vunpack.c.l.b16 %v358
      %v515 = vunpack.c.l.b16 %v359
      %v516 = vunpack.c.l.b16 %v360
      %v517 = vunpack.c.l.b16 %v361
      %v518 = vunpack.c.l.b16 %v362
      %v519 = vunpack.c.l.b16 %v363
      %v520 = vunpack.c.l.b16 %v364
      %v521 = vunpack.c.l.b16 %v365
      %v522 = vunpack.c.l.b16 %v366
      %v523 = vunpack.c.l.b16 %v367
      %v524 = vunpack.c.l.b16 %v368
      %v525 = vunpack.c.l.b16 %v369
      %v526 = vunpack.c.l.b16 %v370
      %v527 = vunpack.c.l.b16 %v371
      %v528 = vunpack.c.l.b16 %v372
      %v529 = vunpack.c.l.b16 %v373
      %v530 = vpack.c.b16 %v467, %v466
      %v531 = vpack.c.b16 %v469, %v468
      %v532 = vpack.c.b16 %v471, %v470
      %v533 = vpack.c.b16 %v473, %v472
      %v534 = vpack.c.b16 %v475, %v474
      %v535 = vpack.c.b16 %v477, %v476
      %v536 = vpack.c.b16 %v479, %v478
      %v537 = vpack.c.b16 %v481, %v480
      %v538 = vpack.c.b16 %v483, %v482
      %v539 = vpack.c.b16 %v485, %v484
      %v540 = vpack.c.b16 %v487, %v486
      %v541 = vpack.c.b16 %v489, %v488
      %v542 = vpack.c.b16 %v491, %v490
      %v543 = vpack.c.b16 %v493, %v492
      %v544 = vpack.c.b16 %v495, %v494
      %v545 = vpack.c.b16 %v497, %v496
      %v546 = vpack.c.b16 %v499, %v498
      %v547 = vpack.c.b16 %v501, %v500
      %v548 = vpack.c.b16 %v503, %v502
      %v549 = vpack.c.b16 %v505, %v504
      %v550 = vpack.c.b16 %v507, %v506
      %v551 = vpack.c.b16 %v509, %v508
      %v552 = vpack.c.b16 %v511, %v510
      %v553 = vpack.c.b16 %v513, %v512
      %v554 = vpack.c.b16 %v515, %v514
      %v555 = vpack.c.b16 %v517, %v516
      %v556 = vpack.c.b16 %v519, %v518
      %v557 = vpack.c.b16 %v521, %v520
      %v558 = vpack.c.b16 %v523, %v522
      %v559 = vpack.c.b16 %v525, %v524
      %v560 = vpack.c.b16 %v527, %v526
      %v561 = vpack.c.b16 %v529, %v528
      %v610 = vunpack.c.l.b16 %v378
      %v611 = vunpack.c.h.b16 %v378
      %v612 = vunpack.c.l.b16 %v379
      %v613 = vunpack.c.h.b16 %v379
      %v614 = vunpack.c.l.b16 %v380
      %v615 = vunpack.c.h.b16 %v380
      %v616 = vunpack.c.l.b16 %v381
      %v617 = vunpack.c.h.b16 %v381
      %v618 = vunpack.c.l.b16 %v382
      %v619 = vunpack.c.h.b16 %v382
      %v620 = vunpack.c.l.b16 %v383
      %v621 = vunpack.c.h.b16 %v383
      %v622 = vunpack.c.l.b16 %v384
      %v623 = vunpack.c.h.b16 %v384
      %v624 = vunpack.c.l.b16 %v385
      %v625 = vunpack.c.h.b16 %v385
      %v626 = vunpack.c.l.b16 %v386
      %v627 = vunpack.c.h.b16 %v386
      %v628 = vunpack.c.l.b16 %v387
      %v629 = vunpack.c.h.b16 %v387
      %v630 = vunpack.c.l.b16 %v388
      %v631 = vunpack.c.h.b16 %v388
      %v632 = vunpack.c.l.b16 %v389
      %v633 = vunpack.c.h.b16 %v389
      %v634 = vunpack.c.l.b16 %v390
      %v635 = vunpack.c.h.b16 %v390
      %v636 = vunpack.c.l.b16 %v391
      %v637 = vunpack.c.h.b16 %v391
      %v638 = vunpack.c.l.b16 %v392
      %v639 = vunpack.c.h.b16 %v392
      %v640 = vunpack.c.l.b16 %v393
      %v641 = vunpack.c.h.b16 %v393
      %v642 = vpack.c.b16 %v612, %v610
      %v643 = vpack.c.b16 %v613, %v611
      %v644 = vpack.c.b16 %v616, %v614
      %v645 = vpack.c.b16 %v617, %v615
      %v646 = vpack.c.b16 %v620, %v618
      %v647 = vpack.c.b16 %v621, %v619
      %v648 = vpack.c.b16 %v624, %v622
      %v649 = vpack.c.b16 %v625, %v623
      %v650 = vpack.c.b16 %v628, %v626
      %v651 = vpack.c.b16 %v629, %v627
      %v652 = vpack.c.b16 %v632, %v630
      %v653 = vpack.c.b16 %v633, %v631
      %v654 = vpack.c.b16 %v636, %v634
      %v655 = vpack.c.b16 %v637, %v635
      %v656 = vpack.c.b16 %v640, %v638
      %v657 = vpack.c.b16 %v641, %v639
      %674 = vmatprep.subr.bf16.mxu0 %v643
      %675 = vmatpush1.bf16.msra.mxu0 %v642
      %676 = vmatprep.subr.bf16.mxu0 %v645
      %677 = vmatpush1.bf16.msra.mxu0 %v644
      %678 = vmatprep.subr.bf16.mxu0 %v647
      %679 = vmatpush1.bf16.msra.mxu0 %v646
      %680 = vmatprep.subr.bf16.mxu0 %v649
      %681 = vmatpush1.bf16.msra.mxu0 %v648
      %682 = vmatprep.subr.bf16.mxu0 %v651
      %683 = vmatpush1.bf16.msra.mxu0 %v650
      %684 = vmatprep.subr.bf16.mxu0 %v653
      %685 = vmatpush1.bf16.msra.mxu0 %v652
      %686 = vmatprep.subr.bf16.mxu0 %v655
      %687 = vmatpush1.bf16.msra.mxu0 %v654
      %688 = vmatprep.subr.bf16.mxu0 %v657
      %689 = vmatpush1.bf16.msra.mxu0 %v656
      %690 = vmatprep.subr.bf16.mxu0 0
      %691 = vmatpush1.bf16.msra.mxu0 0
      %692 = vmatprep.subr.bf16.mxu0 0
      %693 = vmatpush1.bf16.msra.mxu0 0
      %694 = vmatprep.subr.bf16.mxu0 0
      %695 = vmatpush1.bf16.msra.mxu0 0
      %696 = vmatprep.subr.bf16.mxu0 0
      %697 = vmatpush1.bf16.msra.mxu0 0
      %698 = vmatprep.subr.bf16.mxu0 0
      %699 = vmatpush1.bf16.msra.mxu0 0
      %700 = vmatprep.subr.bf16.mxu0 0
      %701 = vmatpush1.bf16.msra.mxu0 0
      %702 = vmatprep.subr.bf16.mxu0 0
      %703 = vmatpush1.bf16.msra.mxu0 0
      %704 = vmatprep.subr.bf16.mxu0 0
      %705 = vmatpush1.bf16.msra.mxu0 0
      %706 = vmatprep.mubr.bf16.mxu0 0
      %707 = vmatmul.mubr.bf16.gmra.mrb[0].mxu0 %v530
      %v708 = vpop.f32.mrb[0].mxu0
      %v709 = vadd.f32 %v397, %v708
      %v710 = vpop.f32.mrb[0].mxu0
      %v711 = vadd.f32 %v401, %v710
      %v712 = vpop.f32.mrb[0].mxu0
      %v713 = vadd.f32 %v397, %v712
      %v714 = vpop.f32.mrb[0].mxu0
      %v715 = vadd.f32 %v401, %v714
      %716 = vmatprep.mubr.bf16.mxu0 0
      %717 = vmatmul.mubr.bf16.gmra.mrb[0].mxu0 %v531
      %v718 = vpop.f32.mrb[0].mxu0
      %v719 = vadd.f32 %v397, %v718
      %v720 = vpop.f32.mrb[0].mxu0
      %v721 = vadd.f32 %v401, %v720
      %v722 = vpop.f32.mrb[0].mxu0
      %v723 = vadd.f32 %v397, %v722
      %v724 = vpop.f32.mrb[0].mxu0
      %v725 = vadd.f32 %v401, %v724
      %726 = vmatprep.mubr.bf16.mxu0 0
      %727 = vmatmul.mubr.bf16.gmra.mrb[0].mxu0 %v532
      %v728 = vpop.f32.mrb[0].mxu0
      %v729 = vadd.f32 %v397, %v728
      %v730 = vpop.f32.mrb[0].mxu0
      %v731 = vadd.f32 %v401, %v730
      %v732 = vpop.f32.mrb[0].mxu0
      %v733 = vadd.f32 %v397, %v732
      %v734 = vpop.f32.mrb[0].mxu0
      %v735 = vadd.f32 %v401, %v734
      %736 = vmatprep.mubr.bf16.mxu0 0
      %737 = vmatmul.mubr.bf16.gmra.mrb[0].mxu0 %v533
      %v738 = vpop.f32.mrb[0].mxu0
      %v739 = vadd.f32 %v397, %v738
      %v740 = vpop.f32.mrb[0].mxu0
      %v741 = vadd.f32 %v401, %v740
      %v742 = vpop.f32.mrb[0].mxu0
      %v743 = vadd.f32 %v397, %v742
      %v744 = vpop.f32.mrb[0].mxu0
      %v745 = vadd.f32 %v401, %v744
      %746 = vmatprep.mubr.bf16.mxu0 0
      %747 = vmatmul.mubr.bf16.gmra.mrb[0].mxu0 %v534
      %v748 = vpop.f32.mrb[0].mxu0
      %v749 = vadd.f32 %v397, %v748
      %v750 = vpop.f32.mrb[0].mxu0
      %v751 = vadd.f32 %v401, %v750
      %v752 = vpop.f32.mrb[0].mxu0
      %v753 = vadd.f32 %v397, %v752
      %v754 = vpop.f32.mrb[0].mxu0
      %v755 = vadd.f32 %v401, %v754
      %756 = vmatprep.mubr.bf16.mxu0 0
      %757 = vmatmul.mubr.bf16.gmra.mrb[0].mxu0 %v535
      %v758 = vpop.f32.mrb[0].mxu0
      %v759 = vadd.f32 %v397, %v758
      %v760 = vpop.f32.mrb[0].mxu0
      %v761 = vadd.f32 %v401, %v760
      %v762 = vpop.f32.mrb[0].mxu0
      %v763 = vadd.f32 %v397, %v762
      %v764 = vpop.f32.mrb[0].mxu0
      %v765 = vadd.f32 %v401, %v764
      %766 = vmatprep.mubr.bf16.mxu0 0
      %767 = vmatmul.mubr.bf16.gmra.mrb[0].mxu0 %v536
      %v768 = vpop.f32.mrb[0].mxu0
      %v769 = vadd.f32 %v397, %v768
      %v770 = vpop.f32.mrb[0].mxu0
      %v771 = vadd.f32 %v401, %v770
      %v772 = vpop.f32.mrb[0].mxu0
      %v773 = vadd.f32 %v397, %v772
      %v774 = vpop.f32.mrb[0].mxu0
      %v775 = vadd.f32 %v401, %v774
      %776 = vmatprep.mubr.bf16.mxu0 0
      %777 = vmatmul.mubr.bf16.gmra.mrb[0].mxu0 %v537
      %v778 = vpop.f32.mrb[0].mxu0
      %v779 = vadd.f32 %v397, %v778
      %v780 = vpop.f32.mrb[0].mxu0
      %v781 = vadd.f32 %v401, %v780
      %v782 = vpop.f32.mrb[0].mxu0
      %v783 = vadd.f32 %v397, %v782
      %v784 = vpop.f32.mrb[0].mxu0
      %v785 = vadd.f32 %v401, %v784
      %786 = vmatprep.mubr.bf16.mxu0 0
      %787 = vmatmul.mubr.bf16.gmra.mrb[0].mxu0 %v538
      %v788 = vpop.f32.mrb[0].mxu0
      %v789 = vadd.f32 %v397, %v788
      %v790 = vpop.f32.mrb[0].mxu0
      %v791 = vadd.f32 %v401, %v790
      %v792 = vpop.f32.mrb[0].mxu0
      %v793 = vadd.f32 %v397, %v792
      %v794 = vpop.f32.mrb[0].mxu0
      %v795 = vadd.f32 %v401, %v794
      %796 = vmatprep.mubr.bf16.mxu0 0
      %797 = vmatmul.mubr.bf16.gmra.mrb[0].mxu0 %v539
      %v798 = vpop.f32.mrb[0].mxu0
      %v799 = vadd.f32 %v397, %v798
      %v800 = vpop.f32.mrb[0].mxu0
      %v801 = vadd.f32 %v401, %v800
      %v802 = vpop.f32.mrb[0].mxu0
      %v803 = vadd.f32 %v397, %v802
      %v804 = vpop.f32.mrb[0].mxu0
      %v805 = vadd.f32 %v401, %v804
      %806 = vmatprep.mubr.bf16.mxu0 0
      %807 = vmatmul.mubr.bf16.gmra.mrb[0].mxu0 %v540
      %v808 = vpop.f32.mrb[0].mxu0
      %v809 = vadd.f32 %v397, %v808
      %v810 = vpop.f32.mrb[0].mxu0
      %v811 = vadd.f32 %v401, %v810
      %v812 = vpop.f32.mrb[0].mxu0
      %v813 = vadd.f32 %v397, %v812
      %v814 = vpop.f32.mrb[0].mxu0
      %v815 = vadd.f32 %v401, %v814
      %816 = vmatprep.mubr.bf16.mxu0 0
      %817 = vmatmul.mubr.bf16.gmra.mrb[0].mxu0 %v541
      %v818 = vpop.f32.mrb[0].mxu0
      %v819 = vadd.f32 %v397, %v818
      %v820 = vpop.f32.mrb[0].mxu0
      %v821 = vadd.f32 %v401, %v820
      %v822 = vpop.f32.mrb[0].mxu0
      %v823 = vadd.f32 %v397, %v822
      %v824 = vpop.f32.mrb[0].mxu0
      %v825 = vadd.f32 %v401, %v824
      %826 = vmatprep.mubr.bf16.mxu0 0
      %827 = vmatmul.mubr.bf16.gmra.mrb[0].mxu0 %v542
      %v828 = vpop.f32.mrb[0].mxu0
      %v829 = vadd.f32 %v397, %v828
      %v830 = vpop.f32.mrb[0].mxu0
      %v831 = vadd.f32 %v401, %v830
      %v832 = vpop.f32.mrb[0].mxu0
      %v833 = vadd.f32 %v397, %v832
      %v834 = vpop.f32.mrb[0].mxu0
      %v835 = vadd.f32 %v401, %v834
      %836 = vmatprep.mubr.bf16.mxu0 0
      %837 = vmatmul.mubr.bf16.gmra.mrb[0].mxu0 %v543
      %v838 = vpop.f32.mrb[0].mxu0
      %v839 = vadd.f32 %v397, %v838
      %v840 = vpop.f32.mrb[0].mxu0
      %v841 = vadd.f32 %v401, %v840
      %v842 = vpop.f32.mrb[0].mxu0
      %v843 = vadd.f32 %v397, %v842
      %v844 = vpop.f32.mrb[0].mxu0
      %v845 = vadd.f32 %v401, %v844
      %846 = vmatprep.mubr.bf16.mxu0 0
      %847 = vmatmul.mubr.bf16.gmra.mrb[0].mxu0 %v544
      %v848 = vpop.f32.mrb[0].mxu0
      %v849 = vadd.f32 %v397, %v848
      %v850 = vpop.f32.mrb[0].mxu0
      %v851 = vadd.f32 %v401, %v850
      %v852 = vpop.f32.mrb[0].mxu0
      %v853 = vadd.f32 %v397, %v852
      %v854 = vpop.f32.mrb[0].mxu0
      %v855 = vadd.f32 %v401, %v854
      %856 = vmatprep.mubr.bf16.mxu0 0
      %857 = vmatmul.mubr.bf16.gmra.mrb[0].mxu0 %v545
      %v858 = vpop.f32.mrb[0].mxu0
      %v859 = vadd.f32 %v397, %v858
      %v860 = vpop.f32.mrb[0].mxu0
      %v861 = vadd.f32 %v401, %v860
      %v862 = vpop.f32.mrb[0].mxu0
      %v863 = vadd.f32 %v397, %v862
      %v864 = vpop.f32.mrb[0].mxu0
      %v865 = vadd.f32 %v401, %v864
      %866 = vmatprep.mubr.bf16.mxu0 0
      %867 = vmatmul.mubr.bf16.gmra.mrb[0].mxu0 %v546
      %v868 = vpop.f32.mrb[0].mxu0
      %v869 = vadd.f32 %v397, %v868
      %v870 = vpop.f32.mrb[0].mxu0
      %v871 = vadd.f32 %v401, %v870
      %v872 = vpop.f32.mrb[0].mxu0
      %v873 = vadd.f32 %v397, %v872
      %v874 = vpop.f32.mrb[0].mxu0
      %v875 = vadd.f32 %v401, %v874
      %876 = vmatprep.mubr.bf16.mxu0 0
      %877 = vmatmul.mubr.bf16.gmra.mrb[0].mxu0 %v547
      %v878 = vpop.f32.mrb[0].mxu0
      %v879 = vadd.f32 %v397, %v878
      %v880 = vpop.f32.mrb[0].mxu0
      %v881 = vadd.f32 %v401, %v880
      %v882 = vpop.f32.mrb[0].mxu0
      %v883 = vadd.f32 %v397, %v882
      %v884 = vpop.f32.mrb[0].mxu0
      %v885 = vadd.f32 %v401, %v884
      %886 = vmatprep.mubr.bf16.mxu0 0
      %887 = vmatmul.mubr.bf16.gmra.mrb[0].mxu0 %v548
      %v888 = vpop.f32.mrb[0].mxu0
      %v889 = vadd.f32 %v397, %v888
      %v890 = vpop.f32.mrb[0].mxu0
      %v891 = vadd.f32 %v401, %v890
      %v892 = vpop.f32.mrb[0].mxu0
      %v893 = vadd.f32 %v397, %v892
      %v894 = vpop.f32.mrb[0].mxu0
      %v895 = vadd.f32 %v401, %v894
      %896 = vmatprep.mubr.bf16.mxu0 0
      %897 = vmatmul.mubr.bf16.gmra.mrb[0].mxu0 %v549
      %v898 = vpop.f32.mrb[0].mxu0
      %v899 = vadd.f32 %v397, %v898
      %v900 = vpop.f32.mrb[0].mxu0
      %v901 = vadd.f32 %v401, %v900
      %v902 = vpop.f32.mrb[0].mxu0
      %v903 = vadd.f32 %v397, %v902
      %v904 = vpop.f32.mrb[0].mxu0
      %v905 = vadd.f32 %v401, %v904
      %906 = vmatprep.mubr.bf16.mxu0 0
      %907 = vmatmul.mubr.bf16.gmra.mrb[0].mxu0 %v550
      %v908 = vpop.f32.mrb[0].mxu0
      %v909 = vadd.f32 %v397, %v908
      %v910 = vpop.f32.mrb[0].mxu0
      %v911 = vadd.f32 %v401, %v910
      %v912 = vpop.f32.mrb[0].mxu0
      %v913 = vadd.f32 %v397, %v912
      %v914 = vpop.f32.mrb[0].mxu0
      %v915 = vadd.f32 %v401, %v914
      %916 = vmatprep.mubr.bf16.mxu0 0
      %917 = vmatmul.mubr.bf16.gmra.mrb[0].mxu0 %v551
      %v918 = vpop.f32.mrb[0].mxu0
      %v919 = vadd.f32 %v397, %v918
      %v920 = vpop.f32.mrb[0].mxu0
      %v921 = vadd.f32 %v401, %v920
      %v922 = vpop.f32.mrb[0].mxu0
      %v923 = vadd.f32 %v397, %v922
      %v924 = vpop.f32.mrb[0].mxu0
      %v925 = vadd.f32 %v401, %v924
      %926 = vmatprep.mubr.bf16.mxu0 0
      %927 = vmatmul.mubr.bf16.gmra.mrb[0].mxu0 %v552
      %v928 = vpop.f32.mrb[0].mxu0
      %v929 = vadd.f32 %v397, %v928
      %v930 = vpop.f32.mrb[0].mxu0
      %v931 = vadd.f32 %v401, %v930
      %v932 = vpop.f32.mrb[0].mxu0
      %v933 = vadd.f32 %v397, %v932
      %v934 = vpop.f32.mrb[0].mxu0
      %v935 = vadd.f32 %v401, %v934
      %936 = vmatprep.mubr.bf16.mxu0 0
      %937 = vmatmul.mubr.bf16.gmra.mrb[0].mxu0 %v553
      %v938 = vpop.f32.mrb[0].mxu0
      %v939 = vadd.f32 %v397, %v938
      %v940 = vpop.f32.mrb[0].mxu0
      %v941 = vadd.f32 %v401, %v940
      %v942 = vpop.f32.mrb[0].mxu0
      %v943 = vadd.f32 %v397, %v942
      %v944 = vpop.f32.mrb[0].mxu0
      %v945 = vadd.f32 %v401, %v944
      %946 = vmatprep.mubr.bf16.mxu0 0
      %947 = vmatmul.mubr.bf16.gmra.mrb[0].mxu0 %v554
      %v948 = vpop.f32.mrb[0].mxu0
      %v949 = vadd.f32 %v397, %v948
      %v950 = vpop.f32.mrb[0].mxu0
      %v951 = vadd.f32 %v401, %v950
      %v952 = vpop.f32.mrb[0].mxu0
      %v953 = vadd.f32 %v397, %v952
      %v954 = vpop.f32.mrb[0].mxu0
      %v955 = vadd.f32 %v401, %v954
      %956 = vmatprep.mubr.bf16.mxu0 0
      %957 = vmatmul.mubr.bf16.gmra.mrb[0].mxu0 %v555
      %v958 = vpop.f32.mrb[0].mxu0
      %v959 = vadd.f32 %v397, %v958
      %v960 = vpop.f32.mrb[0].mxu0
      %v961 = vadd.f32 %v401, %v960
      %v962 = vpop.f32.mrb[0].mxu0
      %v963 = vadd.f32 %v397, %v962
      %v964 = vpop.f32.mrb[0].mxu0
      %v965 = vadd.f32 %v401, %v964
      %966 = vmatprep.mubr.bf16.mxu0 0
      %967 = vmatmul.mubr.bf16.gmra.mrb[0].mxu0 %v556
      %v968 = vpop.f32.mrb[0].mxu0
      %v969 = vadd.f32 %v397, %v968
      %v970 = vpop.f32.mrb[0].mxu0
      %v971 = vadd.f32 %v401, %v970
      %v972 = vpop.f32.mrb[0].mxu0
      %v973 = vadd.f32 %v397, %v972
      %v974 = vpop.f32.mrb[0].mxu0
      %v975 = vadd.f32 %v401, %v974
      %976 = vmatprep.mubr.bf16.mxu0 0
      %977 = vmatmul.mubr.bf16.gmra.mrb[0].mxu0 %v557
      %v978 = vpop.f32.mrb[0].mxu0
      %v979 = vadd.f32 %v397, %v978
      %v980 = vpop.f32.mrb[0].mxu0
      %v981 = vadd.f32 %v401, %v980
      %v982 = vpop.f32.mrb[0].mxu0
      %v983 = vadd.f32 %v397, %v982
      %v984 = vpop.f32.mrb[0].mxu0
      %v985 = vadd.f32 %v401, %v984
      %986 = vmatprep.mubr.bf16.mxu0 0
      %987 = vmatmul.mubr.bf16.gmra.mrb[0].mxu0 %v558
      %v988 = vpop.f32.mrb[0].mxu0
      %v989 = vadd.f32 %v397, %v988
      %v990 = vpop.f32.mrb[0].mxu0
      %v991 = vadd.f32 %v401, %v990
      %v992 = vpop.f32.mrb[0].mxu0
      %v993 = vadd.f32 %v397, %v992
      %v994 = vpop.f32.mrb[0].mxu0
      %v995 = vadd.f32 %v401, %v994
      %996 = vmatprep.mubr.bf16.mxu0 0
      %997 = vmatmul.mubr.bf16.gmra.mrb[0].mxu0 %v559
      %v998 = vpop.f32.mrb[0].mxu0
      %v999 = vadd.f32 %v397, %v998
      %v1000 = vpop.f32.mrb[0].mxu0
      %v1001 = vadd.f32 %v401, %v1000
      %v1002 = vpop.f32.mrb[0].mxu0
      %v1003 = vadd.f32 %v397, %v1002
      %v1004 = vpop.f32.mrb[0].mxu0
      %v1005 = vadd.f32 %v401, %v1004
      %1006 = vmatprep.mubr.bf16.mxu0 0
      %1007 = vmatmul.mubr.bf16.gmra.mrb[0].mxu0 %v560
      %v1008 = vpop.f32.mrb[0].mxu0
      %v1009 = vadd.f32 %v397, %v1008
      %v1010 = vpop.f32.mrb[0].mxu0
      %v1011 = vadd.f32 %v401, %v1010
      %v1012 = vpop.f32.mrb[0].mxu0
      %v1013 = vadd.f32 %v397, %v1012
      %v1014 = vpop.f32.mrb[0].mxu0
      %v1015 = vadd.f32 %v401, %v1014
      %1016 = vmatprep.mubr.bf16.mxu0 0
      %1017 = vmatmul.mubr.bf16.gmra.mrb[0].mxu0 %v561
      %v1018 = vpop.f32.mrb[0].mxu0
      %v1019 = vadd.f32 %v397, %v1018
      %v1020 = vpop.f32.mrb[0].mxu0
      %v1021 = vadd.f32 %v401, %v1020
      %v1022 = vpop.f32.mrb[0].mxu0
      %v1023 = vadd.f32 %v397, %v1022
      %v1024 = vpop.f32.mrb[0].mxu0
      %v1025 = vadd.f32 %v401, %v1024
      %1026 = vdwg.mxu0
      %v1027 = vmax.f32 %v709, 0.0
      %v1028 = vmax.f32 %v711, 0.0
      %v1029 = vmax.f32 %v713, 0.0
      %v1030 = vmax.f32 %v715, 0.0
      %v1031 = vmax.f32 %v719, 0.0
      %v1032 = vmax.f32 %v721, 0.0
      %v1033 = vmax.f32 %v723, 0.0
      %v1034 = vmax.f32 %v725, 0.0
      %v1035 = vmax.f32 %v729, 0.0
      %v1036 = vmax.f32 %v731, 0.0
      %v1037 = vmax.f32 %v733, 0.0
      %v1038 = vmax.f32 %v735, 0.0
      %v1039 = vmax.f32 %v739, 0.0
      %v1040 = vmax.f32 %v741, 0.0
      %v1041 = vmax.f32 %v743, 0.0
      %v1042 = vmax.f32 %v745, 0.0
      %v1043 = vmax.f32 %v749, 0.0
      %v1044 = vmax.f32 %v751, 0.0
      %v1045 = vmax.f32 %v753, 0.0
      %v1046 = vmax.f32 %v755, 0.0
      %v1047 = vmax.f32 %v759, 0.0
      %v1048 = vmax.f32 %v761, 0.0
      %v1049 = vmax.f32 %v763, 0.0
      %v1050 = vmax.f32 %v765, 0.0
      %v1051 = vmax.f32 %v769, 0.0
      %v1052 = vmax.f32 %v771, 0.0
      %v1053 = vmax.f32 %v773, 0.0
      %v1054 = vmax.f32 %v775, 0.0
      %v1055 = vmax.f32 %v779, 0.0
      %v1056 = vmax.f32 %v781, 0.0
      %v1057 = vmax.f32 %v783, 0.0
      %v1058 = vmax.f32 %v785, 0.0
      %v1059 = vmax.f32 %v789, 0.0
      %v1060 = vmax.f32 %v791, 0.0
      %v1061 = vmax.f32 %v793, 0.0
      %v1062 = vmax.f32 %v795, 0.0
      %v1063 = vmax.f32 %v799, 0.0
      %v1064 = vmax.f32 %v801, 0.0
      %v1065 = vmax.f32 %v803, 0.0
      %v1066 = vmax.f32 %v805, 0.0
      %v1067 = vmax.f32 %v809, 0.0
      %v1068 = vmax.f32 %v811, 0.0
      %v1069 = vmax.f32 %v813, 0.0
      %v1070 = vmax.f32 %v815, 0.0
      %v1071 = vmax.f32 %v819, 0.0
      %v1072 = vmax.f32 %v821, 0.0
      %v1073 = vmax.f32 %v823, 0.0
      %v1074 = vmax.f32 %v825, 0.0
      %v1075 = vmax.f32 %v829, 0.0
      %v1076 = vmax.f32 %v831, 0.0
      %v1077 = vmax.f32 %v833, 0.0
      %v1078 = vmax.f32 %v835, 0.0
      %v1079 = vmax.f32 %v839, 0.0
      %v1080 = vmax.f32 %v841, 0.0
      %v1081 = vmax.f32 %v843, 0.0
      %v1082 = vmax.f32 %v845, 0.0
      %v1083 = vmax.f32 %v849, 0.0
      %v1084 = vmax.f32 %v851, 0.0
      %v1085 = vmax.f32 %v853, 0.0
      %v1086 = vmax.f32 %v855, 0.0
      %v1087 = vmax.f32 %v859, 0.0
      %v1088 = vmax.f32 %v861, 0.0
      %v1089 = vmax.f32 %v863, 0.0
      %v1090 = vmax.f32 %v865, 0.0
      %v1091 = vmax.f32 %v869, 0.0
      %v1092 = vmax.f32 %v871, 0.0
      %v1093 = vmax.f32 %v873, 0.0
      %v1094 = vmax.f32 %v875, 0.0
      %v1095 = vmax.f32 %v879, 0.0
      %v1096 = vmax.f32 %v881, 0.0
      %v1097 = vmax.f32 %v883, 0.0
      %v1098 = vmax.f32 %v885, 0.0
      %v1099 = vmax.f32 %v889, 0.0
      %v1100 = vmax.f32 %v891, 0.0
      %v1101 = vmax.f32 %v893, 0.0
      %v1102 = vmax.f32 %v895, 0.0
      %v1103 = vmax.f32 %v899, 0.0
      %v1104 = vmax.f32 %v901, 0.0
      %v1105 = vmax.f32 %v903, 0.0
      %v1106 = vmax.f32 %v905, 0.0
      %v1107 = vmax.f32 %v909, 0.0
      %v1108 = vmax.f32 %v911, 0.0
      %v1109 = vmax.f32 %v913, 0.0
      %v1110 = vmax.f32 %v915, 0.0
      %v1111 = vmax.f32 %v919, 0.0
      %v1112 = vmax.f32 %v921, 0.0
      %v1113 = vmax.f32 %v923, 0.0
      %v1114 = vmax.f32 %v925, 0.0
      %v1115 = vmax.f32 %v929, 0.0
      %v1116 = vmax.f32 %v931, 0.0
      %v1117 = vmax.f32 %v933, 0.0
      %v1118 = vmax.f32 %v935, 0.0
      %v1119 = vmax.f32 %v939, 0.0
      %v1120 = vmax.f32 %v941, 0.0
      %v1121 = vmax.f32 %v943, 0.0
      %v1122 = vmax.f32 %v945, 0.0
      %v1123 = vmax.f32 %v949, 0.0
      %v1124 = vmax.f32 %v951, 0.0
      %v1125 = vmax.f32 %v953, 0.0
      %v1126 = vmax.f32 %v955, 0.0
      %v1127 = vmax.f32 %v959, 0.0
      %v1128 = vmax.f32 %v961, 0.0
      %v1129 = vmax.f32 %v963, 0.0
      %v1130 = vmax.f32 %v965, 0.0
      %v1131 = vmax.f32 %v969, 0.0
      %v1132 = vmax.f32 %v971, 0.0
      %v1133 = vmax.f32 %v973, 0.0
      %v1134 = vmax.f32 %v975, 0.0
      %v1135 = vmax.f32 %v979, 0.0
      %v1136 = vmax.f32 %v981, 0.0
      %v1137 = vmax.f32 %v983, 0.0
      %v1138 = vmax.f32 %v985, 0.0
      %v1139 = vmax.f32 %v989, 0.0
      %v1140 = vmax.f32 %v991, 0.0
      %v1141 = vmax.f32 %v993, 0.0
      %v1142 = vmax.f32 %v995, 0.0
      %v1143 = vmax.f32 %v999, 0.0
      %v1144 = vmax.f32 %v1001, 0.0
      %v1145 = vmax.f32 %v1003, 0.0
      %v1146 = vmax.f32 %v1005, 0.0
      %v1147 = vmax.f32 %v1009, 0.0
      %v1148 = vmax.f32 %v1011, 0.0
      %v1149 = vmax.f32 %v1013, 0.0
      %v1150 = vmax.f32 %v1015, 0.0
      %v1151 = vmax.f32 %v1019, 0.0
      %v1152 = vmax.f32 %v1021, 0.0
      %v1153 = vmax.f32 %v1023, 0.0
      %v1154 = vmax.f32 %v1025, 0.0
      %v1155 = vlaneseq
      %v1156 = vshrl.u32 %v1155, 7
      %v1157 = vsub.s32 3, %v1156
      %v1158 = vrot.slane %v376, %v1157
      %v1159 = vlaneseq
      %v1160 = vshrl.u32 %v1159, 7
      %v1161 = vsub.s32 3, %v1160
      %v1162 = vrot.slane %v377, %v1161
      %v1163 = vmul.f32 %v1027, %v1158
      %v1164 = vmul.f32 %v1028, %v1162
      %v1165 = vmul.f32 %v1029, %v1158
      %v1166 = vmul.f32 %v1030, %v1162
      %v1167 = vmul.f32 %v1031, %v1158
      %v1168 = vmul.f32 %v1032, %v1162
      %v1169 = vmul.f32 %v1033, %v1158
      %v1170 = vmul.f32 %v1034, %v1162
      %v1171 = vmul.f32 %v1035, %v1158
      %v1172 = vmul.f32 %v1036, %v1162
      %v1173 = vmul.f32 %v1037, %v1158
      %v1174 = vmul.f32 %v1038, %v1162
      %v1175 = vmul.f32 %v1039, %v1158
      %v1176 = vmul.f32 %v1040, %v1162
      %v1177 = vmul.f32 %v1041, %v1158
      %v1178 = vmul.f32 %v1042, %v1162
      %v1179 = vmul.f32 %v1043, %v1158
      %v1180 = vmul.f32 %v1044, %v1162
      %v1181 = vmul.f32 %v1045, %v1158
      %v1182 = vmul.f32 %v1046, %v1162
      %v1183 = vmul.f32 %v1047, %v1158
      %v1184 = vmul.f32 %v1048, %v1162
      %v1185 = vmul.f32 %v1049, %v1158
      %v1186 = vmul.f32 %v1050, %v1162
      %v1187 = vmul.f32 %v1051, %v1158
      %v1188 = vmul.f32 %v1052, %v1162
      %v1189 = vmul.f32 %v1053, %v1158
      %v1190 = vmul.f32 %v1054, %v1162
      %v1191 = vmul.f32 %v1055, %v1158
      %v1192 = vmul.f32 %v1056, %v1162
      %v1193 = vmul.f32 %v1057, %v1158
      %v1194 = vmul.f32 %v1058, %v1162
      %v1195 = vmul.f32 %v1059, %v1158
      %v1196 = vmul.f32 %v1060, %v1162
      %v1197 = vmul.f32 %v1061, %v1158
      %v1198 = vmul.f32 %v1062, %v1162
      %v1199 = vmul.f32 %v1063, %v1158
      %v1200 = vmul.f32 %v1064, %v1162
      %v1201 = vmul.f32 %v1065, %v1158
      %v1202 = vmul.f32 %v1066, %v1162
      %v1203 = vmul.f32 %v1067, %v1158
      %v1204 = vmul.f32 %v1068, %v1162
      %v1205 = vmul.f32 %v1069, %v1158
      %v1206 = vmul.f32 %v1070, %v1162
      %v1207 = vmul.f32 %v1071, %v1158
      %v1208 = vmul.f32 %v1072, %v1162
      %v1209 = vmul.f32 %v1073, %v1158
      %v1210 = vmul.f32 %v1074, %v1162
      %v1211 = vmul.f32 %v1075, %v1158
      %v1212 = vmul.f32 %v1076, %v1162
      %v1213 = vmul.f32 %v1077, %v1158
      %v1214 = vmul.f32 %v1078, %v1162
      %v1215 = vmul.f32 %v1079, %v1158
      %v1216 = vmul.f32 %v1080, %v1162
      %v1217 = vmul.f32 %v1081, %v1158
      %v1218 = vmul.f32 %v1082, %v1162
      %v1219 = vmul.f32 %v1083, %v1158
      %v1220 = vmul.f32 %v1084, %v1162
      %v1221 = vmul.f32 %v1085, %v1158
      %v1222 = vmul.f32 %v1086, %v1162
      %v1223 = vmul.f32 %v1087, %v1158
      %v1224 = vmul.f32 %v1088, %v1162
      %v1225 = vmul.f32 %v1089, %v1158
      %v1226 = vmul.f32 %v1090, %v1162
      %v1227 = vmul.f32 %v1091, %v1158
      %v1228 = vmul.f32 %v1092, %v1162
      %v1229 = vmul.f32 %v1093, %v1158
      %v1230 = vmul.f32 %v1094, %v1162
      %v1231 = vmul.f32 %v1095, %v1158
      %v1232 = vmul.f32 %v1096, %v1162
      %v1233 = vmul.f32 %v1097, %v1158
      %v1234 = vmul.f32 %v1098, %v1162
      %v1235 = vmul.f32 %v1099, %v1158
      %v1236 = vmul.f32 %v1100, %v1162
      %v1237 = vmul.f32 %v1101, %v1158
      %v1238 = vmul.f32 %v1102, %v1162
      %v1239 = vmul.f32 %v1103, %v1158
      %v1240 = vmul.f32 %v1104, %v1162
      %v1241 = vmul.f32 %v1105, %v1158
      %v1242 = vmul.f32 %v1106, %v1162
      %v1243 = vmul.f32 %v1107, %v1158
      %v1244 = vmul.f32 %v1108, %v1162
      %v1245 = vmul.f32 %v1109, %v1158
      %v1246 = vmul.f32 %v1110, %v1162
      %v1247 = vmul.f32 %v1111, %v1158
      %v1248 = vmul.f32 %v1112, %v1162
      %v1249 = vmul.f32 %v1113, %v1158
      %v1250 = vmul.f32 %v1114, %v1162
      %v1251 = vmul.f32 %v1115, %v1158
      %v1252 = vmul.f32 %v1116, %v1162
      %v1253 = vmul.f32 %v1117, %v1158
      %v1254 = vmul.f32 %v1118, %v1162
      %v1255 = vmul.f32 %v1119, %v1158
      %v1256 = vmul.f32 %v1120, %v1162
      %v1257 = vmul.f32 %v1121, %v1158
      %v1258 = vmul.f32 %v1122, %v1162
      %v1259 = vmul.f32 %v1123, %v1158
      %v1260 = vmul.f32 %v1124, %v1162
      %v1261 = vmul.f32 %v1125, %v1158
      %v1262 = vmul.f32 %v1126, %v1162
      %v1263 = vmul.f32 %v1127, %v1158
      %v1264 = vmul.f32 %v1128, %v1162
      %v1265 = vmul.f32 %v1129, %v1158
      %v1266 = vmul.f32 %v1130, %v1162
      %v1267 = vmul.f32 %v1131, %v1158
      %v1268 = vmul.f32 %v1132, %v1162
      %v1269 = vmul.f32 %v1133, %v1158
      %v1270 = vmul.f32 %v1134, %v1162
      %v1271 = vmul.f32 %v1135, %v1158
      %v1272 = vmul.f32 %v1136, %v1162
      %v1273 = vmul.f32 %v1137, %v1158
      %v1274 = vmul.f32 %v1138, %v1162
      %v1275 = vmul.f32 %v1139, %v1158
      %v1276 = vmul.f32 %v1140, %v1162
      %v1277 = vmul.f32 %v1141, %v1158
      %v1278 = vmul.f32 %v1142, %v1162
      %v1279 = vmul.f32 %v1143, %v1158
      %v1280 = vmul.f32 %v1144, %v1162
      %v1281 = vmul.f32 %v1145, %v1158
      %v1282 = vmul.f32 %v1146, %v1162
      %v1283 = vmul.f32 %v1147, %v1158
      %v1284 = vmul.f32 %v1148, %v1162
      %v1285 = vmul.f32 %v1149, %v1158
      %v1286 = vmul.f32 %v1150, %v1162
      %v1287 = vmul.f32 %v1151, %v1158
      %v1288 = vmul.f32 %v1152, %v1162
      %v1289 = vmul.f32 %v1153, %v1158
      %v1290 = vmul.f32 %v1154, %v1162
      %v1291 = vadd.f32 %v1163, %v1164
      %1292 = vadd.xlane.f32.xlu0 %v1291
      %v1293 = vpop.xlane.xlu0 %1292
      %v1294 = vadd.f32 %v1165, %v1166
      %1295 = vadd.xlane.f32.xlu0 %v1294
      %v1296 = vpop.xlane.xlu0 %1295
      %v1297 = vadd.f32 %v1167, %v1168
      %1298 = vadd.xlane.f32.xlu0 %v1297
      %v1299 = vpop.xlane.xlu0 %1298
      %v1300 = vadd.f32 %v1169, %v1170
      %1301 = vadd.xlane.f32.xlu0 %v1300
      %v1302 = vpop.xlane.xlu0 %1301
      %v1303 = vadd.f32 %v1171, %v1172
      %1304 = vadd.xlane.f32.xlu0 %v1303
      %v1305 = vpop.xlane.xlu0 %1304
      %v1306 = vadd.f32 %v1173, %v1174
      %1307 = vadd.xlane.f32.xlu0 %v1306
      %v1308 = vpop.xlane.xlu0 %1307
      %v1309 = vadd.f32 %v1175, %v1176
      %1310 = vadd.xlane.f32.xlu0 %v1309
      %v1311 = vpop.xlane.xlu0 %1310
      %v1312 = vadd.f32 %v1177, %v1178
      %1313 = vadd.xlane.f32.xlu0 %v1312
      %v1314 = vpop.xlane.xlu0 %1313
      %v1315 = vadd.f32 %v1179, %v1180
      %1316 = vadd.xlane.f32.xlu0 %v1315
      %v1317 = vpop.xlane.xlu0 %1316
      %v1318 = vadd.f32 %v1181, %v1182
      %1319 = vadd.xlane.f32.xlu0 %v1318
      %v1320 = vpop.xlane.xlu0 %1319
      %v1321 = vadd.f32 %v1183, %v1184
      %1322 = vadd.xlane.f32.xlu0 %v1321
      %v1323 = vpop.xlane.xlu0 %1322
      %v1324 = vadd.f32 %v1185, %v1186
      %1325 = vadd.xlane.f32.xlu0 %v1324
      %v1326 = vpop.xlane.xlu0 %1325
      %v1327 = vadd.f32 %v1187, %v1188
      %1328 = vadd.xlane.f32.xlu0 %v1327
      %v1329 = vpop.xlane.xlu0 %1328
      %v1330 = vadd.f32 %v1189, %v1190
      %1331 = vadd.xlane.f32.xlu0 %v1330
      %v1332 = vpop.xlane.xlu0 %1331
      %v1333 = vadd.f32 %v1191, %v1192
      %1334 = vadd.xlane.f32.xlu0 %v1333
      %v1335 = vpop.xlane.xlu0 %1334
      %v1336 = vadd.f32 %v1193, %v1194
      %1337 = vadd.xlane.f32.xlu0 %v1336
      %v1338 = vpop.xlane.xlu0 %1337
      %v1339 = vadd.f32 %v1195, %v1196
      %1340 = vadd.xlane.f32.xlu0 %v1339
      %v1341 = vpop.xlane.xlu0 %1340
      %v1342 = vadd.f32 %v1197, %v1198
      %1343 = vadd.xlane.f32.xlu0 %v1342
      %v1344 = vpop.xlane.xlu0 %1343
      %v1345 = vadd.f32 %v1199, %v1200
      %1346 = vadd.xlane.f32.xlu0 %v1345
      %v1347 = vpop.xlane.xlu0 %1346
      %v1348 = vadd.f32 %v1201, %v1202
      %1349 = vadd.xlane.f32.xlu0 %v1348
      %v1350 = vpop.xlane.xlu0 %1349
      %v1351 = vadd.f32 %v1203, %v1204
      %1352 = vadd.xlane.f32.xlu0 %v1351
      %v1353 = vpop.xlane.xlu0 %1352
      %v1354 = vadd.f32 %v1205, %v1206
      %1355 = vadd.xlane.f32.xlu0 %v1354
      %v1356 = vpop.xlane.xlu0 %1355
      %v1357 = vadd.f32 %v1207, %v1208
      %1358 = vadd.xlane.f32.xlu0 %v1357
      %v1359 = vpop.xlane.xlu0 %1358
      %v1360 = vadd.f32 %v1209, %v1210
      %1361 = vadd.xlane.f32.xlu0 %v1360
      %v1362 = vpop.xlane.xlu0 %1361
      %v1363 = vadd.f32 %v1211, %v1212
      %1364 = vadd.xlane.f32.xlu0 %v1363
      %v1365 = vpop.xlane.xlu0 %1364
      %v1366 = vadd.f32 %v1213, %v1214
      %1367 = vadd.xlane.f32.xlu0 %v1366
      %v1368 = vpop.xlane.xlu0 %1367
      %v1369 = vadd.f32 %v1215, %v1216
      %1370 = vadd.xlane.f32.xlu0 %v1369
      %v1371 = vpop.xlane.xlu0 %1370
      %v1372 = vadd.f32 %v1217, %v1218
      %1373 = vadd.xlane.f32.xlu0 %v1372
      %v1374 = vpop.xlane.xlu0 %1373
      %v1375 = vadd.f32 %v1219, %v1220
      %1376 = vadd.xlane.f32.xlu0 %v1375
      %v1377 = vpop.xlane.xlu0 %1376
      %v1378 = vadd.f32 %v1221, %v1222
      %1379 = vadd.xlane.f32.xlu0 %v1378
      %v1380 = vpop.xlane.xlu0 %1379
      %v1381 = vadd.f32 %v1223, %v1224
      %1382 = vadd.xlane.f32.xlu0 %v1381
      %v1383 = vpop.xlane.xlu0 %1382
      %v1384 = vadd.f32 %v1225, %v1226
      %1385 = vadd.xlane.f32.xlu0 %v1384
      %v1386 = vpop.xlane.xlu0 %1385
      %v1387 = vadd.f32 %v1227, %v1228
      %1388 = vadd.xlane.f32.xlu0 %v1387
      %v1389 = vpop.xlane.xlu0 %1388
      %v1390 = vadd.f32 %v1229, %v1230
      %1391 = vadd.xlane.f32.xlu0 %v1390
      %v1392 = vpop.xlane.xlu0 %1391
      %v1393 = vadd.f32 %v1231, %v1232
      %1394 = vadd.xlane.f32.xlu0 %v1393
      %v1395 = vpop.xlane.xlu0 %1394
      %v1396 = vadd.f32 %v1233, %v1234
      %1397 = vadd.xlane.f32.xlu0 %v1396
      %v1398 = vpop.xlane.xlu0 %1397
      %v1399 = vadd.f32 %v1235, %v1236
      %1400 = vadd.xlane.f32.xlu0 %v1399
      %v1401 = vpop.xlane.xlu0 %1400
      %v1402 = vadd.f32 %v1237, %v1238
      %1403 = vadd.xlane.f32.xlu0 %v1402
      %v1404 = vpop.xlane.xlu0 %1403
      %v1405 = vadd.f32 %v1239, %v1240
      %1406 = vadd.xlane.f32.xlu0 %v1405
      %v1407 = vpop.xlane.xlu0 %1406
      %v1408 = vadd.f32 %v1241, %v1242
      %1409 = vadd.xlane.f32.xlu0 %v1408
      %v1410 = vpop.xlane.xlu0 %1409
      %v1411 = vadd.f32 %v1243, %v1244
      %1412 = vadd.xlane.f32.xlu0 %v1411
      %v1413 = vpop.xlane.xlu0 %1412
      %v1414 = vadd.f32 %v1245, %v1246
      %1415 = vadd.xlane.f32.xlu0 %v1414
      %v1416 = vpop.xlane.xlu0 %1415
      %v1417 = vadd.f32 %v1247, %v1248
      %1418 = vadd.xlane.f32.xlu0 %v1417
      %v1419 = vpop.xlane.xlu0 %1418
      %v1420 = vadd.f32 %v1249, %v1250
      %1421 = vadd.xlane.f32.xlu0 %v1420
      %v1422 = vpop.xlane.xlu0 %1421
      %v1423 = vadd.f32 %v1251, %v1252
      %1424 = vadd.xlane.f32.xlu0 %v1423
      %v1425 = vpop.xlane.xlu0 %1424
      %v1426 = vadd.f32 %v1253, %v1254
      %1427 = vadd.xlane.f32.xlu0 %v1426
      %v1428 = vpop.xlane.xlu0 %1427
      %v1429 = vadd.f32 %v1255, %v1256
      %1430 = vadd.xlane.f32.xlu0 %v1429
      %v1431 = vpop.xlane.xlu0 %1430
      %v1432 = vadd.f32 %v1257, %v1258
      %1433 = vadd.xlane.f32.xlu0 %v1432
      %v1434 = vpop.xlane.xlu0 %1433
      %v1435 = vadd.f32 %v1259, %v1260
      %1436 = vadd.xlane.f32.xlu0 %v1435
      %v1437 = vpop.xlane.xlu0 %1436
      %v1438 = vadd.f32 %v1261, %v1262
      %1439 = vadd.xlane.f32.xlu0 %v1438
      %v1440 = vpop.xlane.xlu0 %1439
      %v1441 = vadd.f32 %v1263, %v1264
      %1442 = vadd.xlane.f32.xlu0 %v1441
      %v1443 = vpop.xlane.xlu0 %1442
      %v1444 = vadd.f32 %v1265, %v1266
      %1445 = vadd.xlane.f32.xlu0 %v1444
      %v1446 = vpop.xlane.xlu0 %1445
      %v1447 = vadd.f32 %v1267, %v1268
      %1448 = vadd.xlane.f32.xlu0 %v1447
      %v1449 = vpop.xlane.xlu0 %1448
      %v1450 = vadd.f32 %v1269, %v1270
      %1451 = vadd.xlane.f32.xlu0 %v1450
      %v1452 = vpop.xlane.xlu0 %1451
      %v1453 = vadd.f32 %v1271, %v1272
      %1454 = vadd.xlane.f32.xlu0 %v1453
      %v1455 = vpop.xlane.xlu0 %1454
      %v1456 = vadd.f32 %v1273, %v1274
      %1457 = vadd.xlane.f32.xlu0 %v1456
      %v1458 = vpop.xlane.xlu0 %1457
      %v1459 = vadd.f32 %v1275, %v1276
      %1460 = vadd.xlane.f32.xlu0 %v1459
      %v1461 = vpop.xlane.xlu0 %1460
      %v1462 = vadd.f32 %v1277, %v1278
      %1463 = vadd.xlane.f32.xlu0 %v1462
      %v1464 = vpop.xlane.xlu0 %1463
      %v1465 = vadd.f32 %v1279, %v1280
      %1466 = vadd.xlane.f32.xlu0 %v1465
      %v1467 = vpop.xlane.xlu0 %1466
      %v1468 = vadd.f32 %v1281, %v1282
      %1469 = vadd.xlane.f32.xlu0 %v1468
      %v1470 = vpop.xlane.xlu0 %1469
      %v1471 = vadd.f32 %v1283, %v1284
      %1472 = vadd.xlane.f32.xlu0 %v1471
      %v1473 = vpop.xlane.xlu0 %1472
      %v1474 = vadd.f32 %v1285, %v1286
      %1475 = vadd.xlane.f32.xlu0 %v1474
      %v1476 = vpop.xlane.xlu0 %1475
      %v1477 = vadd.f32 %v1287, %v1288
      %1478 = vadd.xlane.f32.xlu0 %v1477
      %v1479 = vpop.xlane.xlu0 %1478
      %v1480 = vadd.f32 %v1289, %v1290
      %1481 = vadd.xlane.f32.xlu0 %v1480
      %v1482 = vpop.xlane.xlu0 %1481
      %v1483 = vlaneseq
      %v1484 = vshrl.u32 %v1483, 7
      %v1485 = vsub.s32 3, %v1484
      %v1486 = vrot.slane %v374, %v1485
      %v1487 = vadd.f32 %v1293, %v1486
      %v1488 = vadd.f32 %v1296, %v1486
      %v1489 = vadd.f32 %v1299, %v1486
      %v1490 = vadd.f32 %v1302, %v1486
      %v1491 = vadd.f32 %v1305, %v1486
      %v1492 = vadd.f32 %v1308, %v1486
      %v1493 = vadd.f32 %v1311, %v1486
      %v1494 = vadd.f32 %v1314, %v1486
      %v1495 = vadd.f32 %v1317, %v1486
      %v1496 = vadd.f32 %v1320, %v1486
      %v1497 = vadd.f32 %v1323, %v1486
      %v1498 = vadd.f32 %v1326, %v1486
      %v1499 = vadd.f32 %v1329, %v1486
      %v1500 = vadd.f32 %v1332, %v1486
      %v1501 = vadd.f32 %v1335, %v1486
      %v1502 = vadd.f32 %v1338, %v1486
      %v1503 = vadd.f32 %v1341, %v1486
      %v1504 = vadd.f32 %v1344, %v1486
      %v1505 = vadd.f32 %v1347, %v1486
      %v1506 = vadd.f32 %v1350, %v1486
      %v1507 = vadd.f32 %v1353, %v1486
      %v1508 = vadd.f32 %v1356, %v1486
      %v1509 = vadd.f32 %v1359, %v1486
      %v1510 = vadd.f32 %v1362, %v1486
      %v1511 = vadd.f32 %v1365, %v1486
      %v1512 = vadd.f32 %v1368, %v1486
      %v1513 = vadd.f32 %v1371, %v1486
      %v1514 = vadd.f32 %v1374, %v1486
      %v1515 = vadd.f32 %v1377, %v1486
      %v1516 = vadd.f32 %v1380, %v1486
      %v1517 = vadd.f32 %v1383, %v1486
      %v1518 = vadd.f32 %v1386, %v1486
      %v1519 = vadd.f32 %v1389, %v1486
      %v1520 = vadd.f32 %v1392, %v1486
      %v1521 = vadd.f32 %v1395, %v1486
      %v1522 = vadd.f32 %v1398, %v1486
      %v1523 = vadd.f32 %v1401, %v1486
      %v1524 = vadd.f32 %v1404, %v1486
      %v1525 = vadd.f32 %v1407, %v1486
      %v1526 = vadd.f32 %v1410, %v1486
      %v1527 = vadd.f32 %v1413, %v1486
      %v1528 = vadd.f32 %v1416, %v1486
      %v1529 = vadd.f32 %v1419, %v1486
      %v1530 = vadd.f32 %v1422, %v1486
      %v1531 = vadd.f32 %v1425, %v1486
      %v1532 = vadd.f32 %v1428, %v1486
      %v1533 = vadd.f32 %v1431, %v1486
      %v1534 = vadd.f32 %v1434, %v1486
      %v1535 = vadd.f32 %v1437, %v1486
      %v1536 = vadd.f32 %v1440, %v1486
      %v1537 = vadd.f32 %v1443, %v1486
      %v1538 = vadd.f32 %v1446, %v1486
      %v1539 = vadd.f32 %v1449, %v1486
      %v1540 = vadd.f32 %v1452, %v1486
      %v1541 = vadd.f32 %v1455, %v1486
      %v1542 = vadd.f32 %v1458, %v1486
      %v1543 = vadd.f32 %v1461, %v1486
      %v1544 = vadd.f32 %v1464, %v1486
      %v1545 = vadd.f32 %v1467, %v1486
      %v1546 = vadd.f32 %v1470, %v1486
      %v1547 = vadd.f32 %v1473, %v1486
      %v1548 = vadd.f32 %v1476, %v1486
      %v1549 = vadd.f32 %v1479, %v1486
      %v1550 = vadd.f32 %v1482, %v1486
      %v1551 = vmax.f32 %v1487, 0.0
      %v1552 = vmax.f32 %v1488, 0.0
      %v1553 = vmax.f32 %v1489, 0.0
      %v1554 = vmax.f32 %v1490, 0.0
      %v1555 = vmax.f32 %v1491, 0.0
      %v1556 = vmax.f32 %v1492, 0.0
      %v1557 = vmax.f32 %v1493, 0.0
      %v1558 = vmax.f32 %v1494, 0.0
      %v1559 = vmax.f32 %v1495, 0.0
      %v1560 = vmax.f32 %v1496, 0.0
      %v1561 = vmax.f32 %v1497, 0.0
      %v1562 = vmax.f32 %v1498, 0.0
      %v1563 = vmax.f32 %v1499, 0.0
      %v1564 = vmax.f32 %v1500, 0.0
      %v1565 = vmax.f32 %v1501, 0.0
      %v1566 = vmax.f32 %v1502, 0.0
      %v1567 = vmax.f32 %v1503, 0.0
      %v1568 = vmax.f32 %v1504, 0.0
      %v1569 = vmax.f32 %v1505, 0.0
      %v1570 = vmax.f32 %v1506, 0.0
      %v1571 = vmax.f32 %v1507, 0.0
      %v1572 = vmax.f32 %v1508, 0.0
      %v1573 = vmax.f32 %v1509, 0.0
      %v1574 = vmax.f32 %v1510, 0.0
      %v1575 = vmax.f32 %v1511, 0.0
      %v1576 = vmax.f32 %v1512, 0.0
      %v1577 = vmax.f32 %v1513, 0.0
      %v1578 = vmax.f32 %v1514, 0.0
      %v1579 = vmax.f32 %v1515, 0.0
      %v1580 = vmax.f32 %v1516, 0.0
      %v1581 = vmax.f32 %v1517, 0.0
      %v1582 = vmax.f32 %v1518, 0.0
      %v1583 = vmax.f32 %v1519, 0.0
      %v1584 = vmax.f32 %v1520, 0.0
      %v1585 = vmax.f32 %v1521, 0.0
      %v1586 = vmax.f32 %v1522, 0.0
      %v1587 = vmax.f32 %v1523, 0.0
      %v1588 = vmax.f32 %v1524, 0.0
      %v1589 = vmax.f32 %v1525, 0.0
      %v1590 = vmax.f32 %v1526, 0.0
      %v1591 = vmax.f32 %v1527, 0.0
      %v1592 = vmax.f32 %v1528, 0.0
      %v1593 = vmax.f32 %v1529, 0.0
      %v1594 = vmax.f32 %v1530, 0.0
      %v1595 = vmax.f32 %v1531, 0.0
      %v1596 = vmax.f32 %v1532, 0.0
      %v1597 = vmax.f32 %v1533, 0.0
      %v1598 = vmax.f32 %v1534, 0.0
      %v1599 = vmax.f32 %v1535, 0.0
      %v1600 = vmax.f32 %v1536, 0.0
      %v1601 = vmax.f32 %v1537, 0.0
      %v1602 = vmax.f32 %v1538, 0.0
      %v1603 = vmax.f32 %v1539, 0.0
      %v1604 = vmax.f32 %v1540, 0.0
      %v1605 = vmax.f32 %v1541, 0.0
      %v1606 = vmax.f32 %v1542, 0.0
      %v1607 = vmax.f32 %v1543, 0.0
      %v1608 = vmax.f32 %v1544, 0.0
      %v1609 = vmax.f32 %v1545, 0.0
      %v1610 = vmax.f32 %v1546, 0.0
      %v1611 = vmax.f32 %v1547, 0.0
      %v1612 = vmax.f32 %v1548, 0.0
      %v1613 = vmax.f32 %v1549, 0.0
      %v1614 = vmax.f32 %v1550, 0.0
      %v1615 = vpack.c.bf16 %v1029, %v1027
      %v1616 = vpack.c.bf16 %v1030, %v1028
      %v1617 = vpack.c.bf16 %v1033, %v1031
      %v1618 = vpack.c.bf16 %v1034, %v1032
      %v1619 = vpack.c.bf16 %v1037, %v1035
      %v1620 = vpack.c.bf16 %v1038, %v1036
      %v1621 = vpack.c.bf16 %v1041, %v1039
      %v1622 = vpack.c.bf16 %v1042, %v1040
      %v1623 = vpack.c.bf16 %v1045, %v1043
      %v1624 = vpack.c.bf16 %v1046, %v1044
      %v1625 = vpack.c.bf16 %v1049, %v1047
      %v1626 = vpack.c.bf16 %v1050, %v1048
      %v1627 = vpack.c.bf16 %v1053, %v1051
      %v1628 = vpack.c.bf16 %v1054, %v1052
      %v1629 = vpack.c.bf16 %v1057, %v1055
      %v1630 = vpack.c.bf16 %v1058, %v1056
      %v1631 = vpack.c.bf16 %v1061, %v1059
      %v1632 = vpack.c.bf16 %v1062, %v1060
      %v1633 = vpack.c.bf16 %v1065, %v1063
      %v1634 = vpack.c.bf16 %v1066, %v1064
      %v1635 = vpack.c.bf16 %v1069, %v1067
      %v1636 = vpack.c.bf16 %v1070, %v1068
      %v1637 = vpack.c.bf16 %v1073, %v1071
      %v1638 = vpack.c.bf16 %v1074, %v1072
      %v1639 = vpack.c.bf16 %v1077, %v1075
      %v1640 = vpack.c.bf16 %v1078, %v1076
      %v1641 = vpack.c.bf16 %v1081, %v1079
      %v1642 = vpack.c.bf16 %v1082, %v1080
      %v1643 = vpack.c.bf16 %v1085, %v1083
      %v1644 = vpack.c.bf16 %v1086, %v1084
      %v1645 = vpack.c.bf16 %v1089, %v1087
      %v1646 = vpack.c.bf16 %v1090, %v1088
      %v1647 = vpack.c.bf16 %v1093, %v1091
      %v1648 = vpack.c.bf16 %v1094, %v1092
      %v1649 = vpack.c.bf16 %v1097, %v1095
      %v1650 = vpack.c.bf16 %v1098, %v1096
      %v1651 = vpack.c.bf16 %v1101, %v1099
      %v1652 = vpack.c.bf16 %v1102, %v1100
      %v1653 = vpack.c.bf16 %v1105, %v1103
      %v1654 = vpack.c.bf16 %v1106, %v1104
      %v1655 = vpack.c.bf16 %v1109, %v1107
      %v1656 = vpack.c.bf16 %v1110, %v1108
      %v1657 = vpack.c.bf16 %v1113, %v1111
      %v1658 = vpack.c.bf16 %v1114, %v1112
      %v1659 = vpack.c.bf16 %v1117, %v1115
      %v1660 = vpack.c.bf16 %v1118, %v1116
      %v1661 = vpack.c.bf16 %v1121, %v1119
      %v1662 = vpack.c.bf16 %v1122, %v1120
      %v1663 = vpack.c.bf16 %v1125, %v1123
      %v1664 = vpack.c.bf16 %v1126, %v1124
      %v1665 = vpack.c.bf16 %v1129, %v1127
      %v1666 = vpack.c.bf16 %v1130, %v1128
      %v1667 = vpack.c.bf16 %v1133, %v1131
      %v1668 = vpack.c.bf16 %v1134, %v1132
      %v1669 = vpack.c.bf16 %v1137, %v1135
      %v1670 = vpack.c.bf16 %v1138, %v1136
      %v1671 = vpack.c.bf16 %v1141, %v1139
      %v1672 = vpack.c.bf16 %v1142, %v1140
      %v1673 = vpack.c.bf16 %v1145, %v1143
      %v1674 = vpack.c.bf16 %v1146, %v1144
      %v1675 = vpack.c.bf16 %v1149, %v1147
      %v1676 = vpack.c.bf16 %v1150, %v1148
      %v1677 = vpack.c.bf16 %v1153, %v1151
      %v1678 = vpack.c.bf16 %v1154, %v1152
      %v1679 = vld [vmem:[%s3] sm:$0xff]
      %v1680 = vld [vmem:[%s3 + $0x8] sm:$0xff]
      %v1681 = vld [vmem:[%s3 + $0x10] sm:$0xff]
      %v1682 = vld [vmem:[%s3 + $0x18] sm:$0xff]
      %v1683 = vld [vmem:[%s3 + $0x20] sm:$0xff]
      %v1684 = vld [vmem:[%s3 + $0x28] sm:$0xff]
      %v1685 = vld [vmem:[%s3 + $0x30] sm:$0xff]
      %v1686 = vld [vmem:[%s3 + $0x38] sm:$0xff]
      %v1687 = vld [vmem:[%s3 + $0x40] sm:$0xff]
      %v1688 = vld [vmem:[%s3 + $0x48] sm:$0xff]
      %v1689 = vld [vmem:[%s3 + $0x50] sm:$0xff]
      %v1690 = vld [vmem:[%s3 + $0x58] sm:$0xff]
      %v1691 = vld [vmem:[%s3 + $0x60] sm:$0xff]
      %v1692 = vld [vmem:[%s3 + $0x68] sm:$0xff]
      %v1693 = vld [vmem:[%s3 + $0x70] sm:$0xff]
      %v1694 = vld [vmem:[%s3 + $0x78] sm:$0xff]
      %v1695 = vld [vmem:[%s3 + $0x80] sm:$0xff]
      %v1696 = vld [vmem:[%s3 + $0x88] sm:$0xff]
      %v1697 = vld [vmem:[%s3 + $0x90] sm:$0xff]
      %v1698 = vld [vmem:[%s3 + $0x98] sm:$0xff]
      %v1699 = vld [vmem:[%s3 + $0xa0] sm:$0xff]
      %v1700 = vld [vmem:[%s3 + $0xa8] sm:$0xff]
      %v1701 = vld [vmem:[%s3 + $0xb0] sm:$0xff]
      %v1702 = vld [vmem:[%s3 + $0xb8] sm:$0xff]
      %v1703 = vld [vmem:[%s3 + $0xc0] sm:$0xff]
      %v1704 = vld [vmem:[%s3 + $0xc8] sm:$0xff]
      %v1705 = vld [vmem:[%s3 + $0xd0] sm:$0xff]
      %v1706 = vld [vmem:[%s3 + $0xd8] sm:$0xff]
      %v1707 = vld [vmem:[%s3 + $0xe0] sm:$0xff]
      %v1708 = vld [vmem:[%s3 + $0xe8] sm:$0xff]
      %v1709 = vld [vmem:[%s3 + $0xf0] sm:$0xff]
      %v1710 = vld [vmem:[%s3 + $0xf8] sm:$0xff]
      %v1711 = vlaneseq
      %v1712 = vshrl.u32 %v1711, 7
      %v1713 = vsub.s32 1, %v1712
      %v1714 = vrot.slane %v374, %v1713
      %v1715 = vlaneseq
      %v1716 = vshrl.u32 %v1715, 7
      %v1717 = vsub.s32 1, %v1716
      %v1718 = vrot.slane %v375, %v1717
      %v1751 = vunpack.c.l.b16 %v1679
      %v1752 = vunpack.c.h.b16 %v1679
      %v1753 = vunpack.c.l.b16 %v1680
      %v1754 = vunpack.c.h.b16 %v1680
      %v1755 = vunpack.c.l.b16 %v1681
      %v1756 = vunpack.c.h.b16 %v1681
      %v1757 = vunpack.c.l.b16 %v1682
      %v1758 = vunpack.c.h.b16 %v1682
      %v1759 = vunpack.c.l.b16 %v1683
      %v1760 = vunpack.c.h.b16 %v1683
      %v1761 = vunpack.c.l.b16 %v1684
      %v1762 = vunpack.c.h.b16 %v1684
      %v1763 = vunpack.c.l.b16 %v1685
      %v1764 = vunpack.c.h.b16 %v1685
      %v1765 = vunpack.c.l.b16 %v1686
      %v1766 = vunpack.c.h.b16 %v1686
      %v1767 = vunpack.c.l.b16 %v1687
      %v1768 = vunpack.c.h.b16 %v1687
      %v1769 = vunpack.c.l.b16 %v1688
      %v1770 = vunpack.c.h.b16 %v1688
      %v1771 = vunpack.c.l.b16 %v1689
      %v1772 = vunpack.c.h.b16 %v1689
      %v1773 = vunpack.c.l.b16 %v1690
      %v1774 = vunpack.c.h.b16 %v1690
      %v1775 = vunpack.c.l.b16 %v1691
      %v1776 = vunpack.c.h.b16 %v1691
      %v1777 = vunpack.c.l.b16 %v1692
      %v1778 = vunpack.c.h.b16 %v1692
      %v1779 = vunpack.c.l.b16 %v1693
      %v1780 = vunpack.c.h.b16 %v1693
      %v1781 = vunpack.c.l.b16 %v1694
      %v1782 = vunpack.c.h.b16 %v1694
      %v1783 = vunpack.c.l.b16 %v1695
      %v1784 = vunpack.c.h.b16 %v1695
      %v1785 = vunpack.c.l.b16 %v1696
      %v1786 = vunpack.c.h.b16 %v1696
      %v1787 = vunpack.c.l.b16 %v1697
      %v1788 = vunpack.c.h.b16 %v1697
      %v1789 = vunpack.c.l.b16 %v1698
      %v1790 = vunpack.c.h.b16 %v1698
      %v1791 = vunpack.c.l.b16 %v1699
      %v1792 = vunpack.c.h.b16 %v1699
      %v1793 = vunpack.c.l.b16 %v1700
      %v1794 = vunpack.c.h.b16 %v1700
      %v1795 = vunpack.c.l.b16 %v1701
      %v1796 = vunpack.c.h.b16 %v1701
      %v1797 = vunpack.c.l.b16 %v1702
      %v1798 = vunpack.c.h.b16 %v1702
      %v1799 = vunpack.c.l.b16 %v1703
      %v1800 = vunpack.c.h.b16 %v1703
      %v1801 = vunpack.c.l.b16 %v1704
      %v1802 = vunpack.c.h.b16 %v1704
      %v1803 = vunpack.c.l.b16 %v1705
      %v1804 = vunpack.c.h.b16 %v1705
      %v1805 = vunpack.c.l.b16 %v1706
      %v1806 = vunpack.c.h.b16 %v1706
      %v1807 = vunpack.c.l.b16 %v1707
      %v1808 = vunpack.c.h.b16 %v1707
      %v1809 = vunpack.c.l.b16 %v1708
      %v1810 = vunpack.c.h.b16 %v1708
      %v1811 = vunpack.c.l.b16 %v1709
      %v1812 = vunpack.c.h.b16 %v1709
      %v1813 = vunpack.c.l.b16 %v1710
      %v1814 = vunpack.c.h.b16 %v1710
      %v1815 = vpack.c.b16 %v1753, %v1751
      %v1816 = vpack.c.b16 %v1754, %v1752
      %v1817 = vpack.c.b16 %v1757, %v1755
      %v1818 = vpack.c.b16 %v1758, %v1756
      %v1819 = vpack.c.b16 %v1761, %v1759
      %v1820 = vpack.c.b16 %v1762, %v1760
      %v1821 = vpack.c.b16 %v1765, %v1763
      %v1822 = vpack.c.b16 %v1766, %v1764
      %v1823 = vpack.c.b16 %v1769, %v1767
      %v1824 = vpack.c.b16 %v1770, %v1768
      %v1825 = vpack.c.b16 %v1773, %v1771
      %v1826 = vpack.c.b16 %v1774, %v1772
      %v1827 = vpack.c.b16 %v1777, %v1775
      %v1828 = vpack.c.b16 %v1778, %v1776
      %v1829 = vpack.c.b16 %v1781, %v1779
      %v1830 = vpack.c.b16 %v1782, %v1780
      %v1831 = vpack.c.b16 %v1785, %v1783
      %v1832 = vpack.c.b16 %v1786, %v1784
      %v1833 = vpack.c.b16 %v1789, %v1787
      %v1834 = vpack.c.b16 %v1790, %v1788
      %v1835 = vpack.c.b16 %v1793, %v1791
      %v1836 = vpack.c.b16 %v1794, %v1792
      %v1837 = vpack.c.b16 %v1797, %v1795
      %v1838 = vpack.c.b16 %v1798, %v1796
      %v1839 = vpack.c.b16 %v1801, %v1799
      %v1840 = vpack.c.b16 %v1802, %v1800
      %v1841 = vpack.c.b16 %v1805, %v1803
      %v1842 = vpack.c.b16 %v1806, %v1804
      %v1843 = vpack.c.b16 %v1809, %v1807
      %v1844 = vpack.c.b16 %v1810, %v1808
      %v1845 = vpack.c.b16 %v1813, %v1811
      %v1846 = vpack.c.b16 %v1814, %v1812
      %1879 = vmatprep.subr.bf16.mxu0 %v1816
      %1880 = vmatpush1.bf16.msra.mxu0 %v1815
      %1881 = vmatprep.subr.bf16.mxu0 %v1818
      %1882 = vmatpush1.bf16.msra.mxu0 %v1817
      %1883 = vmatprep.subr.bf16.mxu0 %v1820
      %1884 = vmatpush1.bf16.msra.mxu0 %v1819
      %1885 = vmatprep.subr.bf16.mxu0 %v1822
      %1886 = vmatpush1.bf16.msra.mxu0 %v1821
      %1887 = vmatprep.subr.bf16.mxu0 %v1824
      %1888 = vmatpush1.bf16.msra.mxu0 %v1823
      %1889 = vmatprep.subr.bf16.mxu0 %v1826
      %1890 = vmatpush1.bf16.msra.mxu0 %v1825
      %1891 = vmatprep.subr.bf16.mxu0 %v1828
      %1892 = vmatpush1.bf16.msra.mxu0 %v1827
      %1893 = vmatprep.subr.bf16.mxu0 %v1830
      %1894 = vmatpush1.bf16.msra.mxu0 %v1829
      %1895 = vmatprep.subr.bf16.mxu0 %v1832
      %1896 = vmatpush1.bf16.msra.mxu0 %v1831
      %1897 = vmatprep.subr.bf16.mxu0 %v1834
      %1898 = vmatpush1.bf16.msra.mxu0 %v1833
      %1899 = vmatprep.subr.bf16.mxu0 %v1836
      %1900 = vmatpush1.bf16.msra.mxu0 %v1835
      %1901 = vmatprep.subr.bf16.mxu0 %v1838
      %1902 = vmatpush1.bf16.msra.mxu0 %v1837
      %1903 = vmatprep.subr.bf16.mxu0 %v1840
      %1904 = vmatpush1.bf16.msra.mxu0 %v1839
      %1905 = vmatprep.subr.bf16.mxu0 %v1842
      %1906 = vmatpush1.bf16.msra.mxu0 %v1841
      %1907 = vmatprep.subr.bf16.mxu0 %v1844
      %1908 = vmatpush1.bf16.msra.mxu0 %v1843
      %1909 = vmatprep.subr.bf16.mxu0 %v1846
      %1910 = vmatpush1.bf16.msra.mxu0 %v1845
      %1911 = vmatprep.mubr.bf16.mxu0 %v1616
      %1912 = vmatmul.mubr.bf16.gmra.mrb[0].mxu0 %v1615
      %v1913 = vpop.f32.mrb[0].mxu0
      %v1914 = vadd.f32 %v1714, %v1913
      %v1915 = vpop.f32.mrb[0].mxu0
      %v1916 = vadd.f32 %v1718, %v1915
      %v1917 = vpop.f32.mrb[0].mxu0
      %v1918 = vadd.f32 %v1714, %v1917
      %v1919 = vpop.f32.mrb[0].mxu0
      %v1920 = vadd.f32 %v1718, %v1919
      %1921 = vmatprep.mubr.bf16.mxu0 %v1618
      %1922 = vmatmul.mubr.bf16.gmra.mrb[0].mxu0 %v1617
      %v1923 = vpop.f32.mrb[0].mxu0
      %v1924 = vadd.f32 %v1714, %v1923
      %v1925 = vpop.f32.mrb[0].mxu0
      %v1926 = vadd.f32 %v1718, %v1925
      %v1927 = vpop.f32.mrb[0].mxu0
      %v1928 = vadd.f32 %v1714, %v1927
      %v1929 = vpop.f32.mrb[0].mxu0
      %v1930 = vadd.f32 %v1718, %v1929
      %1931 = vmatprep.mubr.bf16.mxu0 %v1620
      %1932 = vmatmul.mubr.bf16.gmra.mrb[0].mxu0 %v1619
      %v1933 = vpop.f32.mrb[0].mxu0
      %v1934 = vadd.f32 %v1714, %v1933
      %v1935 = vpop.f32.mrb[0].mxu0
      %v1936 = vadd.f32 %v1718, %v1935
      %v1937 = vpop.f32.mrb[0].mxu0
      %v1938 = vadd.f32 %v1714, %v1937
      %v1939 = vpop.f32.mrb[0].mxu0
      %v1940 = vadd.f32 %v1718, %v1939
      %1941 = vmatprep.mubr.bf16.mxu0 %v1622
      %1942 = vmatmul.mubr.bf16.gmra.mrb[0].mxu0 %v1621
      %v1943 = vpop.f32.mrb[0].mxu0
      %v1944 = vadd.f32 %v1714, %v1943
      %v1945 = vpop.f32.mrb[0].mxu0
      %v1946 = vadd.f32 %v1718, %v1945
      %v1947 = vpop.f32.mrb[0].mxu0
      %v1948 = vadd.f32 %v1714, %v1947
      %v1949 = vpop.f32.mrb[0].mxu0
      %v1950 = vadd.f32 %v1718, %v1949
      %1951 = vmatprep.mubr.bf16.mxu0 %v1624
      %1952 = vmatmul.mubr.bf16.gmra.mrb[0].mxu0 %v1623
      %v1953 = vpop.f32.mrb[0].mxu0
      %v1954 = vadd.f32 %v1714, %v1953
      %v1955 = vpop.f32.mrb[0].mxu0
      %v1956 = vadd.f32 %v1718, %v1955
      %v1957 = vpop.f32.mrb[0].mxu0
      %v1958 = vadd.f32 %v1714, %v1957
      %v1959 = vpop.f32.mrb[0].mxu0
      %v1960 = vadd.f32 %v1718, %v1959
      %1961 = vmatprep.mubr.bf16.mxu0 %v1626
      %1962 = vmatmul.mubr.bf16.gmra.mrb[0].mxu0 %v1625
      %v1963 = vpop.f32.mrb[0].mxu0
      %v1964 = vadd.f32 %v1714, %v1963
      %v1965 = vpop.f32.mrb[0].mxu0
      %v1966 = vadd.f32 %v1718, %v1965
      %v1967 = vpop.f32.mrb[0].mxu0
      %v1968 = vadd.f32 %v1714, %v1967
      %v1969 = vpop.f32.mrb[0].mxu0
      %v1970 = vadd.f32 %v1718, %v1969
      %1971 = vmatprep.mubr.bf16.mxu0 %v1628
      %1972 = vmatmul.mubr.bf16.gmra.mrb[0].mxu0 %v1627
      %v1973 = vpop.f32.mrb[0].mxu0
      %v1974 = vadd.f32 %v1714, %v1973
      %v1975 = vpop.f32.mrb[0].mxu0
      %v1976 = vadd.f32 %v1718, %v1975
      %v1977 = vpop.f32.mrb[0].mxu0
      %v1978 = vadd.f32 %v1714, %v1977
      %v1979 = vpop.f32.mrb[0].mxu0
      %v1980 = vadd.f32 %v1718, %v1979
      %1981 = vmatprep.mubr.bf16.mxu0 %v1630
      %1982 = vmatmul.mubr.bf16.gmra.mrb[0].mxu0 %v1629
      %v1983 = vpop.f32.mrb[0].mxu0
      %v1984 = vadd.f32 %v1714, %v1983
      %v1985 = vpop.f32.mrb[0].mxu0
      %v1986 = vadd.f32 %v1718, %v1985
      %v1987 = vpop.f32.mrb[0].mxu0
      %v1988 = vadd.f32 %v1714, %v1987
      %v1989 = vpop.f32.mrb[0].mxu0
      %v1990 = vadd.f32 %v1718, %v1989
      %1991 = vmatprep.mubr.bf16.mxu0 %v1632
      %1992 = vmatmul.mubr.bf16.gmra.mrb[0].mxu0 %v1631
      %v1993 = vpop.f32.mrb[0].mxu0
      %v1994 = vadd.f32 %v1714, %v1993
      %v1995 = vpop.f32.mrb[0].mxu0
      %v1996 = vadd.f32 %v1718, %v1995
      %v1997 = vpop.f32.mrb[0].mxu0
      %v1998 = vadd.f32 %v1714, %v1997
      %v1999 = vpop.f32.mrb[0].mxu0
      %v2000 = vadd.f32 %v1718, %v1999
      %2001 = vmatprep.mubr.bf16.mxu0 %v1634
      %2002 = vmatmul.mubr.bf16.gmra.mrb[0].mxu0 %v1633
      %v2003 = vpop.f32.mrb[0].mxu0
      %v2004 = vadd.f32 %v1714, %v2003
      %v2005 = vpop.f32.mrb[0].mxu0
      %v2006 = vadd.f32 %v1718, %v2005
      %v2007 = vpop.f32.mrb[0].mxu0
      %v2008 = vadd.f32 %v1714, %v2007
      %v2009 = vpop.f32.mrb[0].mxu0
      %v2010 = vadd.f32 %v1718, %v2009
      %2011 = vmatprep.mubr.bf16.mxu0 %v1636
      %2012 = vmatmul.mubr.bf16.gmra.mrb[0].mxu0 %v1635
      %v2013 = vpop.f32.mrb[0].mxu0
      %v2014 = vadd.f32 %v1714, %v2013
      %v2015 = vpop.f32.mrb[0].mxu0
      %v2016 = vadd.f32 %v1718, %v2015
      %v2017 = vpop.f32.mrb[0].mxu0
      %v2018 = vadd.f32 %v1714, %v2017
      %v2019 = vpop.f32.mrb[0].mxu0
      %v2020 = vadd.f32 %v1718, %v2019
      %2021 = vmatprep.mubr.bf16.mxu0 %v1638
      %2022 = vmatmul.mubr.bf16.gmra.mrb[0].mxu0 %v1637
      %v2023 = vpop.f32.mrb[0].mxu0
      %v2024 = vadd.f32 %v1714, %v2023
      %v2025 = vpop.f32.mrb[0].mxu0
      %v2026 = vadd.f32 %v1718, %v2025
      %v2027 = vpop.f32.mrb[0].mxu0
      %v2028 = vadd.f32 %v1714, %v2027
      %v2029 = vpop.f32.mrb[0].mxu0
      %v2030 = vadd.f32 %v1718, %v2029
      %2031 = vmatprep.mubr.bf16.mxu0 %v1640
      %2032 = vmatmul.mubr.bf16.gmra.mrb[0].mxu0 %v1639
      %v2033 = vpop.f32.mrb[0].mxu0
      %v2034 = vadd.f32 %v1714, %v2033
      %v2035 = vpop.f32.mrb[0].mxu0
      %v2036 = vadd.f32 %v1718, %v2035
      %v2037 = vpop.f32.mrb[0].mxu0
      %v2038 = vadd.f32 %v1714, %v2037
      %v2039 = vpop.f32.mrb[0].mxu0
      %v2040 = vadd.f32 %v1718, %v2039
      %2041 = vmatprep.mubr.bf16.mxu0 %v1642
      %2042 = vmatmul.mubr.bf16.gmra.mrb[0].mxu0 %v1641
      %v2043 = vpop.f32.mrb[0].mxu0
      %v2044 = vadd.f32 %v1714, %v2043
      %v2045 = vpop.f32.mrb[0].mxu0
      %v2046 = vadd.f32 %v1718, %v2045
      %v2047 = vpop.f32.mrb[0].mxu0
      %v2048 = vadd.f32 %v1714, %v2047
      %v2049 = vpop.f32.mrb[0].mxu0
      %v2050 = vadd.f32 %v1718, %v2049
      %2051 = vmatprep.mubr.bf16.mxu0 %v1644
      %2052 = vmatmul.mubr.bf16.gmra.mrb[0].mxu0 %v1643
      %v2053 = vpop.f32.mrb[0].mxu0
      %v2054 = vadd.f32 %v1714, %v2053
      %v2055 = vpop.f32.mrb[0].mxu0
      %v2056 = vadd.f32 %v1718, %v2055
      %v2057 = vpop.f32.mrb[0].mxu0
      %v2058 = vadd.f32 %v1714, %v2057
      %v2059 = vpop.f32.mrb[0].mxu0
      %v2060 = vadd.f32 %v1718, %v2059
      %2061 = vmatprep.mubr.bf16.mxu0 %v1646
      %2062 = vmatmul.mubr.bf16.gmra.mrb[0].mxu0 %v1645
      %v2063 = vpop.f32.mrb[0].mxu0
      %v2064 = vadd.f32 %v1714, %v2063
      %v2065 = vpop.f32.mrb[0].mxu0
      %v2066 = vadd.f32 %v1718, %v2065
      %v2067 = vpop.f32.mrb[0].mxu0
      %v2068 = vadd.f32 %v1714, %v2067
      %v2069 = vpop.f32.mrb[0].mxu0
      %v2070 = vadd.f32 %v1718, %v2069
      %2071 = vmatprep.mubr.bf16.mxu0 %v1648
      %2072 = vmatmul.mubr.bf16.gmra.mrb[0].mxu0 %v1647
      %v2073 = vpop.f32.mrb[0].mxu0
      %v2074 = vadd.f32 %v1714, %v2073
      %v2075 = vpop.f32.mrb[0].mxu0
      %v2076 = vadd.f32 %v1718, %v2075
      %v2077 = vpop.f32.mrb[0].mxu0
      %v2078 = vadd.f32 %v1714, %v2077
      %v2079 = vpop.f32.mrb[0].mxu0
      %v2080 = vadd.f32 %v1718, %v2079
      %2081 = vmatprep.mubr.bf16.mxu0 %v1650
      %2082 = vmatmul.mubr.bf16.gmra.mrb[0].mxu0 %v1649
      %v2083 = vpop.f32.mrb[0].mxu0
      %v2084 = vadd.f32 %v1714, %v2083
      %v2085 = vpop.f32.mrb[0].mxu0
      %v2086 = vadd.f32 %v1718, %v2085
      %v2087 = vpop.f32.mrb[0].mxu0
      %v2088 = vadd.f32 %v1714, %v2087
      %v2089 = vpop.f32.mrb[0].mxu0
      %v2090 = vadd.f32 %v1718, %v2089
      %2091 = vmatprep.mubr.bf16.mxu0 %v1652
      %2092 = vmatmul.mubr.bf16.gmra.mrb[0].mxu0 %v1651
      %v2093 = vpop.f32.mrb[0].mxu0
      %v2094 = vadd.f32 %v1714, %v2093
      %v2095 = vpop.f32.mrb[0].mxu0
      %v2096 = vadd.f32 %v1718, %v2095
      %v2097 = vpop.f32.mrb[0].mxu0
      %v2098 = vadd.f32 %v1714, %v2097
      %v2099 = vpop.f32.mrb[0].mxu0
      %v2100 = vadd.f32 %v1718, %v2099
      %2101 = vmatprep.mubr.bf16.mxu0 %v1654
      %2102 = vmatmul.mubr.bf16.gmra.mrb[0].mxu0 %v1653
      %v2103 = vpop.f32.mrb[0].mxu0
      %v2104 = vadd.f32 %v1714, %v2103
      %v2105 = vpop.f32.mrb[0].mxu0
      %v2106 = vadd.f32 %v1718, %v2105
      %v2107 = vpop.f32.mrb[0].mxu0
      %v2108 = vadd.f32 %v1714, %v2107
      %v2109 = vpop.f32.mrb[0].mxu0
      %v2110 = vadd.f32 %v1718, %v2109
      %2111 = vmatprep.mubr.bf16.mxu0 %v1656
      %2112 = vmatmul.mubr.bf16.gmra.mrb[0].mxu0 %v1655
      %v2113 = vpop.f32.mrb[0].mxu0
      %v2114 = vadd.f32 %v1714, %v2113
      %v2115 = vpop.f32.mrb[0].mxu0
      %v2116 = vadd.f32 %v1718, %v2115
      %v2117 = vpop.f32.mrb[0].mxu0
      %v2118 = vadd.f32 %v1714, %v2117
      %v2119 = vpop.f32.mrb[0].mxu0
      %v2120 = vadd.f32 %v1718, %v2119
      %2121 = vmatprep.mubr.bf16.mxu0 %v1658
      %2122 = vmatmul.mubr.bf16.gmra.mrb[0].mxu0 %v1657
      %v2123 = vpop.f32.mrb[0].mxu0
      %v2124 = vadd.f32 %v1714, %v2123
      %v2125 = vpop.f32.mrb[0].mxu0
      %v2126 = vadd.f32 %v1718, %v2125
      %v2127 = vpop.f32.mrb[0].mxu0
      %v2128 = vadd.f32 %v1714, %v2127
      %v2129 = vpop.f32.mrb[0].mxu0
      %v2130 = vadd.f32 %v1718, %v2129
      %2131 = vmatprep.mubr.bf16.mxu0 %v1660
      %2132 = vmatmul.mubr.bf16.gmra.mrb[0].mxu0 %v1659
      %v2133 = vpop.f32.mrb[0].mxu0
      %v2134 = vadd.f32 %v1714, %v2133
      %v2135 = vpop.f32.mrb[0].mxu0
      %v2136 = vadd.f32 %v1718, %v2135
      %v2137 = vpop.f32.mrb[0].mxu0
      %v2138 = vadd.f32 %v1714, %v2137
      %v2139 = vpop.f32.mrb[0].mxu0
      %v2140 = vadd.f32 %v1718, %v2139
      %2141 = vmatprep.mubr.bf16.mxu0 %v1662
      %2142 = vmatmul.mubr.bf16.gmra.mrb[0].mxu0 %v1661
      %v2143 = vpop.f32.mrb[0].mxu0
      %v2144 = vadd.f32 %v1714, %v2143
      %v2145 = vpop.f32.mrb[0].mxu0
      %v2146 = vadd.f32 %v1718, %v2145
      %v2147 = vpop.f32.mrb[0].mxu0
      %v2148 = vadd.f32 %v1714, %v2147
      %v2149 = vpop.f32.mrb[0].mxu0
      %v2150 = vadd.f32 %v1718, %v2149
      %2151 = vmatprep.mubr.bf16.mxu0 %v1664
      %2152 = vmatmul.mubr.bf16.gmra.mrb[0].mxu0 %v1663
      %v2153 = vpop.f32.mrb[0].mxu0
      %v2154 = vadd.f32 %v1714, %v2153
      %v2155 = vpop.f32.mrb[0].mxu0
      %v2156 = vadd.f32 %v1718, %v2155
      %v2157 = vpop.f32.mrb[0].mxu0
      %v2158 = vadd.f32 %v1714, %v2157
      %v2159 = vpop.f32.mrb[0].mxu0
      %v2160 = vadd.f32 %v1718, %v2159
      %2161 = vmatprep.mubr.bf16.mxu0 %v1666
      %2162 = vmatmul.mubr.bf16.gmra.mrb[0].mxu0 %v1665
      %v2163 = vpop.f32.mrb[0].mxu0
      %v2164 = vadd.f32 %v1714, %v2163
      %v2165 = vpop.f32.mrb[0].mxu0
      %v2166 = vadd.f32 %v1718, %v2165
      %v2167 = vpop.f32.mrb[0].mxu0
      %v2168 = vadd.f32 %v1714, %v2167
      %v2169 = vpop.f32.mrb[0].mxu0
      %v2170 = vadd.f32 %v1718, %v2169
      %2171 = vmatprep.mubr.bf16.mxu0 %v1668
      %2172 = vmatmul.mubr.bf16.gmra.mrb[0].mxu0 %v1667
      %v2173 = vpop.f32.mrb[0].mxu0
      %v2174 = vadd.f32 %v1714, %v2173
      %v2175 = vpop.f32.mrb[0].mxu0
      %v2176 = vadd.f32 %v1718, %v2175
      %v2177 = vpop.f32.mrb[0].mxu0
      %v2178 = vadd.f32 %v1714, %v2177
      %v2179 = vpop.f32.mrb[0].mxu0
      %v2180 = vadd.f32 %v1718, %v2179
      %2181 = vmatprep.mubr.bf16.mxu0 %v1670
      %2182 = vmatmul.mubr.bf16.gmra.mrb[0].mxu0 %v1669
      %v2183 = vpop.f32.mrb[0].mxu0
      %v2184 = vadd.f32 %v1714, %v2183
      %v2185 = vpop.f32.mrb[0].mxu0
      %v2186 = vadd.f32 %v1718, %v2185
      %v2187 = vpop.f32.mrb[0].mxu0
      %v2188 = vadd.f32 %v1714, %v2187
      %v2189 = vpop.f32.mrb[0].mxu0
      %v2190 = vadd.f32 %v1718, %v2189
      %2191 = vmatprep.mubr.bf16.mxu0 %v1672
      %2192 = vmatmul.mubr.bf16.gmra.mrb[0].mxu0 %v1671
      %v2193 = vpop.f32.mrb[0].mxu0
      %v2194 = vadd.f32 %v1714, %v2193
      %v2195 = vpop.f32.mrb[0].mxu0
      %v2196 = vadd.f32 %v1718, %v2195
      %v2197 = vpop.f32.mrb[0].mxu0
      %v2198 = vadd.f32 %v1714, %v2197
      %v2199 = vpop.f32.mrb[0].mxu0
      %v2200 = vadd.f32 %v1718, %v2199
      %2201 = vmatprep.mubr.bf16.mxu0 %v1674
      %2202 = vmatmul.mubr.bf16.gmra.mrb[0].mxu0 %v1673
      %v2203 = vpop.f32.mrb[0].mxu0
      %v2204 = vadd.f32 %v1714, %v2203
      %v2205 = vpop.f32.mrb[0].mxu0
      %v2206 = vadd.f32 %v1718, %v2205
      %v2207 = vpop.f32.mrb[0].mxu0
      %v2208 = vadd.f32 %v1714, %v2207
      %v2209 = vpop.f32.mrb[0].mxu0
      %v2210 = vadd.f32 %v1718, %v2209
      %2211 = vmatprep.mubr.bf16.mxu0 %v1676
      %2212 = vmatmul.mubr.bf16.gmra.mrb[0].mxu0 %v1675
      %v2213 = vpop.f32.mrb[0].mxu0
      %v2214 = vadd.f32 %v1714, %v2213
      %v2215 = vpop.f32.mrb[0].mxu0
      %v2216 = vadd.f32 %v1718, %v2215
      %v2217 = vpop.f32.mrb[0].mxu0
      %v2218 = vadd.f32 %v1714, %v2217
      %v2219 = vpop.f32.mrb[0].mxu0
      %v2220 = vadd.f32 %v1718, %v2219
      %2221 = vmatprep.mubr.bf16.mxu0 %v1678
      %2222 = vmatmul.mubr.bf16.gmra.mrb[0].mxu0 %v1677
      %v2223 = vpop.f32.mrb[0].mxu0
      %v2224 = vadd.f32 %v1714, %v2223
      %v2225 = vpop.f32.mrb[0].mxu0
      %v2226 = vadd.f32 %v1718, %v2225
      %v2227 = vpop.f32.mrb[0].mxu0
      %v2228 = vadd.f32 %v1714, %v2227
      %v2229 = vpop.f32.mrb[0].mxu0
      %v2230 = vadd.f32 %v1718, %v2229
      %2231 = vdwg.mxu0
      %v2232 = vmax.f32 %v1914, 0.0
      %v2233 = vmax.f32 %v1916, 0.0
      %v2234 = vmax.f32 %v1918, 0.0
      %v2235 = vmax.f32 %v1920, 0.0
      %v2236 = vmax.f32 %v1924, 0.0
      %v2237 = vmax.f32 %v1926, 0.0
      %v2238 = vmax.f32 %v1928, 0.0
      %v2239 = vmax.f32 %v1930, 0.0
      %v2240 = vmax.f32 %v1934, 0.0
      %v2241 = vmax.f32 %v1936, 0.0
      %v2242 = vmax.f32 %v1938, 0.0
      %v2243 = vmax.f32 %v1940, 0.0
      %v2244 = vmax.f32 %v1944, 0.0
      %v2245 = vmax.f32 %v1946, 0.0
      %v2246 = vmax.f32 %v1948, 0.0
      %v2247 = vmax.f32 %v1950, 0.0
      %v2248 = vmax.f32 %v1954, 0.0
      %v2249 = vmax.f32 %v1956, 0.0
      %v2250 = vmax.f32 %v1958, 0.0
      %v2251 = vmax.f32 %v1960, 0.0
      %v2252 = vmax.f32 %v1964, 0.0
      %v2253 = vmax.f32 %v1966, 0.0
      %v2254 = vmax.f32 %v1968, 0.0
      %v2255 = vmax.f32 %v1970, 0.0
      %v2256 = vmax.f32 %v1974, 0.0
      %v2257 = vmax.f32 %v1976, 0.0
      %v2258 = vmax.f32 %v1978, 0.0
      %v2259 = vmax.f32 %v1980, 0.0
      %v2260 = vmax.f32 %v1984, 0.0
      %v2261 = vmax.f32 %v1986, 0.0
      %v2262 = vmax.f32 %v1988, 0.0
      %v2263 = vmax.f32 %v1990, 0.0
      %v2264 = vmax.f32 %v1994, 0.0
      %v2265 = vmax.f32 %v1996, 0.0
      %v2266 = vmax.f32 %v1998, 0.0
      %v2267 = vmax.f32 %v2000, 0.0
      %v2268 = vmax.f32 %v2004, 0.0
      %v2269 = vmax.f32 %v2006, 0.0
      %v2270 = vmax.f32 %v2008, 0.0
      %v2271 = vmax.f32 %v2010, 0.0
      %v2272 = vmax.f32 %v2014, 0.0
      %v2273 = vmax.f32 %v2016, 0.0
      %v2274 = vmax.f32 %v2018, 0.0
      %v2275 = vmax.f32 %v2020, 0.0
      %v2276 = vmax.f32 %v2024, 0.0
      %v2277 = vmax.f32 %v2026, 0.0
      %v2278 = vmax.f32 %v2028, 0.0
      %v2279 = vmax.f32 %v2030, 0.0
      %v2280 = vmax.f32 %v2034, 0.0
      %v2281 = vmax.f32 %v2036, 0.0
      %v2282 = vmax.f32 %v2038, 0.0
      %v2283 = vmax.f32 %v2040, 0.0
      %v2284 = vmax.f32 %v2044, 0.0
      %v2285 = vmax.f32 %v2046, 0.0
      %v2286 = vmax.f32 %v2048, 0.0
      %v2287 = vmax.f32 %v2050, 0.0
      %v2288 = vmax.f32 %v2054, 0.0
      %v2289 = vmax.f32 %v2056, 0.0
      %v2290 = vmax.f32 %v2058, 0.0
      %v2291 = vmax.f32 %v2060, 0.0
      %v2292 = vmax.f32 %v2064, 0.0
      %v2293 = vmax.f32 %v2066, 0.0
      %v2294 = vmax.f32 %v2068, 0.0
      %v2295 = vmax.f32 %v2070, 0.0
      %v2296 = vmax.f32 %v2074, 0.0
      %v2297 = vmax.f32 %v2076, 0.0
      %v2298 = vmax.f32 %v2078, 0.0
      %v2299 = vmax.f32 %v2080, 0.0
      %v2300 = vmax.f32 %v2084, 0.0
      %v2301 = vmax.f32 %v2086, 0.0
      %v2302 = vmax.f32 %v2088, 0.0
      %v2303 = vmax.f32 %v2090, 0.0
      %v2304 = vmax.f32 %v2094, 0.0
      %v2305 = vmax.f32 %v2096, 0.0
      %v2306 = vmax.f32 %v2098, 0.0
      %v2307 = vmax.f32 %v2100, 0.0
      %v2308 = vmax.f32 %v2104, 0.0
      %v2309 = vmax.f32 %v2106, 0.0
      %v2310 = vmax.f32 %v2108, 0.0
      %v2311 = vmax.f32 %v2110, 0.0
      %v2312 = vmax.f32 %v2114, 0.0
      %v2313 = vmax.f32 %v2116, 0.0
      %v2314 = vmax.f32 %v2118, 0.0
      %v2315 = vmax.f32 %v2120, 0.0
      %v2316 = vmax.f32 %v2124, 0.0
      %v2317 = vmax.f32 %v2126, 0.0
      %v2318 = vmax.f32 %v2128, 0.0
      %v2319 = vmax.f32 %v2130, 0.0
      %v2320 = vmax.f32 %v2134, 0.0
      %v2321 = vmax.f32 %v2136, 0.0
      %v2322 = vmax.f32 %v2138, 0.0
      %v2323 = vmax.f32 %v2140, 0.0
      %v2324 = vmax.f32 %v2144, 0.0
      %v2325 = vmax.f32 %v2146, 0.0
      %v2326 = vmax.f32 %v2148, 0.0
      %v2327 = vmax.f32 %v2150, 0.0
      %v2328 = vmax.f32 %v2154, 0.0
      %v2329 = vmax.f32 %v2156, 0.0
      %v2330 = vmax.f32 %v2158, 0.0
      %v2331 = vmax.f32 %v2160, 0.0
      %v2332 = vmax.f32 %v2164, 0.0
      %v2333 = vmax.f32 %v2166, 0.0
      %v2334 = vmax.f32 %v2168, 0.0
      %v2335 = vmax.f32 %v2170, 0.0
      %v2336 = vmax.f32 %v2174, 0.0
      %v2337 = vmax.f32 %v2176, 0.0
      %v2338 = vmax.f32 %v2178, 0.0
      %v2339 = vmax.f32 %v2180, 0.0
      %v2340 = vmax.f32 %v2184, 0.0
      %v2341 = vmax.f32 %v2186, 0.0
      %v2342 = vmax.f32 %v2188, 0.0
      %v2343 = vmax.f32 %v2190, 0.0
      %v2344 = vmax.f32 %v2194, 0.0
      %v2345 = vmax.f32 %v2196, 0.0
      %v2346 = vmax.f32 %v2198, 0.0
      %v2347 = vmax.f32 %v2200, 0.0
      %v2348 = vmax.f32 %v2204, 0.0
      %v2349 = vmax.f32 %v2206, 0.0
      %v2350 = vmax.f32 %v2208, 0.0
      %v2351 = vmax.f32 %v2210, 0.0
      %v2352 = vmax.f32 %v2214, 0.0
      %v2353 = vmax.f32 %v2216, 0.0
      %v2354 = vmax.f32 %v2218, 0.0
      %v2355 = vmax.f32 %v2220, 0.0
      %v2356 = vmax.f32 %v2224, 0.0
      %v2357 = vmax.f32 %v2226, 0.0
      %v2358 = vmax.f32 %v2228, 0.0
      %v2359 = vmax.f32 %v2230, 0.0
      %v2360 = vpack.c.bf16 %v2234, %v2232
      %v2361 = vpack.c.bf16 %v2235, %v2233
      %v2362 = vpack.c.bf16 %v2238, %v2236
      %v2363 = vpack.c.bf16 %v2239, %v2237
      %v2364 = vpack.c.bf16 %v2242, %v2240
      %v2365 = vpack.c.bf16 %v2243, %v2241
      %v2366 = vpack.c.bf16 %v2246, %v2244
      %v2367 = vpack.c.bf16 %v2247, %v2245
      %v2368 = vpack.c.bf16 %v2250, %v2248
      %v2369 = vpack.c.bf16 %v2251, %v2249
      %v2370 = vpack.c.bf16 %v2254, %v2252
      %v2371 = vpack.c.bf16 %v2255, %v2253
      %v2372 = vpack.c.bf16 %v2258, %v2256
      %v2373 = vpack.c.bf16 %v2259, %v2257
      %v2374 = vpack.c.bf16 %v2262, %v2260
      %v2375 = vpack.c.bf16 %v2263, %v2261
      %v2376 = vpack.c.bf16 %v2266, %v2264
      %v2377 = vpack.c.bf16 %v2267, %v2265
      %v2378 = vpack.c.bf16 %v2270, %v2268
      %v2379 = vpack.c.bf16 %v2271, %v2269
      %v2380 = vpack.c.bf16 %v2274, %v2272
      %v2381 = vpack.c.bf16 %v2275, %v2273
      %v2382 = vpack.c.bf16 %v2278, %v2276
      %v2383 = vpack.c.bf16 %v2279, %v2277
      %v2384 = vpack.c.bf16 %v2282, %v2280
      %v2385 = vpack.c.bf16 %v2283, %v2281
      %v2386 = vpack.c.bf16 %v2286, %v2284
      %v2387 = vpack.c.bf16 %v2287, %v2285
      %v2388 = vpack.c.bf16 %v2290, %v2288
      %v2389 = vpack.c.bf16 %v2291, %v2289
      %v2390 = vpack.c.bf16 %v2294, %v2292
      %v2391 = vpack.c.bf16 %v2295, %v2293
      %v2392 = vpack.c.bf16 %v2298, %v2296
      %v2393 = vpack.c.bf16 %v2299, %v2297
      %v2394 = vpack.c.bf16 %v2302, %v2300
      %v2395 = vpack.c.bf16 %v2303, %v2301
      %v2396 = vpack.c.bf16 %v2306, %v2304
      %v2397 = vpack.c.bf16 %v2307, %v2305
      %v2398 = vpack.c.bf16 %v2310, %v2308
      %v2399 = vpack.c.bf16 %v2311, %v2309
      %v2400 = vpack.c.bf16 %v2314, %v2312
      %v2401 = vpack.c.bf16 %v2315, %v2313
      %v2402 = vpack.c.bf16 %v2318, %v2316
      %v2403 = vpack.c.bf16 %v2319, %v2317
      %v2404 = vpack.c.bf16 %v2322, %v2320
      %v2405 = vpack.c.bf16 %v2323, %v2321
      %v2406 = vpack.c.bf16 %v2326, %v2324
      %v2407 = vpack.c.bf16 %v2327, %v2325
      %v2408 = vpack.c.bf16 %v2330, %v2328
      %v2409 = vpack.c.bf16 %v2331, %v2329
      %v2410 = vpack.c.bf16 %v2334, %v2332
      %v2411 = vpack.c.bf16 %v2335, %v2333
      %v2412 = vpack.c.bf16 %v2338, %v2336
      %v2413 = vpack.c.bf16 %v2339, %v2337
      %v2414 = vpack.c.bf16 %v2342, %v2340
      %v2415 = vpack.c.bf16 %v2343, %v2341
      %v2416 = vpack.c.bf16 %v2346, %v2344
      %v2417 = vpack.c.bf16 %v2347, %v2345
      %v2418 = vpack.c.bf16 %v2350, %v2348
      %v2419 = vpack.c.bf16 %v2351, %v2349
      %v2420 = vpack.c.bf16 %v2354, %v2352
      %v2421 = vpack.c.bf16 %v2355, %v2353
      %v2422 = vpack.c.bf16 %v2358, %v2356
      %v2423 = vpack.c.bf16 %v2359, %v2357
      %v2424 = vld [vmem:[%s2] sm:$0xff]
      %v2425 = vld [vmem:[%s2 + $0x8] sm:$0xff]
      %v2426 = vld [vmem:[%s2 + $0x10] sm:$0xff]
      %v2427 = vld [vmem:[%s2 + $0x18] sm:$0xff]
      %v2428 = vld [vmem:[%s2 + $0x20] sm:$0xff]
      %v2429 = vld [vmem:[%s2 + $0x28] sm:$0xff]
      %v2430 = vld [vmem:[%s2 + $0x30] sm:$0xff]
      %v2431 = vld [vmem:[%s2 + $0x38] sm:$0xff]
      %v2432 = vld [vmem:[%s2 + $0x40] sm:$0xff]
      %v2433 = vld [vmem:[%s2 + $0x48] sm:$0xff]
      %v2434 = vld [vmem:[%s2 + $0x50] sm:$0xff]
      %v2435 = vld [vmem:[%s2 + $0x58] sm:$0xff]
      %v2436 = vld [vmem:[%s2 + $0x60] sm:$0xff]
      %v2437 = vld [vmem:[%s2 + $0x68] sm:$0xff]
      %v2438 = vld [vmem:[%s2 + $0x70] sm:$0xff]
      %v2439 = vld [vmem:[%s2 + $0x78] sm:$0xff]
      %v2456 = vunpack.c.l.b16 %v2424
      %v2457 = vunpack.c.h.b16 %v2424
      %v2458 = vunpack.c.l.b16 %v2425
      %v2459 = vunpack.c.h.b16 %v2425
      %v2460 = vunpack.c.l.b16 %v2426
      %v2461 = vunpack.c.h.b16 %v2426
      %v2462 = vunpack.c.l.b16 %v2427
      %v2463 = vunpack.c.h.b16 %v2427
      %v2464 = vunpack.c.l.b16 %v2428
      %v2465 = vunpack.c.h.b16 %v2428
      %v2466 = vunpack.c.l.b16 %v2429
      %v2467 = vunpack.c.h.b16 %v2429
      %v2468 = vunpack.c.l.b16 %v2430
      %v2469 = vunpack.c.h.b16 %v2430
      %v2470 = vunpack.c.l.b16 %v2431
      %v2471 = vunpack.c.h.b16 %v2431
      %v2472 = vunpack.c.l.b16 %v2432
      %v2473 = vunpack.c.h.b16 %v2432
      %v2474 = vunpack.c.l.b16 %v2433
      %v2475 = vunpack.c.h.b16 %v2433
      %v2476 = vunpack.c.l.b16 %v2434
      %v2477 = vunpack.c.h.b16 %v2434
      %v2478 = vunpack.c.l.b16 %v2435
      %v2479 = vunpack.c.h.b16 %v2435
      %v2480 = vunpack.c.l.b16 %v2436
      %v2481 = vunpack.c.h.b16 %v2436
      %v2482 = vunpack.c.l.b16 %v2437
      %v2483 = vunpack.c.h.b16 %v2437
      %v2484 = vunpack.c.l.b16 %v2438
      %v2485 = vunpack.c.h.b16 %v2438
      %v2486 = vunpack.c.l.b16 %v2439
      %v2487 = vunpack.c.h.b16 %v2439
      %v2488 = vpack.c.b16 %v2458, %v2456
      %v2489 = vpack.c.b16 %v2459, %v2457
      %v2490 = vpack.c.b16 %v2462, %v2460
      %v2491 = vpack.c.b16 %v2463, %v2461
      %v2492 = vpack.c.b16 %v2466, %v2464
      %v2493 = vpack.c.b16 %v2467, %v2465
      %v2494 = vpack.c.b16 %v2470, %v2468
      %v2495 = vpack.c.b16 %v2471, %v2469
      %v2496 = vpack.c.b16 %v2474, %v2472
      %v2497 = vpack.c.b16 %v2475, %v2473
      %v2498 = vpack.c.b16 %v2478, %v2476
      %v2499 = vpack.c.b16 %v2479, %v2477
      %v2500 = vpack.c.b16 %v2482, %v2480
      %v2501 = vpack.c.b16 %v2483, %v2481
      %v2502 = vpack.c.b16 %v2486, %v2484
      %v2503 = vpack.c.b16 %v2487, %v2485
      %2520 = vmatprep.subr.bf16.mxu0 %v2489
      %2521 = vmatpush1.bf16.msra.mxu0 %v2488
      %2522 = vmatprep.subr.bf16.mxu0 %v2491
      %2523 = vmatpush1.bf16.msra.mxu0 %v2490
      %2524 = vmatprep.subr.bf16.mxu0 %v2493
      %2525 = vmatpush1.bf16.msra.mxu0 %v2492
      %2526 = vmatprep.subr.bf16.mxu0 %v2495
      %2527 = vmatpush1.bf16.msra.mxu0 %v2494
      %2528 = vmatprep.subr.bf16.mxu0 %v2497
      %2529 = vmatpush1.bf16.msra.mxu0 %v2496
      %2530 = vmatprep.subr.bf16.mxu0 %v2499
      %2531 = vmatpush1.bf16.msra.mxu0 %v2498
      %2532 = vmatprep.subr.bf16.mxu0 %v2501
      %2533 = vmatpush1.bf16.msra.mxu0 %v2500
      %2534 = vmatprep.subr.bf16.mxu0 %v2503
      %2535 = vmatpush1.bf16.msra.mxu0 %v2502
      %2536 = vmatprep.subr.bf16.mxu0 0
      %2537 = vmatpush1.bf16.msra.mxu0 0
      %2538 = vmatprep.subr.bf16.mxu0 0
      %2539 = vmatpush1.bf16.msra.mxu0 0
      %2540 = vmatprep.subr.bf16.mxu0 0
      %2541 = vmatpush1.bf16.msra.mxu0 0
      %2542 = vmatprep.subr.bf16.mxu0 0
      %2543 = vmatpush1.bf16.msra.mxu0 0
      %2544 = vmatprep.subr.bf16.mxu0 0
      %2545 = vmatpush1.bf16.msra.mxu0 0
      %2546 = vmatprep.subr.bf16.mxu0 0
      %2547 = vmatpush1.bf16.msra.mxu0 0
      %2548 = vmatprep.subr.bf16.mxu0 0
      %2549 = vmatpush1.bf16.msra.mxu0 0
      %2550 = vmatprep.subr.bf16.mxu0 0
      %2551 = vmatpush1.bf16.msra.mxu0 0
      %2552 = vmatprep.mubr.bf16.mxu0 0
      %2553 = vmatmul.mubr.bf16.gmra.mrb[0].mxu0 %v530
      %v2554 = vpop.f32.mrb[0].mxu0
      %v2555 = vadd.f32 0.0, %v2554
      %v2556 = vpop.f32.mrb[0].mxu0
      %v2557 = vadd.f32 0.0, %v2556
      %v2558 = vpop.f32.mrb[0].mxu0
      %v2559 = vadd.f32 0.0, %v2558
      %v2560 = vpop.f32.mrb[0].mxu0
      %v2561 = vadd.f32 0.0, %v2560
      %2562 = vmatprep.mubr.bf16.mxu0 0
      %2563 = vmatmul.mubr.bf16.gmra.mrb[0].mxu0 %v531
      %v2564 = vpop.f32.mrb[0].mxu0
      %v2565 = vadd.f32 0.0, %v2564
      %v2566 = vpop.f32.mrb[0].mxu0
      %v2567 = vadd.f32 0.0, %v2566
      %v2568 = vpop.f32.mrb[0].mxu0
      %v2569 = vadd.f32 0.0, %v2568
      %v2570 = vpop.f32.mrb[0].mxu0
      %v2571 = vadd.f32 0.0, %v2570
      %2572 = vmatprep.mubr.bf16.mxu0 0
      %2573 = vmatmul.mubr.bf16.gmra.mrb[0].mxu0 %v532
      %v2574 = vpop.f32.mrb[0].mxu0
      %v2575 = vadd.f32 0.0, %v2574
      %v2576 = vpop.f32.mrb[0].mxu0
      %v2577 = vadd.f32 0.0, %v2576
      %v2578 = vpop.f32.mrb[0].mxu0
      %v2579 = vadd.f32 0.0, %v2578
      %v2580 = vpop.f32.mrb[0].mxu0
      %v2581 = vadd.f32 0.0, %v2580
      %2582 = vmatprep.mubr.bf16.mxu0 0
      %2583 = vmatmul.mubr.bf16.gmra.mrb[0].mxu0 %v533
      %v2584 = vpop.f32.mrb[0].mxu0
      %v2585 = vadd.f32 0.0, %v2584
      %v2586 = vpop.f32.mrb[0].mxu0
      %v2587 = vadd.f32 0.0, %v2586
      %v2588 = vpop.f32.mrb[0].mxu0
      %v2589 = vadd.f32 0.0, %v2588
      %v2590 = vpop.f32.mrb[0].mxu0
      %v2591 = vadd.f32 0.0, %v2590
      %2592 = vmatprep.mubr.bf16.mxu0 0
      %2593 = vmatmul.mubr.bf16.gmra.mrb[0].mxu0 %v534
      %v2594 = vpop.f32.mrb[0].mxu0
      %v2595 = vadd.f32 0.0, %v2594
      %v2596 = vpop.f32.mrb[0].mxu0
      %v2597 = vadd.f32 0.0, %v2596
      %v2598 = vpop.f32.mrb[0].mxu0
      %v2599 = vadd.f32 0.0, %v2598
      %v2600 = vpop.f32.mrb[0].mxu0
      %v2601 = vadd.f32 0.0, %v2600
      %2602 = vmatprep.mubr.bf16.mxu0 0
      %2603 = vmatmul.mubr.bf16.gmra.mrb[0].mxu0 %v535
      %v2604 = vpop.f32.mrb[0].mxu0
      %v2605 = vadd.f32 0.0, %v2604
      %v2606 = vpop.f32.mrb[0].mxu0
      %v2607 = vadd.f32 0.0, %v2606
      %v2608 = vpop.f32.mrb[0].mxu0
      %v2609 = vadd.f32 0.0, %v2608
      %v2610 = vpop.f32.mrb[0].mxu0
      %v2611 = vadd.f32 0.0, %v2610
      %2612 = vmatprep.mubr.bf16.mxu0 0
      %2613 = vmatmul.mubr.bf16.gmra.mrb[0].mxu0 %v536
      %v2614 = vpop.f32.mrb[0].mxu0
      %v2615 = vadd.f32 0.0, %v2614
      %v2616 = vpop.f32.mrb[0].mxu0
      %v2617 = vadd.f32 0.0, %v2616
      %v2618 = vpop.f32.mrb[0].mxu0
      %v2619 = vadd.f32 0.0, %v2618
      %v2620 = vpop.f32.mrb[0].mxu0
      %v2621 = vadd.f32 0.0, %v2620
      %2622 = vmatprep.mubr.bf16.mxu0 0
      %2623 = vmatmul.mubr.bf16.gmra.mrb[0].mxu0 %v537
      %v2624 = vpop.f32.mrb[0].mxu0
      %v2625 = vadd.f32 0.0, %v2624
      %v2626 = vpop.f32.mrb[0].mxu0
      %v2627 = vadd.f32 0.0, %v2626
      %v2628 = vpop.f32.mrb[0].mxu0
      %v2629 = vadd.f32 0.0, %v2628
      %v2630 = vpop.f32.mrb[0].mxu0
      %v2631 = vadd.f32 0.0, %v2630
      %2632 = vmatprep.mubr.bf16.mxu0 0
      %2633 = vmatmul.mubr.bf16.gmra.mrb[0].mxu0 %v538
      %v2634 = vpop.f32.mrb[0].mxu0
      %v2635 = vadd.f32 0.0, %v2634
      %v2636 = vpop.f32.mrb[0].mxu0
      %v2637 = vadd.f32 0.0, %v2636
      %v2638 = vpop.f32.mrb[0].mxu0
      %v2639 = vadd.f32 0.0, %v2638
      %v2640 = vpop.f32.mrb[0].mxu0
      %v2641 = vadd.f32 0.0, %v2640
      %2642 = vmatprep.mubr.bf16.mxu0 0
      %2643 = vmatmul.mubr.bf16.gmra.mrb[0].mxu0 %v539
      %v2644 = vpop.f32.mrb[0].mxu0
      %v2645 = vadd.f32 0.0, %v2644
      %v2646 = vpop.f32.mrb[0].mxu0
      %v2647 = vadd.f32 0.0, %v2646
      %v2648 = vpop.f32.mrb[0].mxu0
      %v2649 = vadd.f32 0.0, %v2648
      %v2650 = vpop.f32.mrb[0].mxu0
      %v2651 = vadd.f32 0.0, %v2650
      %2652 = vmatprep.mubr.bf16.mxu0 0
      %2653 = vmatmul.mubr.bf16.gmra.mrb[0].mxu0 %v540
      %v2654 = vpop.f32.mrb[0].mxu0
      %v2655 = vadd.f32 0.0, %v2654
      %v2656 = vpop.f32.mrb[0].mxu0
      %v2657 = vadd.f32 0.0, %v2656
      %v2658 = vpop.f32.mrb[0].mxu0
      %v2659 = vadd.f32 0.0, %v2658
      %v2660 = vpop.f32.mrb[0].mxu0
      %v2661 = vadd.f32 0.0, %v2660
      %2662 = vmatprep.mubr.bf16.mxu0 0
      %2663 = vmatmul.mubr.bf16.gmra.mrb[0].mxu0 %v541
      %v2664 = vpop.f32.mrb[0].mxu0
      %v2665 = vadd.f32 0.0, %v2664
      %v2666 = vpop.f32.mrb[0].mxu0
      %v2667 = vadd.f32 0.0, %v2666
      %v2668 = vpop.f32.mrb[0].mxu0
      %v2669 = vadd.f32 0.0, %v2668
      %v2670 = vpop.f32.mrb[0].mxu0
      %v2671 = vadd.f32 0.0, %v2670
      %2672 = vmatprep.mubr.bf16.mxu0 0
      %2673 = vmatmul.mubr.bf16.gmra.mrb[0].mxu0 %v542
      %v2674 = vpop.f32.mrb[0].mxu0
      %v2675 = vadd.f32 0.0, %v2674
      %v2676 = vpop.f32.mrb[0].mxu0
      %v2677 = vadd.f32 0.0, %v2676
      %v2678 = vpop.f32.mrb[0].mxu0
      %v2679 = vadd.f32 0.0, %v2678
      %v2680 = vpop.f32.mrb[0].mxu0
      %v2681 = vadd.f32 0.0, %v2680
      %2682 = vmatprep.mubr.bf16.mxu0 0
      %2683 = vmatmul.mubr.bf16.gmra.mrb[0].mxu0 %v543
      %v2684 = vpop.f32.mrb[0].mxu0
      %v2685 = vadd.f32 0.0, %v2684
      %v2686 = vpop.f32.mrb[0].mxu0
      %v2687 = vadd.f32 0.0, %v2686
      %v2688 = vpop.f32.mrb[0].mxu0
      %v2689 = vadd.f32 0.0, %v2688
      %v2690 = vpop.f32.mrb[0].mxu0
      %v2691 = vadd.f32 0.0, %v2690
      %2692 = vmatprep.mubr.bf16.mxu0 0
      %2693 = vmatmul.mubr.bf16.gmra.mrb[0].mxu0 %v544
      %v2694 = vpop.f32.mrb[0].mxu0
      %v2695 = vadd.f32 0.0, %v2694
      %v2696 = vpop.f32.mrb[0].mxu0
      %v2697 = vadd.f32 0.0, %v2696
      %v2698 = vpop.f32.mrb[0].mxu0
      %v2699 = vadd.f32 0.0, %v2698
      %v2700 = vpop.f32.mrb[0].mxu0
      %v2701 = vadd.f32 0.0, %v2700
      %2702 = vmatprep.mubr.bf16.mxu0 0
      %2703 = vmatmul.mubr.bf16.gmra.mrb[0].mxu0 %v545
      %v2704 = vpop.f32.mrb[0].mxu0
      %v2705 = vadd.f32 0.0, %v2704
      %v2706 = vpop.f32.mrb[0].mxu0
      %v2707 = vadd.f32 0.0, %v2706
      %v2708 = vpop.f32.mrb[0].mxu0
      %v2709 = vadd.f32 0.0, %v2708
      %v2710 = vpop.f32.mrb[0].mxu0
      %v2711 = vadd.f32 0.0, %v2710
      %2712 = vmatprep.mubr.bf16.mxu0 0
      %2713 = vmatmul.mubr.bf16.gmra.mrb[0].mxu0 %v546
      %v2714 = vpop.f32.mrb[0].mxu0
      %v2715 = vadd.f32 0.0, %v2714
      %v2716 = vpop.f32.mrb[0].mxu0
      %v2717 = vadd.f32 0.0, %v2716
      %v2718 = vpop.f32.mrb[0].mxu0
      %v2719 = vadd.f32 0.0, %v2718
      %v2720 = vpop.f32.mrb[0].mxu0
      %v2721 = vadd.f32 0.0, %v2720
      %2722 = vmatprep.mubr.bf16.mxu0 0
      %2723 = vmatmul.mubr.bf16.gmra.mrb[0].mxu0 %v547
      %v2724 = vpop.f32.mrb[0].mxu0
      %v2725 = vadd.f32 0.0, %v2724
      %v2726 = vpop.f32.mrb[0].mxu0
      %v2727 = vadd.f32 0.0, %v2726
      %v2728 = vpop.f32.mrb[0].mxu0
      %v2729 = vadd.f32 0.0, %v2728
      %v2730 = vpop.f32.mrb[0].mxu0
      %v2731 = vadd.f32 0.0, %v2730
      %2732 = vmatprep.mubr.bf16.mxu0 0
      %2733 = vmatmul.mubr.bf16.gmra.mrb[0].mxu0 %v548
      %v2734 = vpop.f32.mrb[0].mxu0
      %v2735 = vadd.f32 0.0, %v2734
      %v2736 = vpop.f32.mrb[0].mxu0
      %v2737 = vadd.f32 0.0, %v2736
      %v2738 = vpop.f32.mrb[0].mxu0
      %v2739 = vadd.f32 0.0, %v2738
      %v2740 = vpop.f32.mrb[0].mxu0
      %v2741 = vadd.f32 0.0, %v2740
      %2742 = vmatprep.mubr.bf16.mxu0 0
      %2743 = vmatmul.mubr.bf16.gmra.mrb[0].mxu0 %v549
      %v2744 = vpop.f32.mrb[0].mxu0
      %v2745 = vadd.f32 0.0, %v2744
      %v2746 = vpop.f32.mrb[0].mxu0
      %v2747 = vadd.f32 0.0, %v2746
      %v2748 = vpop.f32.mrb[0].mxu0
      %v2749 = vadd.f32 0.0, %v2748
      %v2750 = vpop.f32.mrb[0].mxu0
      %v2751 = vadd.f32 0.0, %v2750
      %2752 = vmatprep.mubr.bf16.mxu0 0
      %2753 = vmatmul.mubr.bf16.gmra.mrb[0].mxu0 %v550
      %v2754 = vpop.f32.mrb[0].mxu0
      %v2755 = vadd.f32 0.0, %v2754
      %v2756 = vpop.f32.mrb[0].mxu0
      %v2757 = vadd.f32 0.0, %v2756
      %v2758 = vpop.f32.mrb[0].mxu0
      %v2759 = vadd.f32 0.0, %v2758
      %v2760 = vpop.f32.mrb[0].mxu0
      %v2761 = vadd.f32 0.0, %v2760
      %2762 = vmatprep.mubr.bf16.mxu0 0
      %2763 = vmatmul.mubr.bf16.gmra.mrb[0].mxu0 %v551
      %v2764 = vpop.f32.mrb[0].mxu0
      %v2765 = vadd.f32 0.0, %v2764
      %v2766 = vpop.f32.mrb[0].mxu0
      %v2767 = vadd.f32 0.0, %v2766
      %v2768 = vpop.f32.mrb[0].mxu0
      %v2769 = vadd.f32 0.0, %v2768
      %v2770 = vpop.f32.mrb[0].mxu0
      %v2771 = vadd.f32 0.0, %v2770
      %2772 = vmatprep.mubr.bf16.mxu0 0
      %2773 = vmatmul.mubr.bf16.gmra.mrb[0].mxu0 %v552
      %v2774 = vpop.f32.mrb[0].mxu0
      %v2775 = vadd.f32 0.0, %v2774
      %v2776 = vpop.f32.mrb[0].mxu0
      %v2777 = vadd.f32 0.0, %v2776
      %v2778 = vpop.f32.mrb[0].mxu0
      %v2779 = vadd.f32 0.0, %v2778
      %v2780 = vpop.f32.mrb[0].mxu0
      %v2781 = vadd.f32 0.0, %v2780
      %2782 = vmatprep.mubr.bf16.mxu0 0
      %2783 = vmatmul.mubr.bf16.gmra.mrb[0].mxu0 %v553
      %v2784 = vpop.f32.mrb[0].mxu0
      %v2785 = vadd.f32 0.0, %v2784
      %v2786 = vpop.f32.mrb[0].mxu0
      %v2787 = vadd.f32 0.0, %v2786
      %v2788 = vpop.f32.mrb[0].mxu0
      %v2789 = vadd.f32 0.0, %v2788
      %v2790 = vpop.f32.mrb[0].mxu0
      %v2791 = vadd.f32 0.0, %v2790
      %2792 = vmatprep.mubr.bf16.mxu0 0
      %2793 = vmatmul.mubr.bf16.gmra.mrb[0].mxu0 %v554
      %v2794 = vpop.f32.mrb[0].mxu0
      %v2795 = vadd.f32 0.0, %v2794
      %v2796 = vpop.f32.mrb[0].mxu0
      %v2797 = vadd.f32 0.0, %v2796
      %v2798 = vpop.f32.mrb[0].mxu0
      %v2799 = vadd.f32 0.0, %v2798
      %v2800 = vpop.f32.mrb[0].mxu0
      %v2801 = vadd.f32 0.0, %v2800
      %2802 = vmatprep.mubr.bf16.mxu0 0
      %2803 = vmatmul.mubr.bf16.gmra.mrb[0].mxu0 %v555
      %v2804 = vpop.f32.mrb[0].mxu0
      %v2805 = vadd.f32 0.0, %v2804
      %v2806 = vpop.f32.mrb[0].mxu0
      %v2807 = vadd.f32 0.0, %v2806
      %v2808 = vpop.f32.mrb[0].mxu0
      %v2809 = vadd.f32 0.0, %v2808
      %v2810 = vpop.f32.mrb[0].mxu0
      %v2811 = vadd.f32 0.0, %v2810
      %2812 = vmatprep.mubr.bf16.mxu0 0
      %2813 = vmatmul.mubr.bf16.gmra.mrb[0].mxu0 %v556
      %v2814 = vpop.f32.mrb[0].mxu0
      %v2815 = vadd.f32 0.0, %v2814
      %v2816 = vpop.f32.mrb[0].mxu0
      %v2817 = vadd.f32 0.0, %v2816
      %v2818 = vpop.f32.mrb[0].mxu0
      %v2819 = vadd.f32 0.0, %v2818
      %v2820 = vpop.f32.mrb[0].mxu0
      %v2821 = vadd.f32 0.0, %v2820
      %2822 = vmatprep.mubr.bf16.mxu0 0
      %2823 = vmatmul.mubr.bf16.gmra.mrb[0].mxu0 %v557
      %v2824 = vpop.f32.mrb[0].mxu0
      %v2825 = vadd.f32 0.0, %v2824
      %v2826 = vpop.f32.mrb[0].mxu0
      %v2827 = vadd.f32 0.0, %v2826
      %v2828 = vpop.f32.mrb[0].mxu0
      %v2829 = vadd.f32 0.0, %v2828
      %v2830 = vpop.f32.mrb[0].mxu0
      %v2831 = vadd.f32 0.0, %v2830
      %2832 = vmatprep.mubr.bf16.mxu0 0
      %2833 = vmatmul.mubr.bf16.gmra.mrb[0].mxu0 %v558
      %v2834 = vpop.f32.mrb[0].mxu0
      %v2835 = vadd.f32 0.0, %v2834
      %v2836 = vpop.f32.mrb[0].mxu0
      %v2837 = vadd.f32 0.0, %v2836
      %v2838 = vpop.f32.mrb[0].mxu0
      %v2839 = vadd.f32 0.0, %v2838
      %v2840 = vpop.f32.mrb[0].mxu0
      %v2841 = vadd.f32 0.0, %v2840
      %2842 = vmatprep.mubr.bf16.mxu0 0
      %2843 = vmatmul.mubr.bf16.gmra.mrb[0].mxu0 %v559
      %v2844 = vpop.f32.mrb[0].mxu0
      %v2845 = vadd.f32 0.0, %v2844
      %v2846 = vpop.f32.mrb[0].mxu0
      %v2847 = vadd.f32 0.0, %v2846
      %v2848 = vpop.f32.mrb[0].mxu0
      %v2849 = vadd.f32 0.0, %v2848
      %v2850 = vpop.f32.mrb[0].mxu0
      %v2851 = vadd.f32 0.0, %v2850
      %2852 = vmatprep.mubr.bf16.mxu0 0
      %2853 = vmatmul.mubr.bf16.gmra.mrb[0].mxu0 %v560
      %v2854 = vpop.f32.mrb[0].mxu0
      %v2855 = vadd.f32 0.0, %v2854
      %v2856 = vpop.f32.mrb[0].mxu0
      %v2857 = vadd.f32 0.0, %v2856
      %v2858 = vpop.f32.mrb[0].mxu0
      %v2859 = vadd.f32 0.0, %v2858
      %v2860 = vpop.f32.mrb[0].mxu0
      %v2861 = vadd.f32 0.0, %v2860
      %2862 = vmatprep.mubr.bf16.mxu0 0
      %2863 = vmatmul.mubr.bf16.gmra.mrb[0].mxu0 %v561
      %v2864 = vpop.f32.mrb[0].mxu0
      %v2865 = vadd.f32 0.0, %v2864
      %v2866 = vpop.f32.mrb[0].mxu0
      %v2867 = vadd.f32 0.0, %v2866
      %v2868 = vpop.f32.mrb[0].mxu0
      %v2869 = vadd.f32 0.0, %v2868
      %v2870 = vpop.f32.mrb[0].mxu0
      %v2871 = vadd.f32 0.0, %v2870
      %2872 = vdwg.mxu0
      %v2873 = vld [vmem:[%s4] sm:$0xff]
      %v2874 = vld [vmem:[%s4 + $0x8] sm:$0xff]
      %v2875 = vld [vmem:[%s4 + $0x10] sm:$0xff]
      %v2876 = vld [vmem:[%s4 + $0x18] sm:$0xff]
      %v2877 = vld [vmem:[%s4 + $0x20] sm:$0xff]
      %v2878 = vld [vmem:[%s4 + $0x28] sm:$0xff]
      %v2879 = vld [vmem:[%s4 + $0x30] sm:$0xff]
      %v2880 = vld [vmem:[%s4 + $0x38] sm:$0xff]
      %v2881 = vld [vmem:[%s4 + $0x40] sm:$0xff]
      %v2882 = vld [vmem:[%s4 + $0x48] sm:$0xff]
      %v2883 = vld [vmem:[%s4 + $0x50] sm:$0xff]
      %v2884 = vld [vmem:[%s4 + $0x58] sm:$0xff]
      %v2885 = vld [vmem:[%s4 + $0x60] sm:$0xff]
      %v2886 = vld [vmem:[%s4 + $0x68] sm:$0xff]
      %v2887 = vld [vmem:[%s4 + $0x70] sm:$0xff]
      %v2888 = vld [vmem:[%s4 + $0x78] sm:$0xff]
      %v2889 = vld [vmem:[%s4 + $0x80] sm:$0xff]
      %v2890 = vld [vmem:[%s4 + $0x88] sm:$0xff]
      %v2891 = vld [vmem:[%s4 + $0x90] sm:$0xff]
      %v2892 = vld [vmem:[%s4 + $0x98] sm:$0xff]
      %v2893 = vld [vmem:[%s4 + $0xa0] sm:$0xff]
      %v2894 = vld [vmem:[%s4 + $0xa8] sm:$0xff]
      %v2895 = vld [vmem:[%s4 + $0xb0] sm:$0xff]
      %v2896 = vld [vmem:[%s4 + $0xb8] sm:$0xff]
      %v2897 = vld [vmem:[%s4 + $0xc0] sm:$0xff]
      %v2898 = vld [vmem:[%s4 + $0xc8] sm:$0xff]
      %v2899 = vld [vmem:[%s4 + $0xd0] sm:$0xff]
      %v2900 = vld [vmem:[%s4 + $0xd8] sm:$0xff]
      %v2901 = vld [vmem:[%s4 + $0xe0] sm:$0xff]
      %v2902 = vld [vmem:[%s4 + $0xe8] sm:$0xff]
      %v2903 = vld [vmem:[%s4 + $0xf0] sm:$0xff]
      %v2904 = vld [vmem:[%s4 + $0xf8] sm:$0xff]
      %v2937 = vunpack.c.l.b16 %v2873
      %v2938 = vunpack.c.h.b16 %v2873
      %v2939 = vunpack.c.l.b16 %v2874
      %v2940 = vunpack.c.h.b16 %v2874
      %v2941 = vunpack.c.l.b16 %v2875
      %v2942 = vunpack.c.h.b16 %v2875
      %v2943 = vunpack.c.l.b16 %v2876
      %v2944 = vunpack.c.h.b16 %v2876
      %v2945 = vunpack.c.l.b16 %v2877
      %v2946 = vunpack.c.h.b16 %v2877
      %v2947 = vunpack.c.l.b16 %v2878
      %v2948 = vunpack.c.h.b16 %v2878
      %v2949 = vunpack.c.l.b16 %v2879
      %v2950 = vunpack.c.h.b16 %v2879
      %v2951 = vunpack.c.l.b16 %v2880
      %v2952 = vunpack.c.h.b16 %v2880
      %v2953 = vunpack.c.l.b16 %v2881
      %v2954 = vunpack.c.h.b16 %v2881
      %v2955 = vunpack.c.l.b16 %v2882
      %v2956 = vunpack.c.h.b16 %v2882
      %v2957 = vunpack.c.l.b16 %v2883
      %v2958 = vunpack.c.h.b16 %v2883
      %v2959 = vunpack.c.l.b16 %v2884
      %v2960 = vunpack.c.h.b16 %v2884
      %v2961 = vunpack.c.l.b16 %v2885
      %v2962 = vunpack.c.h.b16 %v2885
      %v2963 = vunpack.c.l.b16 %v2886
      %v2964 = vunpack.c.h.b16 %v2886
      %v2965 = vunpack.c.l.b16 %v2887
      %v2966 = vunpack.c.h.b16 %v2887
      %v2967 = vunpack.c.l.b16 %v2888
      %v2968 = vunpack.c.h.b16 %v2888
      %v2969 = vunpack.c.l.b16 %v2889
      %v2970 = vunpack.c.h.b16 %v2889
      %v2971 = vunpack.c.l.b16 %v2890
      %v2972 = vunpack.c.h.b16 %v2890
      %v2973 = vunpack.c.l.b16 %v2891
      %v2974 = vunpack.c.h.b16 %v2891
      %v2975 = vunpack.c.l.b16 %v2892
      %v2976 = vunpack.c.h.b16 %v2892
      %v2977 = vunpack.c.l.b16 %v2893
      %v2978 = vunpack.c.h.b16 %v2893
      %v2979 = vunpack.c.l.b16 %v2894
      %v2980 = vunpack.c.h.b16 %v2894
      %v2981 = vunpack.c.l.b16 %v2895
      %v2982 = vunpack.c.h.b16 %v2895
      %v2983 = vunpack.c.l.b16 %v2896
      %v2984 = vunpack.c.h.b16 %v2896
      %v2985 = vunpack.c.l.b16 %v2897
      %v2986 = vunpack.c.h.b16 %v2897
      %v2987 = vunpack.c.l.b16 %v2898
      %v2988 = vunpack.c.h.b16 %v2898
      %v2989 = vunpack.c.l.b16 %v2899
      %v2990 = vunpack.c.h.b16 %v2899
      %v2991 = vunpack.c.l.b16 %v2900
      %v2992 = vunpack.c.h.b16 %v2900
      %v2993 = vunpack.c.l.b16 %v2901
      %v2994 = vunpack.c.h.b16 %v2901
      %v2995 = vunpack.c.l.b16 %v2902
      %v2996 = vunpack.c.h.b16 %v2902
      %v2997 = vunpack.c.l.b16 %v2903
      %v2998 = vunpack.c.h.b16 %v2903
      %v2999 = vunpack.c.l.b16 %v2904
      %v3000 = vunpack.c.h.b16 %v2904
      %v3001 = vpack.c.b16 %v2939, %v2937
      %v3002 = vpack.c.b16 %v2940, %v2938
      %v3003 = vpack.c.b16 %v2943, %v2941
      %v3004 = vpack.c.b16 %v2944, %v2942
      %v3005 = vpack.c.b16 %v2947, %v2945
      %v3006 = vpack.c.b16 %v2948, %v2946
      %v3007 = vpack.c.b16 %v2951, %v2949
      %v3008 = vpack.c.b16 %v2952, %v2950
      %v3009 = vpack.c.b16 %v2955, %v2953
      %v3010 = vpack.c.b16 %v2956, %v2954
      %v3011 = vpack.c.b16 %v2959, %v2957
      %v3012 = vpack.c.b16 %v2960, %v2958
      %v3013 = vpack.c.b16 %v2963, %v2961
      %v3014 = vpack.c.b16 %v2964, %v2962
      %v3015 = vpack.c.b16 %v2967, %v2965
      %v3016 = vpack.c.b16 %v2968, %v2966
      %v3017 = vpack.c.b16 %v2971, %v2969
      %v3018 = vpack.c.b16 %v2972, %v2970
      %v3019 = vpack.c.b16 %v2975, %v2973
      %v3020 = vpack.c.b16 %v2976, %v2974
      %v3021 = vpack.c.b16 %v2979, %v2977
      %v3022 = vpack.c.b16 %v2980, %v2978
      %v3023 = vpack.c.b16 %v2983, %v2981
      %v3024 = vpack.c.b16 %v2984, %v2982
      %v3025 = vpack.c.b16 %v2987, %v2985
      %v3026 = vpack.c.b16 %v2988, %v2986
      %v3027 = vpack.c.b16 %v2991, %v2989
      %v3028 = vpack.c.b16 %v2992, %v2990
      %v3029 = vpack.c.b16 %v2995, %v2993
      %v3030 = vpack.c.b16 %v2996, %v2994
      %v3031 = vpack.c.b16 %v2999, %v2997
      %v3032 = vpack.c.b16 %v3000, %v2998
      %3065 = vmatprep.subr.bf16.mxu0 %v3002
      %3066 = vmatpush1.bf16.msra.mxu0 %v3001
      %3067 = vmatprep.subr.bf16.mxu0 %v3004
      %3068 = vmatpush1.bf16.msra.mxu0 %v3003
      %3069 = vmatprep.subr.bf16.mxu0 %v3006
      %3070 = vmatpush1.bf16.msra.mxu0 %v3005
      %3071 = vmatprep.subr.bf16.mxu0 %v3008
      %3072 = vmatpush1.bf16.msra.mxu0 %v3007
      %3073 = vmatprep.subr.bf16.mxu0 %v3010
      %3074 = vmatpush1.bf16.msra.mxu0 %v3009
      %3075 = vmatprep.subr.bf16.mxu0 %v3012
      %3076 = vmatpush1.bf16.msra.mxu0 %v3011
      %3077 = vmatprep.subr.bf16.mxu0 %v3014
      %3078 = vmatpush1.bf16.msra.mxu0 %v3013
      %3079 = vmatprep.subr.bf16.mxu0 %v3016
      %3080 = vmatpush1.bf16.msra.mxu0 %v3015
      %3081 = vmatprep.subr.bf16.mxu0 %v3018
      %3082 = vmatpush1.bf16.msra.mxu0 %v3017
      %3083 = vmatprep.subr.bf16.mxu0 %v3020
      %3084 = vmatpush1.bf16.msra.mxu0 %v3019
      %3085 = vmatprep.subr.bf16.mxu0 %v3022
      %3086 = vmatpush1.bf16.msra.mxu0 %v3021
      %3087 = vmatprep.subr.bf16.mxu0 %v3024
      %3088 = vmatpush1.bf16.msra.mxu0 %v3023
      %3089 = vmatprep.subr.bf16.mxu0 %v3026
      %3090 = vmatpush1.bf16.msra.mxu0 %v3025
      %3091 = vmatprep.subr.bf16.mxu0 %v3028
      %3092 = vmatpush1.bf16.msra.mxu0 %v3027
      %3093 = vmatprep.subr.bf16.mxu0 %v3030
      %3094 = vmatpush1.bf16.msra.mxu0 %v3029
      %3095 = vmatprep.subr.bf16.mxu0 %v3032
      %3096 = vmatpush1.bf16.msra.mxu0 %v3031
      %3097 = vmatprep.mubr.bf16.mxu0 %v2361
      %3098 = vmatmul.mubr.bf16.gmra.mrb[0].mxu0 %v2360
      %v3099 = vpop.f32.mrb[0].mxu0
      %v3100 = vadd.f32 %v2555, %v3099
      %v3101 = vpop.f32.mrb[0].mxu0
      %v3102 = vadd.f32 %v2557, %v3101
      %v3103 = vpop.f32.mrb[0].mxu0
      %v3104 = vadd.f32 %v2559, %v3103
      %v3105 = vpop.f32.mrb[0].mxu0
      %v3106 = vadd.f32 %v2561, %v3105
      %3107 = vmatprep.mubr.bf16.mxu0 %v2363
      %3108 = vmatmul.mubr.bf16.gmra.mrb[0].mxu0 %v2362
      %v3109 = vpop.f32.mrb[0].mxu0
      %v3110 = vadd.f32 %v2565, %v3109
      %v3111 = vpop.f32.mrb[0].mxu0
      %v3112 = vadd.f32 %v2567, %v3111
      %v3113 = vpop.f32.mrb[0].mxu0
      %v3114 = vadd.f32 %v2569, %v3113
      %v3115 = vpop.f32.mrb[0].mxu0
      %v3116 = vadd.f32 %v2571, %v3115
      %3117 = vmatprep.mubr.bf16.mxu0 %v2365
      %3118 = vmatmul.mubr.bf16.gmra.mrb[0].mxu0 %v2364
      %v3119 = vpop.f32.mrb[0].mxu0
      %v3120 = vadd.f32 %v2575, %v3119
      %v3121 = vpop.f32.mrb[0].mxu0
      %v3122 = vadd.f32 %v2577, %v3121
      %v3123 = vpop.f32.mrb[0].mxu0
      %v3124 = vadd.f32 %v2579, %v3123
      %v3125 = vpop.f32.mrb[0].mxu0
      %v3126 = vadd.f32 %v2581, %v3125
      %3127 = vmatprep.mubr.bf16.mxu0 %v2367
      %3128 = vmatmul.mubr.bf16.gmra.mrb[0].mxu0 %v2366
      %v3129 = vpop.f32.mrb[0].mxu0
      %v3130 = vadd.f32 %v2585, %v3129
      %v3131 = vpop.f32.mrb[0].mxu0
      %v3132 = vadd.f32 %v2587, %v3131
      %v3133 = vpop.f32.mrb[0].mxu0
      %v3134 = vadd.f32 %v2589, %v3133
      %v3135 = vpop.f32.mrb[0].mxu0
      %v3136 = vadd.f32 %v2591, %v3135
      %3137 = vmatprep.mubr.bf16.mxu0 %v2369
      %3138 = vmatmul.mubr.bf16.gmra.mrb[0].mxu0 %v2368
      %v3139 = vpop.f32.mrb[0].mxu0
      %v3140 = vadd.f32 %v2595, %v3139
      %v3141 = vpop.f32.mrb[0].mxu0
      %v3142 = vadd.f32 %v2597, %v3141
      %v3143 = vpop.f32.mrb[0].mxu0
      %v3144 = vadd.f32 %v2599, %v3143
      %v3145 = vpop.f32.mrb[0].mxu0
      %v3146 = vadd.f32 %v2601, %v3145
      %3147 = vmatprep.mubr.bf16.mxu0 %v2371
      %3148 = vmatmul.mubr.bf16.gmra.mrb[0].mxu0 %v2370
      %v3149 = vpop.f32.mrb[0].mxu0
      %v3150 = vadd.f32 %v2605, %v3149
      %v3151 = vpop.f32.mrb[0].mxu0
      %v3152 = vadd.f32 %v2607, %v3151
      %v3153 = vpop.f32.mrb[0].mxu0
      %v3154 = vadd.f32 %v2609, %v3153
      %v3155 = vpop.f32.mrb[0].mxu0
      %v3156 = vadd.f32 %v2611, %v3155
      %3157 = vmatprep.mubr.bf16.mxu0 %v2373
      %3158 = vmatmul.mubr.bf16.gmra.mrb[0].mxu0 %v2372
      %v3159 = vpop.f32.mrb[0].mxu0
      %v3160 = vadd.f32 %v2615, %v3159
      %v3161 = vpop.f32.mrb[0].mxu0
      %v3162 = vadd.f32 %v2617, %v3161
      %v3163 = vpop.f32.mrb[0].mxu0
      %v3164 = vadd.f32 %v2619, %v3163
      %v3165 = vpop.f32.mrb[0].mxu0
      %v3166 = vadd.f32 %v2621, %v3165
      %3167 = vmatprep.mubr.bf16.mxu0 %v2375
      %3168 = vmatmul.mubr.bf16.gmra.mrb[0].mxu0 %v2374
      %v3169 = vpop.f32.mrb[0].mxu0
      %v3170 = vadd.f32 %v2625, %v3169
      %v3171 = vpop.f32.mrb[0].mxu0
      %v3172 = vadd.f32 %v2627, %v3171
      %v3173 = vpop.f32.mrb[0].mxu0
      %v3174 = vadd.f32 %v2629, %v3173
      %v3175 = vpop.f32.mrb[0].mxu0
      %v3176 = vadd.f32 %v2631, %v3175
      %3177 = vmatprep.mubr.bf16.mxu0 %v2377
      %3178 = vmatmul.mubr.bf16.gmra.mrb[0].mxu0 %v2376
      %v3179 = vpop.f32.mrb[0].mxu0
      %v3180 = vadd.f32 %v2635, %v3179
      %v3181 = vpop.f32.mrb[0].mxu0
      %v3182 = vadd.f32 %v2637, %v3181
      %v3183 = vpop.f32.mrb[0].mxu0
      %v3184 = vadd.f32 %v2639, %v3183
      %v3185 = vpop.f32.mrb[0].mxu0
      %v3186 = vadd.f32 %v2641, %v3185
      %3187 = vmatprep.mubr.bf16.mxu0 %v2379
      %3188 = vmatmul.mubr.bf16.gmra.mrb[0].mxu0 %v2378
      %v3189 = vpop.f32.mrb[0].mxu0
      %v3190 = vadd.f32 %v2645, %v3189
      %v3191 = vpop.f32.mrb[0].mxu0
      %v3192 = vadd.f32 %v2647, %v3191
      %v3193 = vpop.f32.mrb[0].mxu0
      %v3194 = vadd.f32 %v2649, %v3193
      %v3195 = vpop.f32.mrb[0].mxu0
      %v3196 = vadd.f32 %v2651, %v3195
      %3197 = vmatprep.mubr.bf16.mxu0 %v2381
      %3198 = vmatmul.mubr.bf16.gmra.mrb[0].mxu0 %v2380
      %v3199 = vpop.f32.mrb[0].mxu0
      %v3200 = vadd.f32 %v2655, %v3199
      %v3201 = vpop.f32.mrb[0].mxu0
      %v3202 = vadd.f32 %v2657, %v3201
      %v3203 = vpop.f32.mrb[0].mxu0
      %v3204 = vadd.f32 %v2659, %v3203
      %v3205 = vpop.f32.mrb[0].mxu0
      %v3206 = vadd.f32 %v2661, %v3205
      %3207 = vmatprep.mubr.bf16.mxu0 %v2383
      %3208 = vmatmul.mubr.bf16.gmra.mrb[0].mxu0 %v2382
      %v3209 = vpop.f32.mrb[0].mxu0
      %v3210 = vadd.f32 %v2665, %v3209
      %v3211 = vpop.f32.mrb[0].mxu0
      %v3212 = vadd.f32 %v2667, %v3211
      %v3213 = vpop.f32.mrb[0].mxu0
      %v3214 = vadd.f32 %v2669, %v3213
      %v3215 = vpop.f32.mrb[0].mxu0
      %v3216 = vadd.f32 %v2671, %v3215
      %3217 = vmatprep.mubr.bf16.mxu0 %v2385
      %3218 = vmatmul.mubr.bf16.gmra.mrb[0].mxu0 %v2384
      %v3219 = vpop.f32.mrb[0].mxu0
      %v3220 = vadd.f32 %v2675, %v3219
      %v3221 = vpop.f32.mrb[0].mxu0
      %v3222 = vadd.f32 %v2677, %v3221
      %v3223 = vpop.f32.mrb[0].mxu0
      %v3224 = vadd.f32 %v2679, %v3223
      %v3225 = vpop.f32.mrb[0].mxu0
      %v3226 = vadd.f32 %v2681, %v3225
      %3227 = vmatprep.mubr.bf16.mxu0 %v2387
      %3228 = vmatmul.mubr.bf16.gmra.mrb[0].mxu0 %v2386
      %v3229 = vpop.f32.mrb[0].mxu0
      %v3230 = vadd.f32 %v2685, %v3229
      %v3231 = vpop.f32.mrb[0].mxu0
      %v3232 = vadd.f32 %v2687, %v3231
      %v3233 = vpop.f32.mrb[0].mxu0
      %v3234 = vadd.f32 %v2689, %v3233
      %v3235 = vpop.f32.mrb[0].mxu0
      %v3236 = vadd.f32 %v2691, %v3235
      %3237 = vmatprep.mubr.bf16.mxu0 %v2389
      %3238 = vmatmul.mubr.bf16.gmra.mrb[0].mxu0 %v2388
      %v3239 = vpop.f32.mrb[0].mxu0
      %v3240 = vadd.f32 %v2695, %v3239
      %v3241 = vpop.f32.mrb[0].mxu0
      %v3242 = vadd.f32 %v2697, %v3241
      %v3243 = vpop.f32.mrb[0].mxu0
      %v3244 = vadd.f32 %v2699, %v3243
      %v3245 = vpop.f32.mrb[0].mxu0
      %v3246 = vadd.f32 %v2701, %v3245
      %3247 = vmatprep.mubr.bf16.mxu0 %v2391
      %3248 = vmatmul.mubr.bf16.gmra.mrb[0].mxu0 %v2390
      %v3249 = vpop.f32.mrb[0].mxu0
      %v3250 = vadd.f32 %v2705, %v3249
      %v3251 = vpop.f32.mrb[0].mxu0
      %v3252 = vadd.f32 %v2707, %v3251
      %v3253 = vpop.f32.mrb[0].mxu0
      %v3254 = vadd.f32 %v2709, %v3253
      %v3255 = vpop.f32.mrb[0].mxu0
      %v3256 = vadd.f32 %v2711, %v3255
      %3257 = vmatprep.mubr.bf16.mxu0 %v2393
      %3258 = vmatmul.mubr.bf16.gmra.mrb[0].mxu0 %v2392
      %v3259 = vpop.f32.mrb[0].mxu0
      %v3260 = vadd.f32 %v2715, %v3259
      %v3261 = vpop.f32.mrb[0].mxu0
      %v3262 = vadd.f32 %v2717, %v3261
      %v3263 = vpop.f32.mrb[0].mxu0
      %v3264 = vadd.f32 %v2719, %v3263
      %v3265 = vpop.f32.mrb[0].mxu0
      %v3266 = vadd.f32 %v2721, %v3265
      %3267 = vmatprep.mubr.bf16.mxu0 %v2395
      %3268 = vmatmul.mubr.bf16.gmra.mrb[0].mxu0 %v2394
      %v3269 = vpop.f32.mrb[0].mxu0
      %v3270 = vadd.f32 %v2725, %v3269
      %v3271 = vpop.f32.mrb[0].mxu0
      %v3272 = vadd.f32 %v2727, %v3271
      %v3273 = vpop.f32.mrb[0].mxu0
      %v3274 = vadd.f32 %v2729, %v3273
      %v3275 = vpop.f32.mrb[0].mxu0
      %v3276 = vadd.f32 %v2731, %v3275
      %3277 = vmatprep.mubr.bf16.mxu0 %v2397
      %3278 = vmatmul.mubr.bf16.gmra.mrb[0].mxu0 %v2396
      %v3279 = vpop.f32.mrb[0].mxu0
      %v3280 = vadd.f32 %v2735, %v3279
      %v3281 = vpop.f32.mrb[0].mxu0
      %v3282 = vadd.f32 %v2737, %v3281
      %v3283 = vpop.f32.mrb[0].mxu0
      %v3284 = vadd.f32 %v2739, %v3283
      %v3285 = vpop.f32.mrb[0].mxu0
      %v3286 = vadd.f32 %v2741, %v3285
      %3287 = vmatprep.mubr.bf16.mxu0 %v2399
      %3288 = vmatmul.mubr.bf16.gmra.mrb[0].mxu0 %v2398
      %v3289 = vpop.f32.mrb[0].mxu0
      %v3290 = vadd.f32 %v2745, %v3289
      %v3291 = vpop.f32.mrb[0].mxu0
      %v3292 = vadd.f32 %v2747, %v3291
      %v3293 = vpop.f32.mrb[0].mxu0
      %v3294 = vadd.f32 %v2749, %v3293
      %v3295 = vpop.f32.mrb[0].mxu0
      %v3296 = vadd.f32 %v2751, %v3295
      %3297 = vmatprep.mubr.bf16.mxu0 %v2401
      %3298 = vmatmul.mubr.bf16.gmra.mrb[0].mxu0 %v2400
      %v3299 = vpop.f32.mrb[0].mxu0
      %v3300 = vadd.f32 %v2755, %v3299
      %v3301 = vpop.f32.mrb[0].mxu0
      %v3302 = vadd.f32 %v2757, %v3301
      %v3303 = vpop.f32.mrb[0].mxu0
      %v3304 = vadd.f32 %v2759, %v3303
      %v3305 = vpop.f32.mrb[0].mxu0
      %v3306 = vadd.f32 %v2761, %v3305
      %3307 = vmatprep.mubr.bf16.mxu0 %v2403
      %3308 = vmatmul.mubr.bf16.gmra.mrb[0].mxu0 %v2402
      %v3309 = vpop.f32.mrb[0].mxu0
      %v3310 = vadd.f32 %v2765, %v3309
      %v3311 = vpop.f32.mrb[0].mxu0
      %v3312 = vadd.f32 %v2767, %v3311
      %v3313 = vpop.f32.mrb[0].mxu0
      %v3314 = vadd.f32 %v2769, %v3313
      %v3315 = vpop.f32.mrb[0].mxu0
      %v3316 = vadd.f32 %v2771, %v3315
      %3317 = vmatprep.mubr.bf16.mxu0 %v2405
      %3318 = vmatmul.mubr.bf16.gmra.mrb[0].mxu0 %v2404
      %v3319 = vpop.f32.mrb[0].mxu0
      %v3320 = vadd.f32 %v2775, %v3319
      %v3321 = vpop.f32.mrb[0].mxu0
      %v3322 = vadd.f32 %v2777, %v3321
      %v3323 = vpop.f32.mrb[0].mxu0
      %v3324 = vadd.f32 %v2779, %v3323
      %v3325 = vpop.f32.mrb[0].mxu0
      %v3326 = vadd.f32 %v2781, %v3325
      %3327 = vmatprep.mubr.bf16.mxu0 %v2407
      %3328 = vmatmul.mubr.bf16.gmra.mrb[0].mxu0 %v2406
      %v3329 = vpop.f32.mrb[0].mxu0
      %v3330 = vadd.f32 %v2785, %v3329
      %v3331 = vpop.f32.mrb[0].mxu0
      %v3332 = vadd.f32 %v2787, %v3331
      %v3333 = vpop.f32.mrb[0].mxu0
      %v3334 = vadd.f32 %v2789, %v3333
      %v3335 = vpop.f32.mrb[0].mxu0
      %v3336 = vadd.f32 %v2791, %v3335
      %3337 = vmatprep.mubr.bf16.mxu0 %v2409
      %3338 = vmatmul.mubr.bf16.gmra.mrb[0].mxu0 %v2408
      %v3339 = vpop.f32.mrb[0].mxu0
      %v3340 = vadd.f32 %v2795, %v3339
      %v3341 = vpop.f32.mrb[0].mxu0
      %v3342 = vadd.f32 %v2797, %v3341
      %v3343 = vpop.f32.mrb[0].mxu0
      %v3344 = vadd.f32 %v2799, %v3343
      %v3345 = vpop.f32.mrb[0].mxu0
      %v3346 = vadd.f32 %v2801, %v3345
      %3347 = vmatprep.mubr.bf16.mxu0 %v2411
      %3348 = vmatmul.mubr.bf16.gmra.mrb[0].mxu0 %v2410
      %v3349 = vpop.f32.mrb[0].mxu0
      %v3350 = vadd.f32 %v2805, %v3349
      %v3351 = vpop.f32.mrb[0].mxu0
      %v3352 = vadd.f32 %v2807, %v3351
      %v3353 = vpop.f32.mrb[0].mxu0
      %v3354 = vadd.f32 %v2809, %v3353
      %v3355 = vpop.f32.mrb[0].mxu0
      %v3356 = vadd.f32 %v2811, %v3355
      %3357 = vmatprep.mubr.bf16.mxu0 %v2413
      %3358 = vmatmul.mubr.bf16.gmra.mrb[0].mxu0 %v2412
      %v3359 = vpop.f32.mrb[0].mxu0
      %v3360 = vadd.f32 %v2815, %v3359
      %v3361 = vpop.f32.mrb[0].mxu0
      %v3362 = vadd.f32 %v2817, %v3361
      %v3363 = vpop.f32.mrb[0].mxu0
      %v3364 = vadd.f32 %v2819, %v3363
      %v3365 = vpop.f32.mrb[0].mxu0
      %v3366 = vadd.f32 %v2821, %v3365
      %3367 = vmatprep.mubr.bf16.mxu0 %v2415
      %3368 = vmatmul.mubr.bf16.gmra.mrb[0].mxu0 %v2414
      %v3369 = vpop.f32.mrb[0].mxu0
      %v3370 = vadd.f32 %v2825, %v3369
      %v3371 = vpop.f32.mrb[0].mxu0
      %v3372 = vadd.f32 %v2827, %v3371
      %v3373 = vpop.f32.mrb[0].mxu0
      %v3374 = vadd.f32 %v2829, %v3373
      %v3375 = vpop.f32.mrb[0].mxu0
      %v3376 = vadd.f32 %v2831, %v3375
      %3377 = vmatprep.mubr.bf16.mxu0 %v2417
      %3378 = vmatmul.mubr.bf16.gmra.mrb[0].mxu0 %v2416
      %v3379 = vpop.f32.mrb[0].mxu0
      %v3380 = vadd.f32 %v2835, %v3379
      %v3381 = vpop.f32.mrb[0].mxu0
      %v3382 = vadd.f32 %v2837, %v3381
      %v3383 = vpop.f32.mrb[0].mxu0
      %v3384 = vadd.f32 %v2839, %v3383
      %v3385 = vpop.f32.mrb[0].mxu0
      %v3386 = vadd.f32 %v2841, %v3385
      %3387 = vmatprep.mubr.bf16.mxu0 %v2419
      %3388 = vmatmul.mubr.bf16.gmra.mrb[0].mxu0 %v2418
      %v3389 = vpop.f32.mrb[0].mxu0
      %v3390 = vadd.f32 %v2845, %v3389
      %v3391 = vpop.f32.mrb[0].mxu0
      %v3392 = vadd.f32 %v2847, %v3391
      %v3393 = vpop.f32.mrb[0].mxu0
      %v3394 = vadd.f32 %v2849, %v3393
      %v3395 = vpop.f32.mrb[0].mxu0
      %v3396 = vadd.f32 %v2851, %v3395
      %3397 = vmatprep.mubr.bf16.mxu0 %v2421
      %3398 = vmatmul.mubr.bf16.gmra.mrb[0].mxu0 %v2420
      %v3399 = vpop.f32.mrb[0].mxu0
      %v3400 = vadd.f32 %v2855, %v3399
      %v3401 = vpop.f32.mrb[0].mxu0
      %v3402 = vadd.f32 %v2857, %v3401
      %v3403 = vpop.f32.mrb[0].mxu0
      %v3404 = vadd.f32 %v2859, %v3403
      %v3405 = vpop.f32.mrb[0].mxu0
      %v3406 = vadd.f32 %v2861, %v3405
      %3407 = vmatprep.mubr.bf16.mxu0 %v2423
      %3408 = vmatmul.mubr.bf16.gmra.mrb[0].mxu0 %v2422
      %v3409 = vpop.f32.mrb[0].mxu0
      %v3410 = vadd.f32 %v2865, %v3409
      %v3411 = vpop.f32.mrb[0].mxu0
      %v3412 = vadd.f32 %v2867, %v3411
      %v3413 = vpop.f32.mrb[0].mxu0
      %v3414 = vadd.f32 %v2869, %v3413
      %v3415 = vpop.f32.mrb[0].mxu0
      %v3416 = vadd.f32 %v2871, %v3415
      %3417 = vdwg.mxu0
      %v3418 = vlaneseq
      %v3419 = vshrl.u32 %v3418, 7
      %v3420 = vsub.s32 2, %v3419
      %v3421 = vrot.slane %v374, %v3420
      %v3422 = vlaneseq
      %v3423 = vshrl.u32 %v3422, 7
      %v3424 = vsub.s32 2, %v3423
      %v3425 = vrot.slane %v375, %v3424
      %v3426 = vadd.f32 %v3100, %v3421
      %v3427 = vadd.f32 %v3102, %v3425
      %v3428 = vadd.f32 %v3104, %v3421
      %v3429 = vadd.f32 %v3106, %v3425
      %v3430 = vadd.f32 %v3110, %v3421
      %v3431 = vadd.f32 %v3112, %v3425
      %v3432 = vadd.f32 %v3114, %v3421
      %v3433 = vadd.f32 %v3116, %v3425
      %v3434 = vadd.f32 %v3120, %v3421
      %v3435 = vadd.f32 %v3122, %v3425
      %v3436 = vadd.f32 %v3124, %v3421
      %v3437 = vadd.f32 %v3126, %v3425
      %v3438 = vadd.f32 %v3130, %v3421
      %v3439 = vadd.f32 %v3132, %v3425
      %v3440 = vadd.f32 %v3134, %v3421
      %v3441 = vadd.f32 %v3136, %v3425
      %v3442 = vadd.f32 %v3140, %v3421
      %v3443 = vadd.f32 %v3142, %v3425
      %v3444 = vadd.f32 %v3144, %v3421
      %v3445 = vadd.f32 %v3146, %v3425
      %v3446 = vadd.f32 %v3150, %v3421
      %v3447 = vadd.f32 %v3152, %v3425
      %v3448 = vadd.f32 %v3154, %v3421
      %v3449 = vadd.f32 %v3156, %v3425
      %v3450 = vadd.f32 %v3160, %v3421
      %v3451 = vadd.f32 %v3162, %v3425
      %v3452 = vadd.f32 %v3164, %v3421
      %v3453 = vadd.f32 %v3166, %v3425
      %v3454 = vadd.f32 %v3170, %v3421
      %v3455 = vadd.f32 %v3172, %v3425
      %v3456 = vadd.f32 %v3174, %v3421
      %v3457 = vadd.f32 %v3176, %v3425
      %v3458 = vadd.f32 %v3180, %v3421
      %v3459 = vadd.f32 %v3182, %v3425
      %v3460 = vadd.f32 %v3184, %v3421
      %v3461 = vadd.f32 %v3186, %v3425
      %v3462 = vadd.f32 %v3190, %v3421
      %v3463 = vadd.f32 %v3192, %v3425
      %v3464 = vadd.f32 %v3194, %v3421
      %v3465 = vadd.f32 %v3196, %v3425
      %v3466 = vadd.f32 %v3200, %v3421
      %v3467 = vadd.f32 %v3202, %v3425
      %v3468 = vadd.f32 %v3204, %v3421
      %v3469 = vadd.f32 %v3206, %v3425
      %v3470 = vadd.f32 %v3210, %v3421
      %v3471 = vadd.f32 %v3212, %v3425
      %v3472 = vadd.f32 %v3214, %v3421
      %v3473 = vadd.f32 %v3216, %v3425
      %v3474 = vadd.f32 %v3220, %v3421
      %v3475 = vadd.f32 %v3222, %v3425
      %v3476 = vadd.f32 %v3224, %v3421
      %v3477 = vadd.f32 %v3226, %v3425
      %v3478 = vadd.f32 %v3230, %v3421
      %v3479 = vadd.f32 %v3232, %v3425
      %v3480 = vadd.f32 %v3234, %v3421
      %v3481 = vadd.f32 %v3236, %v3425
      %v3482 = vadd.f32 %v3240, %v3421
      %v3483 = vadd.f32 %v3242, %v3425
      %v3484 = vadd.f32 %v3244, %v3421
      %v3485 = vadd.f32 %v3246, %v3425
      %v3486 = vadd.f32 %v3250, %v3421
      %v3487 = vadd.f32 %v3252, %v3425
      %v3488 = vadd.f32 %v3254, %v3421
      %v3489 = vadd.f32 %v3256, %v3425
      %v3490 = vadd.f32 %v3260, %v3421
      %v3491 = vadd.f32 %v3262, %v3425
      %v3492 = vadd.f32 %v3264, %v3421
      %v3493 = vadd.f32 %v3266, %v3425
      %v3494 = vadd.f32 %v3270, %v3421
      %v3495 = vadd.f32 %v3272, %v3425
      %v3496 = vadd.f32 %v3274, %v3421
      %v3497 = vadd.f32 %v3276, %v3425
      %v3498 = vadd.f32 %v3280, %v3421
      %v3499 = vadd.f32 %v3282, %v3425
      %v3500 = vadd.f32 %v3284, %v3421
      %v3501 = vadd.f32 %v3286, %v3425
      %v3502 = vadd.f32 %v3290, %v3421
      %v3503 = vadd.f32 %v3292, %v3425
      %v3504 = vadd.f32 %v3294, %v3421
      %v3505 = vadd.f32 %v3296, %v3425
      %v3506 = vadd.f32 %v3300, %v3421
      %v3507 = vadd.f32 %v3302, %v3425
      %v3508 = vadd.f32 %v3304, %v3421
      %v3509 = vadd.f32 %v3306, %v3425
      %v3510 = vadd.f32 %v3310, %v3421
      %v3511 = vadd.f32 %v3312, %v3425
      %v3512 = vadd.f32 %v3314, %v3421
      %v3513 = vadd.f32 %v3316, %v3425
      %v3514 = vadd.f32 %v3320, %v3421
      %v3515 = vadd.f32 %v3322, %v3425
      %v3516 = vadd.f32 %v3324, %v3421
      %v3517 = vadd.f32 %v3326, %v3425
      %v3518 = vadd.f32 %v3330, %v3421
      %v3519 = vadd.f32 %v3332, %v3425
      %v3520 = vadd.f32 %v3334, %v3421
      %v3521 = vadd.f32 %v3336, %v3425
      %v3522 = vadd.f32 %v3340, %v3421
      %v3523 = vadd.f32 %v3342, %v3425
      %v3524 = vadd.f32 %v3344, %v3421
      %v3525 = vadd.f32 %v3346, %v3425
      %v3526 = vadd.f32 %v3350, %v3421
      %v3527 = vadd.f32 %v3352, %v3425
      %v3528 = vadd.f32 %v3354, %v3421
      %v3529 = vadd.f32 %v3356, %v3425
      %v3530 = vadd.f32 %v3360, %v3421
      %v3531 = vadd.f32 %v3362, %v3425
      %v3532 = vadd.f32 %v3364, %v3421
      %v3533 = vadd.f32 %v3366, %v3425
      %v3534 = vadd.f32 %v3370, %v3421
      %v3535 = vadd.f32 %v3372, %v3425
      %v3536 = vadd.f32 %v3374, %v3421
      %v3537 = vadd.f32 %v3376, %v3425
      %v3538 = vadd.f32 %v3380, %v3421
      %v3539 = vadd.f32 %v3382, %v3425
      %v3540 = vadd.f32 %v3384, %v3421
      %v3541 = vadd.f32 %v3386, %v3425
      %v3542 = vadd.f32 %v3390, %v3421
      %v3543 = vadd.f32 %v3392, %v3425
      %v3544 = vadd.f32 %v3394, %v3421
      %v3545 = vadd.f32 %v3396, %v3425
      %v3546 = vadd.f32 %v3400, %v3421
      %v3547 = vadd.f32 %v3402, %v3425
      %v3548 = vadd.f32 %v3404, %v3421
      %v3549 = vadd.f32 %v3406, %v3425
      %v3550 = vadd.f32 %v3410, %v3421
      %v3551 = vadd.f32 %v3412, %v3425
      %v3552 = vadd.f32 %v3414, %v3421
      %v3553 = vadd.f32 %v3416, %v3425
      %v3554 = vmax.f32 %v3426, 0.0
      %v3555 = vmax.f32 %v3427, 0.0
      %v3556 = vmax.f32 %v3428, 0.0
      %v3557 = vmax.f32 %v3429, 0.0
      %v3558 = vmax.f32 %v3430, 0.0
      %v3559 = vmax.f32 %v3431, 0.0
      %v3560 = vmax.f32 %v3432, 0.0
      %v3561 = vmax.f32 %v3433, 0.0
      %v3562 = vmax.f32 %v3434, 0.0
      %v3563 = vmax.f32 %v3435, 0.0
      %v3564 = vmax.f32 %v3436, 0.0
      %v3565 = vmax.f32 %v3437, 0.0
      %v3566 = vmax.f32 %v3438, 0.0
      %v3567 = vmax.f32 %v3439, 0.0
      %v3568 = vmax.f32 %v3440, 0.0
      %v3569 = vmax.f32 %v3441, 0.0
      %v3570 = vmax.f32 %v3442, 0.0
      %v3571 = vmax.f32 %v3443, 0.0
      %v3572 = vmax.f32 %v3444, 0.0
      %v3573 = vmax.f32 %v3445, 0.0
      %v3574 = vmax.f32 %v3446, 0.0
      %v3575 = vmax.f32 %v3447, 0.0
      %v3576 = vmax.f32 %v3448, 0.0
      %v3577 = vmax.f32 %v3449, 0.0
      %v3578 = vmax.f32 %v3450, 0.0
      %v3579 = vmax.f32 %v3451, 0.0
      %v3580 = vmax.f32 %v3452, 0.0
      %v3581 = vmax.f32 %v3453, 0.0
      %v3582 = vmax.f32 %v3454, 0.0
      %v3583 = vmax.f32 %v3455, 0.0
      %v3584 = vmax.f32 %v3456, 0.0
      %v3585 = vmax.f32 %v3457, 0.0
      %v3586 = vmax.f32 %v3458, 0.0
      %v3587 = vmax.f32 %v3459, 0.0
      %v3588 = vmax.f32 %v3460, 0.0
      %v3589 = vmax.f32 %v3461, 0.0
      %v3590 = vmax.f32 %v3462, 0.0
      %v3591 = vmax.f32 %v3463, 0.0
      %v3592 = vmax.f32 %v3464, 0.0
      %v3593 = vmax.f32 %v3465, 0.0
      %v3594 = vmax.f32 %v3466, 0.0
      %v3595 = vmax.f32 %v3467, 0.0
      %v3596 = vmax.f32 %v3468, 0.0
      %v3597 = vmax.f32 %v3469, 0.0
      %v3598 = vmax.f32 %v3470, 0.0
      %v3599 = vmax.f32 %v3471, 0.0
      %v3600 = vmax.f32 %v3472, 0.0
      %v3601 = vmax.f32 %v3473, 0.0
      %v3602 = vmax.f32 %v3474, 0.0
      %v3603 = vmax.f32 %v3475, 0.0
      %v3604 = vmax.f32 %v3476, 0.0
      %v3605 = vmax.f32 %v3477, 0.0
      %v3606 = vmax.f32 %v3478, 0.0
      %v3607 = vmax.f32 %v3479, 0.0
      %v3608 = vmax.f32 %v3480, 0.0
      %v3609 = vmax.f32 %v3481, 0.0
      %v3610 = vmax.f32 %v3482, 0.0
      %v3611 = vmax.f32 %v3483, 0.0
      %v3612 = vmax.f32 %v3484, 0.0
      %v3613 = vmax.f32 %v3485, 0.0
      %v3614 = vmax.f32 %v3486, 0.0
      %v3615 = vmax.f32 %v3487, 0.0
      %v3616 = vmax.f32 %v3488, 0.0
      %v3617 = vmax.f32 %v3489, 0.0
      %v3618 = vmax.f32 %v3490, 0.0
      %v3619 = vmax.f32 %v3491, 0.0
      %v3620 = vmax.f32 %v3492, 0.0
      %v3621 = vmax.f32 %v3493, 0.0
      %v3622 = vmax.f32 %v3494, 0.0
      %v3623 = vmax.f32 %v3495, 0.0
      %v3624 = vmax.f32 %v3496, 0.0
      %v3625 = vmax.f32 %v3497, 0.0
      %v3626 = vmax.f32 %v3498, 0.0
      %v3627 = vmax.f32 %v3499, 0.0
      %v3628 = vmax.f32 %v3500, 0.0
      %v3629 = vmax.f32 %v3501, 0.0
      %v3630 = vmax.f32 %v3502, 0.0
      %v3631 = vmax.f32 %v3503, 0.0
      %v3632 = vmax.f32 %v3504, 0.0
      %v3633 = vmax.f32 %v3505, 0.0
      %v3634 = vmax.f32 %v3506, 0.0
      %v3635 = vmax.f32 %v3507, 0.0
      %v3636 = vmax.f32 %v3508, 0.0
      %v3637 = vmax.f32 %v3509, 0.0
      %v3638 = vmax.f32 %v3510, 0.0
      %v3639 = vmax.f32 %v3511, 0.0
      %v3640 = vmax.f32 %v3512, 0.0
      %v3641 = vmax.f32 %v3513, 0.0
      %v3642 = vmax.f32 %v3514, 0.0
      %v3643 = vmax.f32 %v3515, 0.0
      %v3644 = vmax.f32 %v3516, 0.0
      %v3645 = vmax.f32 %v3517, 0.0
      %v3646 = vmax.f32 %v3518, 0.0
      %v3647 = vmax.f32 %v3519, 0.0
      %v3648 = vmax.f32 %v3520, 0.0
      %v3649 = vmax.f32 %v3521, 0.0
      %v3650 = vmax.f32 %v3522, 0.0
      %v3651 = vmax.f32 %v3523, 0.0
      %v3652 = vmax.f32 %v3524, 0.0
      %v3653 = vmax.f32 %v3525, 0.0
      %v3654 = vmax.f32 %v3526, 0.0
      %v3655 = vmax.f32 %v3527, 0.0
      %v3656 = vmax.f32 %v3528, 0.0
      %v3657 = vmax.f32 %v3529, 0.0
      %v3658 = vmax.f32 %v3530, 0.0
      %v3659 = vmax.f32 %v3531, 0.0
      %v3660 = vmax.f32 %v3532, 0.0
      %v3661 = vmax.f32 %v3533, 0.0
      %v3662 = vmax.f32 %v3534, 0.0
      %v3663 = vmax.f32 %v3535, 0.0
      %v3664 = vmax.f32 %v3536, 0.0
      %v3665 = vmax.f32 %v3537, 0.0
      %v3666 = vmax.f32 %v3538, 0.0
      %v3667 = vmax.f32 %v3539, 0.0
      %v3668 = vmax.f32 %v3540, 0.0
      %v3669 = vmax.f32 %v3541, 0.0
      %v3670 = vmax.f32 %v3542, 0.0
      %v3671 = vmax.f32 %v3543, 0.0
      %v3672 = vmax.f32 %v3544, 0.0
      %v3673 = vmax.f32 %v3545, 0.0
      %v3674 = vmax.f32 %v3546, 0.0
      %v3675 = vmax.f32 %v3547, 0.0
      %v3676 = vmax.f32 %v3548, 0.0
      %v3677 = vmax.f32 %v3549, 0.0
      %v3678 = vmax.f32 %v3550, 0.0
      %v3679 = vmax.f32 %v3551, 0.0
      %v3680 = vmax.f32 %v3552, 0.0
      %v3681 = vmax.f32 %v3553, 0.0
      %v3682 = vpack.c.bf16 %v3556, %v3554
      %v3683 = vpack.c.bf16 %v3557, %v3555
      %v3684 = vpack.c.bf16 %v3560, %v3558
      %v3685 = vpack.c.bf16 %v3561, %v3559
      %v3686 = vpack.c.bf16 %v3564, %v3562
      %v3687 = vpack.c.bf16 %v3565, %v3563
      %v3688 = vpack.c.bf16 %v3568, %v3566
      %v3689 = vpack.c.bf16 %v3569, %v3567
      %v3690 = vpack.c.bf16 %v3572, %v3570
      %v3691 = vpack.c.bf16 %v3573, %v3571
      %v3692 = vpack.c.bf16 %v3576, %v3574
      %v3693 = vpack.c.bf16 %v3577, %v3575
      %v3694 = vpack.c.bf16 %v3580, %v3578
      %v3695 = vpack.c.bf16 %v3581, %v3579
      %v3696 = vpack.c.bf16 %v3584, %v3582
      %v3697 = vpack.c.bf16 %v3585, %v3583
      %v3698 = vpack.c.bf16 %v3588, %v3586
      %v3699 = vpack.c.bf16 %v3589, %v3587
      %v3700 = vpack.c.bf16 %v3592, %v3590
      %v3701 = vpack.c.bf16 %v3593, %v3591
      %v3702 = vpack.c.bf16 %v3596, %v3594
      %v3703 = vpack.c.bf16 %v3597, %v3595
      %v3704 = vpack.c.bf16 %v3600, %v3598
      %v3705 = vpack.c.bf16 %v3601, %v3599
      %v3706 = vpack.c.bf16 %v3604, %v3602
      %v3707 = vpack.c.bf16 %v3605, %v3603
      %v3708 = vpack.c.bf16 %v3608, %v3606
      %v3709 = vpack.c.bf16 %v3609, %v3607
      %v3710 = vpack.c.bf16 %v3612, %v3610
      %v3711 = vpack.c.bf16 %v3613, %v3611
      %v3712 = vpack.c.bf16 %v3616, %v3614
      %v3713 = vpack.c.bf16 %v3617, %v3615
      %v3714 = vpack.c.bf16 %v3620, %v3618
      %v3715 = vpack.c.bf16 %v3621, %v3619
      %v3716 = vpack.c.bf16 %v3624, %v3622
      %v3717 = vpack.c.bf16 %v3625, %v3623
      %v3718 = vpack.c.bf16 %v3628, %v3626
      %v3719 = vpack.c.bf16 %v3629, %v3627
      %v3720 = vpack.c.bf16 %v3632, %v3630
      %v3721 = vpack.c.bf16 %v3633, %v3631
      %v3722 = vpack.c.bf16 %v3636, %v3634
      %v3723 = vpack.c.bf16 %v3637, %v3635
      %v3724 = vpack.c.bf16 %v3640, %v3638
      %v3725 = vpack.c.bf16 %v3641, %v3639
      %v3726 = vpack.c.bf16 %v3644, %v3642
      %v3727 = vpack.c.bf16 %v3645, %v3643
      %v3728 = vpack.c.bf16 %v3648, %v3646
      %v3729 = vpack.c.bf16 %v3649, %v3647
      %v3730 = vpack.c.bf16 %v3652, %v3650
      %v3731 = vpack.c.bf16 %v3653, %v3651
      %v3732 = vpack.c.bf16 %v3656, %v3654
      %v3733 = vpack.c.bf16 %v3657, %v3655
      %v3734 = vpack.c.bf16 %v3660, %v3658
      %v3735 = vpack.c.bf16 %v3661, %v3659
      %v3736 = vpack.c.bf16 %v3664, %v3662
      %v3737 = vpack.c.bf16 %v3665, %v3663
      %v3738 = vpack.c.bf16 %v3668, %v3666
      %v3739 = vpack.c.bf16 %v3669, %v3667
      %v3740 = vpack.c.bf16 %v3672, %v3670
      %v3741 = vpack.c.bf16 %v3673, %v3671
      %v3742 = vpack.c.bf16 %v3676, %v3674
      %v3743 = vpack.c.bf16 %v3677, %v3675
      %v3744 = vpack.c.bf16 %v3680, %v3678
      %v3745 = vpack.c.bf16 %v3681, %v3679
      %v3746 = vld [vmem:[%s5] sm:$0xf]
      %v3747 = vld [vmem:[%s5 + $0x4] sm:$0xf]
      %v3748 = vld [vmem:[%s5 + $0x8] sm:$0xf]
      %v3749 = vld [vmem:[%s5 + $0xc] sm:$0xf]
      %v3750 = vld [vmem:[%s5 + $0x10] sm:$0xf]
      %v3751 = vld [vmem:[%s5 + $0x14] sm:$0xf]
      %v3752 = vld [vmem:[%s5 + $0x18] sm:$0xf]
      %v3753 = vld [vmem:[%s5 + $0x1c] sm:$0xf]
      %v3754 = vld [vmem:[%s5 + $0x20] sm:$0xf]
      %v3755 = vld [vmem:[%s5 + $0x24] sm:$0xf]
      %v3756 = vld [vmem:[%s5 + $0x28] sm:$0xf]
      %v3757 = vld [vmem:[%s5 + $0x2c] sm:$0xf]
      %v3758 = vld [vmem:[%s5 + $0x30] sm:$0xf]
      %v3759 = vld [vmem:[%s5 + $0x34] sm:$0xf]
      %v3760 = vld [vmem:[%s5 + $0x38] sm:$0xf]
      %v3761 = vld [vmem:[%s5 + $0x3c] sm:$0xf]
      %v3762 = vld [vmem:[%s5 + $0x40] sm:$0xf]
      %v3763 = vld [vmem:[%s5 + $0x44] sm:$0xf]
      %v3764 = vld [vmem:[%s5 + $0x48] sm:$0xf]
      %v3765 = vld [vmem:[%s5 + $0x4c] sm:$0xf]
      %v3766 = vld [vmem:[%s5 + $0x50] sm:$0xf]
      %v3767 = vld [vmem:[%s5 + $0x54] sm:$0xf]
      %v3768 = vld [vmem:[%s5 + $0x58] sm:$0xf]
      %v3769 = vld [vmem:[%s5 + $0x5c] sm:$0xf]
      %v3770 = vld [vmem:[%s5 + $0x60] sm:$0xf]
      %v3771 = vld [vmem:[%s5 + $0x64] sm:$0xf]
      %v3772 = vld [vmem:[%s5 + $0x68] sm:$0xf]
      %v3773 = vld [vmem:[%s5 + $0x6c] sm:$0xf]
      %v3774 = vld [vmem:[%s5 + $0x70] sm:$0xf]
      %v3775 = vld [vmem:[%s5 + $0x74] sm:$0xf]
      %v3776 = vld [vmem:[%s5 + $0x78] sm:$0xf]
      %v3777 = vld [vmem:[%s5 + $0x7c] sm:$0xf]
      %v3810 = vunpack.c.l.b16 %v3746
      %v3811 = vunpack.c.l.b16 %v3747
      %v3812 = vunpack.c.l.b16 %v3748
      %v3813 = vunpack.c.l.b16 %v3749
      %v3814 = vunpack.c.l.b16 %v3750
      %v3815 = vunpack.c.l.b16 %v3751
      %v3816 = vunpack.c.l.b16 %v3752
      %v3817 = vunpack.c.l.b16 %v3753
      %v3818 = vunpack.c.l.b16 %v3754
      %v3819 = vunpack.c.l.b16 %v3755
      %v3820 = vunpack.c.l.b16 %v3756
      %v3821 = vunpack.c.l.b16 %v3757
      %v3822 = vunpack.c.l.b16 %v3758
      %v3823 = vunpack.c.l.b16 %v3759
      %v3824 = vunpack.c.l.b16 %v3760
      %v3825 = vunpack.c.l.b16 %v3761
      %v3826 = vunpack.c.l.b16 %v3762
      %v3827 = vunpack.c.l.b16 %v3763
      %v3828 = vunpack.c.l.b16 %v3764
      %v3829 = vunpack.c.l.b16 %v3765
      %v3830 = vunpack.c.l.b16 %v3766
      %v3831 = vunpack.c.l.b16 %v3767
      %v3832 = vunpack.c.l.b16 %v3768
      %v3833 = vunpack.c.l.b16 %v3769
      %v3834 = vunpack.c.l.b16 %v3770
      %v3835 = vunpack.c.l.b16 %v3771
      %v3836 = vunpack.c.l.b16 %v3772
      %v3837 = vunpack.c.l.b16 %v3773
      %v3838 = vunpack.c.l.b16 %v3774
      %v3839 = vunpack.c.l.b16 %v3775
      %v3840 = vunpack.c.l.b16 %v3776
      %v3841 = vunpack.c.l.b16 %v3777
      %v3842 = vpack.c.b16 %v3811, %v3810
      %v3843 = vpack.c.b16 %v3813, %v3812
      %v3844 = vpack.c.b16 %v3815, %v3814
      %v3845 = vpack.c.b16 %v3817, %v3816
      %v3846 = vpack.c.b16 %v3819, %v3818
      %v3847 = vpack.c.b16 %v3821, %v3820
      %v3848 = vpack.c.b16 %v3823, %v3822
      %v3849 = vpack.c.b16 %v3825, %v3824
      %v3850 = vpack.c.b16 %v3827, %v3826
      %v3851 = vpack.c.b16 %v3829, %v3828
      %v3852 = vpack.c.b16 %v3831, %v3830
      %v3853 = vpack.c.b16 %v3833, %v3832
      %v3854 = vpack.c.b16 %v3835, %v3834
      %v3855 = vpack.c.b16 %v3837, %v3836
      %v3856 = vpack.c.b16 %v3839, %v3838
      %v3857 = vpack.c.b16 %v3841, %v3840
      %3874 = vmatprep.subr.bf16.mxu0 0
      %3875 = vmatpush1.bf16.msra.mxu0 %v3842
      %3876 = vmatprep.subr.bf16.mxu0 0
      %3877 = vmatpush1.bf16.msra.mxu0 %v3843
      %3878 = vmatprep.subr.bf16.mxu0 0
      %3879 = vmatpush1.bf16.msra.mxu0 %v3844
      %3880 = vmatprep.subr.bf16.mxu0 0
      %3881 = vmatpush1.bf16.msra.mxu0 %v3845
      %3882 = vmatprep.subr.bf16.mxu0 0
      %3883 = vmatpush1.bf16.msra.mxu0 %v3846
      %3884 = vmatprep.subr.bf16.mxu0 0
      %3885 = vmatpush1.bf16.msra.mxu0 %v3847
      %3886 = vmatprep.subr.bf16.mxu0 0
      %3887 = vmatpush1.bf16.msra.mxu0 %v3848
      %3888 = vmatprep.subr.bf16.mxu0 0
      %3889 = vmatpush1.bf16.msra.mxu0 %v3849
      %3890 = vmatprep.subr.bf16.mxu0 0
      %3891 = vmatpush1.bf16.msra.mxu0 %v3850
      %3892 = vmatprep.subr.bf16.mxu0 0
      %3893 = vmatpush1.bf16.msra.mxu0 %v3851
      %3894 = vmatprep.subr.bf16.mxu0 0
      %3895 = vmatpush1.bf16.msra.mxu0 %v3852
      %3896 = vmatprep.subr.bf16.mxu0 0
      %3897 = vmatpush1.bf16.msra.mxu0 %v3853
      %3898 = vmatprep.subr.bf16.mxu0 0
      %3899 = vmatpush1.bf16.msra.mxu0 %v3854
      %3900 = vmatprep.subr.bf16.mxu0 0
      %3901 = vmatpush1.bf16.msra.mxu0 %v3855
      %3902 = vmatprep.subr.bf16.mxu0 0
      %3903 = vmatpush1.bf16.msra.mxu0 %v3856
      %3904 = vmatprep.subr.bf16.mxu0 0
      %3905 = vmatpush1.bf16.msra.mxu0 %v3857
      %3906 = vmatprep.mubr.bf16.mxu0 %v3683
      %3907 = vmatmul.mubr.bf16.gmra.mrb[0].mxu0 %v3682
      %v3908 = vpop.f32.mrb[0].mxu0
      %v3909 = vadd.f32 0.0, %v3908
      %v3910 = vpop.f32.mrb[0].mxu0
      %v3911 = vpop.f32.mrb[0].mxu0
      %v3912 = vadd.f32 0.0, %v3911
      %v3913 = vpop.f32.mrb[0].mxu0
      %3914 = vmatprep.mubr.bf16.mxu0 %v3685
      %3915 = vmatmul.mubr.bf16.gmra.mrb[0].mxu0 %v3684
      %v3916 = vpop.f32.mrb[0].mxu0
      %v3917 = vadd.f32 0.0, %v3916
      %v3918 = vpop.f32.mrb[0].mxu0
      %v3919 = vpop.f32.mrb[0].mxu0
      %v3920 = vadd.f32 0.0, %v3919
      %v3921 = vpop.f32.mrb[0].mxu0
      %3922 = vmatprep.mubr.bf16.mxu0 %v3687
      %3923 = vmatmul.mubr.bf16.gmra.mrb[0].mxu0 %v3686
      %v3924 = vpop.f32.mrb[0].mxu0
      %v3925 = vadd.f32 0.0, %v3924
      %v3926 = vpop.f32.mrb[0].mxu0
      %v3927 = vpop.f32.mrb[0].mxu0
      %v3928 = vadd.f32 0.0, %v3927
      %v3929 = vpop.f32.mrb[0].mxu0
      %3930 = vmatprep.mubr.bf16.mxu0 %v3689
      %3931 = vmatmul.mubr.bf16.gmra.mrb[0].mxu0 %v3688
      %v3932 = vpop.f32.mrb[0].mxu0
      %v3933 = vadd.f32 0.0, %v3932
      %v3934 = vpop.f32.mrb[0].mxu0
      %v3935 = vpop.f32.mrb[0].mxu0
      %v3936 = vadd.f32 0.0, %v3935
      %v3937 = vpop.f32.mrb[0].mxu0
      %3938 = vmatprep.mubr.bf16.mxu0 %v3691
      %3939 = vmatmul.mubr.bf16.gmra.mrb[0].mxu0 %v3690
      %v3940 = vpop.f32.mrb[0].mxu0
      %v3941 = vadd.f32 0.0, %v3940
      %v3942 = vpop.f32.mrb[0].mxu0
      %v3943 = vpop.f32.mrb[0].mxu0
      %v3944 = vadd.f32 0.0, %v3943
      %v3945 = vpop.f32.mrb[0].mxu0
      %3946 = vmatprep.mubr.bf16.mxu0 %v3693
      %3947 = vmatmul.mubr.bf16.gmra.mrb[0].mxu0 %v3692
      %v3948 = vpop.f32.mrb[0].mxu0
      %v3949 = vadd.f32 0.0, %v3948
      %v3950 = vpop.f32.mrb[0].mxu0
      %v3951 = vpop.f32.mrb[0].mxu0
      %v3952 = vadd.f32 0.0, %v3951
      %v3953 = vpop.f32.mrb[0].mxu0
      %3954 = vmatprep.mubr.bf16.mxu0 %v3695
      %3955 = vmatmul.mubr.bf16.gmra.mrb[0].mxu0 %v3694
      %v3956 = vpop.f32.mrb[0].mxu0
      %v3957 = vadd.f32 0.0, %v3956
      %v3958 = vpop.f32.mrb[0].mxu0
      %v3959 = vpop.f32.mrb[0].mxu0
      %v3960 = vadd.f32 0.0, %v3959
      %v3961 = vpop.f32.mrb[0].mxu0
      %3962 = vmatprep.mubr.bf16.mxu0 %v3697
      %3963 = vmatmul.mubr.bf16.gmra.mrb[0].mxu0 %v3696
      %v3964 = vpop.f32.mrb[0].mxu0
      %v3965 = vadd.f32 0.0, %v3964
      %v3966 = vpop.f32.mrb[0].mxu0
      %v3967 = vpop.f32.mrb[0].mxu0
      %v3968 = vadd.f32 0.0, %v3967
      %v3969 = vpop.f32.mrb[0].mxu0
      %3970 = vmatprep.mubr.bf16.mxu0 %v3699
      %3971 = vmatmul.mubr.bf16.gmra.mrb[0].mxu0 %v3698
      %v3972 = vpop.f32.mrb[0].mxu0
      %v3973 = vadd.f32 0.0, %v3972
      %v3974 = vpop.f32.mrb[0].mxu0
      %v3975 = vpop.f32.mrb[0].mxu0
      %v3976 = vadd.f32 0.0, %v3975
      %v3977 = vpop.f32.mrb[0].mxu0
      %3978 = vmatprep.mubr.bf16.mxu0 %v3701
      %3979 = vmatmul.mubr.bf16.gmra.mrb[0].mxu0 %v3700
      %v3980 = vpop.f32.mrb[0].mxu0
      %v3981 = vadd.f32 0.0, %v3980
      %v3982 = vpop.f32.mrb[0].mxu0
      %v3983 = vpop.f32.mrb[0].mxu0
      %v3984 = vadd.f32 0.0, %v3983
      %v3985 = vpop.f32.mrb[0].mxu0
      %3986 = vmatprep.mubr.bf16.mxu0 %v3703
      %3987 = vmatmul.mubr.bf16.gmra.mrb[0].mxu0 %v3702
      %v3988 = vpop.f32.mrb[0].mxu0
      %v3989 = vadd.f32 0.0, %v3988
      %v3990 = vpop.f32.mrb[0].mxu0
      %v3991 = vpop.f32.mrb[0].mxu0
      %v3992 = vadd.f32 0.0, %v3991
      %v3993 = vpop.f32.mrb[0].mxu0
      %3994 = vmatprep.mubr.bf16.mxu0 %v3705
      %3995 = vmatmul.mubr.bf16.gmra.mrb[0].mxu0 %v3704
      %v3996 = vpop.f32.mrb[0].mxu0
      %v3997 = vadd.f32 0.0, %v3996
      %v3998 = vpop.f32.mrb[0].mxu0
      %v3999 = vpop.f32.mrb[0].mxu0
      %v4000 = vadd.f32 0.0, %v3999
      %v4001 = vpop.f32.mrb[0].mxu0
      %4002 = vmatprep.mubr.bf16.mxu0 %v3707
      %4003 = vmatmul.mubr.bf16.gmra.mrb[0].mxu0 %v3706
      %v4004 = vpop.f32.mrb[0].mxu0
      %v4005 = vadd.f32 0.0, %v4004
      %v4006 = vpop.f32.mrb[0].mxu0
      %v4007 = vpop.f32.mrb[0].mxu0
      %v4008 = vadd.f32 0.0, %v4007
      %v4009 = vpop.f32.mrb[0].mxu0
      %4010 = vmatprep.mubr.bf16.mxu0 %v3709
      %4011 = vmatmul.mubr.bf16.gmra.mrb[0].mxu0 %v3708
      %v4012 = vpop.f32.mrb[0].mxu0
      %v4013 = vadd.f32 0.0, %v4012
      %v4014 = vpop.f32.mrb[0].mxu0
      %v4015 = vpop.f32.mrb[0].mxu0
      %v4016 = vadd.f32 0.0, %v4015
      %v4017 = vpop.f32.mrb[0].mxu0
      %4018 = vmatprep.mubr.bf16.mxu0 %v3711
      %4019 = vmatmul.mubr.bf16.gmra.mrb[0].mxu0 %v3710
      %v4020 = vpop.f32.mrb[0].mxu0
      %v4021 = vadd.f32 0.0, %v4020
      %v4022 = vpop.f32.mrb[0].mxu0
      %v4023 = vpop.f32.mrb[0].mxu0
      %v4024 = vadd.f32 0.0, %v4023
      %v4025 = vpop.f32.mrb[0].mxu0
      %4026 = vmatprep.mubr.bf16.mxu0 %v3713
      %4027 = vmatmul.mubr.bf16.gmra.mrb[0].mxu0 %v3712
      %v4028 = vpop.f32.mrb[0].mxu0
      %v4029 = vadd.f32 0.0, %v4028
      %v4030 = vpop.f32.mrb[0].mxu0
      %v4031 = vpop.f32.mrb[0].mxu0
      %v4032 = vadd.f32 0.0, %v4031
      %v4033 = vpop.f32.mrb[0].mxu0
      %4034 = vmatprep.mubr.bf16.mxu0 %v3715
      %4035 = vmatmul.mubr.bf16.gmra.mrb[0].mxu0 %v3714
      %v4036 = vpop.f32.mrb[0].mxu0
      %v4037 = vadd.f32 0.0, %v4036
      %v4038 = vpop.f32.mrb[0].mxu0
      %v4039 = vpop.f32.mrb[0].mxu0
      %v4040 = vadd.f32 0.0, %v4039
      %v4041 = vpop.f32.mrb[0].mxu0
      %4042 = vmatprep.mubr.bf16.mxu0 %v3717
      %4043 = vmatmul.mubr.bf16.gmra.mrb[0].mxu0 %v3716
      %v4044 = vpop.f32.mrb[0].mxu0
      %v4045 = vadd.f32 0.0, %v4044
      %v4046 = vpop.f32.mrb[0].mxu0
      %v4047 = vpop.f32.mrb[0].mxu0
      %v4048 = vadd.f32 0.0, %v4047
      %v4049 = vpop.f32.mrb[0].mxu0
      %4050 = vmatprep.mubr.bf16.mxu0 %v3719
      %4051 = vmatmul.mubr.bf16.gmra.mrb[0].mxu0 %v3718
      %v4052 = vpop.f32.mrb[0].mxu0
      %v4053 = vadd.f32 0.0, %v4052
      %v4054 = vpop.f32.mrb[0].mxu0
      %v4055 = vpop.f32.mrb[0].mxu0
      %v4056 = vadd.f32 0.0, %v4055
      %v4057 = vpop.f32.mrb[0].mxu0
      %4058 = vmatprep.mubr.bf16.mxu0 %v3721
      %4059 = vmatmul.mubr.bf16.gmra.mrb[0].mxu0 %v3720
      %v4060 = vpop.f32.mrb[0].mxu0
      %v4061 = vadd.f32 0.0, %v4060
      %v4062 = vpop.f32.mrb[0].mxu0
      %v4063 = vpop.f32.mrb[0].mxu0
      %v4064 = vadd.f32 0.0, %v4063
      %v4065 = vpop.f32.mrb[0].mxu0
      %4066 = vmatprep.mubr.bf16.mxu0 %v3723
      %4067 = vmatmul.mubr.bf16.gmra.mrb[0].mxu0 %v3722
      %v4068 = vpop.f32.mrb[0].mxu0
      %v4069 = vadd.f32 0.0, %v4068
      %v4070 = vpop.f32.mrb[0].mxu0
      %v4071 = vpop.f32.mrb[0].mxu0
      %v4072 = vadd.f32 0.0, %v4071
      %v4073 = vpop.f32.mrb[0].mxu0
      %4074 = vmatprep.mubr.bf16.mxu0 %v3725
      %4075 = vmatmul.mubr.bf16.gmra.mrb[0].mxu0 %v3724
      %v4076 = vpop.f32.mrb[0].mxu0
      %v4077 = vadd.f32 0.0, %v4076
      %v4078 = vpop.f32.mrb[0].mxu0
      %v4079 = vpop.f32.mrb[0].mxu0
      %v4080 = vadd.f32 0.0, %v4079
      %v4081 = vpop.f32.mrb[0].mxu0
      %4082 = vmatprep.mubr.bf16.mxu0 %v3727
      %4083 = vmatmul.mubr.bf16.gmra.mrb[0].mxu0 %v3726
      %v4084 = vpop.f32.mrb[0].mxu0
      %v4085 = vadd.f32 0.0, %v4084
      %v4086 = vpop.f32.mrb[0].mxu0
      %v4087 = vpop.f32.mrb[0].mxu0
      %v4088 = vadd.f32 0.0, %v4087
      %v4089 = vpop.f32.mrb[0].mxu0
      %4090 = vmatprep.mubr.bf16.mxu0 %v3729
      %4091 = vmatmul.mubr.bf16.gmra.mrb[0].mxu0 %v3728
      %v4092 = vpop.f32.mrb[0].mxu0
      %v4093 = vadd.f32 0.0, %v4092
      %v4094 = vpop.f32.mrb[0].mxu0
      %v4095 = vpop.f32.mrb[0].mxu0
      %v4096 = vadd.f32 0.0, %v4095
      %v4097 = vpop.f32.mrb[0].mxu0
      %4098 = vmatprep.mubr.bf16.mxu0 %v3731
      %4099 = vmatmul.mubr.bf16.gmra.mrb[0].mxu0 %v3730
      %v4100 = vpop.f32.mrb[0].mxu0
      %v4101 = vadd.f32 0.0, %v4100
      %v4102 = vpop.f32.mrb[0].mxu0
      %v4103 = vpop.f32.mrb[0].mxu0
      %v4104 = vadd.f32 0.0, %v4103
      %v4105 = vpop.f32.mrb[0].mxu0
      %4106 = vmatprep.mubr.bf16.mxu0 %v3733
      %4107 = vmatmul.mubr.bf16.gmra.mrb[0].mxu0 %v3732
      %v4108 = vpop.f32.mrb[0].mxu0
      %v4109 = vadd.f32 0.0, %v4108
      %v4110 = vpop.f32.mrb[0].mxu0
      %v4111 = vpop.f32.mrb[0].mxu0
      %v4112 = vadd.f32 0.0, %v4111
      %v4113 = vpop.f32.mrb[0].mxu0
      %4114 = vmatprep.mubr.bf16.mxu0 %v3735
      %4115 = vmatmul.mubr.bf16.gmra.mrb[0].mxu0 %v3734
      %v4116 = vpop.f32.mrb[0].mxu0
      %v4117 = vadd.f32 0.0, %v4116
      %v4118 = vpop.f32.mrb[0].mxu0
      %v4119 = vpop.f32.mrb[0].mxu0
      %v4120 = vadd.f32 0.0, %v4119
      %v4121 = vpop.f32.mrb[0].mxu0
      %4122 = vmatprep.mubr.bf16.mxu0 %v3737
      %4123 = vmatmul.mubr.bf16.gmra.mrb[0].mxu0 %v3736
      %v4124 = vpop.f32.mrb[0].mxu0
      %v4125 = vadd.f32 0.0, %v4124
      %v4126 = vpop.f32.mrb[0].mxu0
      %v4127 = vpop.f32.mrb[0].mxu0
      %v4128 = vadd.f32 0.0, %v4127
      %v4129 = vpop.f32.mrb[0].mxu0
      %4130 = vmatprep.mubr.bf16.mxu0 %v3739
      %4131 = vmatmul.mubr.bf16.gmra.mrb[0].mxu0 %v3738
      %v4132 = vpop.f32.mrb[0].mxu0
      %v4133 = vadd.f32 0.0, %v4132
      %v4134 = vpop.f32.mrb[0].mxu0
      %v4135 = vpop.f32.mrb[0].mxu0
      %v4136 = vadd.f32 0.0, %v4135
      %v4137 = vpop.f32.mrb[0].mxu0
      %4138 = vmatprep.mubr.bf16.mxu0 %v3741
      %4139 = vmatmul.mubr.bf16.gmra.mrb[0].mxu0 %v3740
      %v4140 = vpop.f32.mrb[0].mxu0
      %v4141 = vadd.f32 0.0, %v4140
      %v4142 = vpop.f32.mrb[0].mxu0
      %v4143 = vpop.f32.mrb[0].mxu0
      %v4144 = vadd.f32 0.0, %v4143
      %v4145 = vpop.f32.mrb[0].mxu0
      %4146 = vmatprep.mubr.bf16.mxu0 %v3743
      %4147 = vmatmul.mubr.bf16.gmra.mrb[0].mxu0 %v3742
      %v4148 = vpop.f32.mrb[0].mxu0
      %v4149 = vadd.f32 0.0, %v4148
      %v4150 = vpop.f32.mrb[0].mxu0
      %v4151 = vpop.f32.mrb[0].mxu0
      %v4152 = vadd.f32 0.0, %v4151
      %v4153 = vpop.f32.mrb[0].mxu0
      %4154 = vmatprep.mubr.bf16.mxu0 %v3745
      %4155 = vmatmul.mubr.bf16.gmra.mrb[0].mxu0 %v3744
      %v4156 = vpop.f32.mrb[0].mxu0
      %v4157 = vadd.f32 0.0, %v4156
      %v4158 = vpop.f32.mrb[0].mxu0
      %v4159 = vpop.f32.mrb[0].mxu0
      %v4160 = vadd.f32 0.0, %v4159
      %v4161 = vpop.f32.mrb[0].mxu0
      %4162 = vdwg.mxu0
      %v4163 = vadd.f32 %v3909, %v1486
      %v4164 = vadd.f32 %v3912, %v1486
      %v4165 = vadd.f32 %v3917, %v1486
      %v4166 = vadd.f32 %v3920, %v1486
      %v4167 = vadd.f32 %v3925, %v1486
      %v4168 = vadd.f32 %v3928, %v1486
      %v4169 = vadd.f32 %v3933, %v1486
      %v4170 = vadd.f32 %v3936, %v1486
      %v4171 = vadd.f32 %v3941, %v1486
      %v4172 = vadd.f32 %v3944, %v1486
      %v4173 = vadd.f32 %v3949, %v1486
      %v4174 = vadd.f32 %v3952, %v1486
      %v4175 = vadd.f32 %v3957, %v1486
      %v4176 = vadd.f32 %v3960, %v1486
      %v4177 = vadd.f32 %v3965, %v1486
      %v4178 = vadd.f32 %v3968, %v1486
      %v4179 = vadd.f32 %v3973, %v1486
      %v4180 = vadd.f32 %v3976, %v1486
      %v4181 = vadd.f32 %v3981, %v1486
      %v4182 = vadd.f32 %v3984, %v1486
      %v4183 = vadd.f32 %v3989, %v1486
      %v4184 = vadd.f32 %v3992, %v1486
      %v4185 = vadd.f32 %v3997, %v1486
      %v4186 = vadd.f32 %v4000, %v1486
      %v4187 = vadd.f32 %v4005, %v1486
      %v4188 = vadd.f32 %v4008, %v1486
      %v4189 = vadd.f32 %v4013, %v1486
      %v4190 = vadd.f32 %v4016, %v1486
      %v4191 = vadd.f32 %v4021, %v1486
      %v4192 = vadd.f32 %v4024, %v1486
      %v4193 = vadd.f32 %v4029, %v1486
      %v4194 = vadd.f32 %v4032, %v1486
      %v4195 = vadd.f32 %v4037, %v1486
      %v4196 = vadd.f32 %v4040, %v1486
      %v4197 = vadd.f32 %v4045, %v1486
      %v4198 = vadd.f32 %v4048, %v1486
      %v4199 = vadd.f32 %v4053, %v1486
      %v4200 = vadd.f32 %v4056, %v1486
      %v4201 = vadd.f32 %v4061, %v1486
      %v4202 = vadd.f32 %v4064, %v1486
      %v4203 = vadd.f32 %v4069, %v1486
      %v4204 = vadd.f32 %v4072, %v1486
      %v4205 = vadd.f32 %v4077, %v1486
      %v4206 = vadd.f32 %v4080, %v1486
      %v4207 = vadd.f32 %v4085, %v1486
      %v4208 = vadd.f32 %v4088, %v1486
      %v4209 = vadd.f32 %v4093, %v1486
      %v4210 = vadd.f32 %v4096, %v1486
      %v4211 = vadd.f32 %v4101, %v1486
      %v4212 = vadd.f32 %v4104, %v1486
      %v4213 = vadd.f32 %v4109, %v1486
      %v4214 = vadd.f32 %v4112, %v1486
      %v4215 = vadd.f32 %v4117, %v1486
      %v4216 = vadd.f32 %v4120, %v1486
      %v4217 = vadd.f32 %v4125, %v1486
      %v4218 = vadd.f32 %v4128, %v1486
      %v4219 = vadd.f32 %v4133, %v1486
      %v4220 = vadd.f32 %v4136, %v1486
      %v4221 = vadd.f32 %v4141, %v1486
      %v4222 = vadd.f32 %v4144, %v1486
      %v4223 = vadd.f32 %v4149, %v1486
      %v4224 = vadd.f32 %v4152, %v1486
      %v4225 = vadd.f32 %v4157, %v1486
      %v4226 = vadd.f32 %v4160, %v1486
      %v4227 = vxor.u32 %v4163, 2147483648
      %v4228 = vxor.u32 %v4164, 2147483648
      %v4229 = vxor.u32 %v4165, 2147483648
      %v4230 = vxor.u32 %v4166, 2147483648
      %v4231 = vxor.u32 %v4167, 2147483648
      %v4232 = vxor.u32 %v4168, 2147483648
      %v4233 = vxor.u32 %v4169, 2147483648
      %v4234 = vxor.u32 %v4170, 2147483648
      %v4235 = vxor.u32 %v4171, 2147483648
      %v4236 = vxor.u32 %v4172, 2147483648
      %v4237 = vxor.u32 %v4173, 2147483648
      %v4238 = vxor.u32 %v4174, 2147483648
      %v4239 = vxor.u32 %v4175, 2147483648
      %v4240 = vxor.u32 %v4176, 2147483648
      %v4241 = vxor.u32 %v4177, 2147483648
      %v4242 = vxor.u32 %v4178, 2147483648
      %v4243 = vxor.u32 %v4179, 2147483648
      %v4244 = vxor.u32 %v4180, 2147483648
      %v4245 = vxor.u32 %v4181, 2147483648
      %v4246 = vxor.u32 %v4182, 2147483648
      %v4247 = vxor.u32 %v4183, 2147483648
      %v4248 = vxor.u32 %v4184, 2147483648
      %v4249 = vxor.u32 %v4185, 2147483648
      %v4250 = vxor.u32 %v4186, 2147483648
      %v4251 = vxor.u32 %v4187, 2147483648
      %v4252 = vxor.u32 %v4188, 2147483648
      %v4253 = vxor.u32 %v4189, 2147483648
      %v4254 = vxor.u32 %v4190, 2147483648
      %v4255 = vxor.u32 %v4191, 2147483648
      %v4256 = vxor.u32 %v4192, 2147483648
      %v4257 = vxor.u32 %v4193, 2147483648
      %v4258 = vxor.u32 %v4194, 2147483648
      %v4259 = vxor.u32 %v4195, 2147483648
      %v4260 = vxor.u32 %v4196, 2147483648
      %v4261 = vxor.u32 %v4197, 2147483648
      %v4262 = vxor.u32 %v4198, 2147483648
      %v4263 = vxor.u32 %v4199, 2147483648
      %v4264 = vxor.u32 %v4200, 2147483648
      %v4265 = vxor.u32 %v4201, 2147483648
      %v4266 = vxor.u32 %v4202, 2147483648
      %v4267 = vxor.u32 %v4203, 2147483648
      %v4268 = vxor.u32 %v4204, 2147483648
      %v4269 = vxor.u32 %v4205, 2147483648
      %v4270 = vxor.u32 %v4206, 2147483648
      %v4271 = vxor.u32 %v4207, 2147483648
      %v4272 = vxor.u32 %v4208, 2147483648
      %v4273 = vxor.u32 %v4209, 2147483648
      %v4274 = vxor.u32 %v4210, 2147483648
      %v4275 = vxor.u32 %v4211, 2147483648
      %v4276 = vxor.u32 %v4212, 2147483648
      %v4277 = vxor.u32 %v4213, 2147483648
      %v4278 = vxor.u32 %v4214, 2147483648
      %v4279 = vxor.u32 %v4215, 2147483648
      %v4280 = vxor.u32 %v4216, 2147483648
      %v4281 = vxor.u32 %v4217, 2147483648
      %v4282 = vxor.u32 %v4218, 2147483648
      %v4283 = vxor.u32 %v4219, 2147483648
      %v4284 = vxor.u32 %v4220, 2147483648
      %v4285 = vxor.u32 %v4221, 2147483648
      %v4286 = vxor.u32 %v4222, 2147483648
      %v4287 = vxor.u32 %v4223, 2147483648
      %v4288 = vxor.u32 %v4224, 2147483648
      %v4289 = vxor.u32 %v4225, 2147483648
      %v4290 = vxor.u32 %v4226, 2147483648
      %v4291 = vmul.f32 %v4227, 1.442695
      %v4292 = vpow.pop %v4291
      %v4293 = vmul.f32 %v4228, 1.442695
      %v4294 = vpow.pop %v4293
      %v4295 = vmul.f32 %v4229, 1.442695
      %v4296 = vpow.pop %v4295
      %v4297 = vmul.f32 %v4230, 1.442695
      %v4298 = vpow.pop %v4297
      %v4299 = vmul.f32 %v4231, 1.442695
      %v4300 = vpow.pop %v4299
      %v4301 = vmul.f32 %v4232, 1.442695
      %v4302 = vpow.pop %v4301
      %v4303 = vmul.f32 %v4233, 1.442695
      %v4304 = vpow.pop %v4303
      %v4305 = vmul.f32 %v4234, 1.442695
      %v4306 = vpow.pop %v4305
      %v4307 = vmul.f32 %v4235, 1.442695
      %v4308 = vpow.pop %v4307
      %v4309 = vmul.f32 %v4236, 1.442695
      %v4310 = vpow.pop %v4309
      %v4311 = vmul.f32 %v4237, 1.442695
      %v4312 = vpow.pop %v4311
      %v4313 = vmul.f32 %v4238, 1.442695
      %v4314 = vpow.pop %v4313
      %v4315 = vmul.f32 %v4239, 1.442695
      %v4316 = vpow.pop %v4315
      %v4317 = vmul.f32 %v4240, 1.442695
      %v4318 = vpow.pop %v4317
      %v4319 = vmul.f32 %v4241, 1.442695
      %v4320 = vpow.pop %v4319
      %v4321 = vmul.f32 %v4242, 1.442695
      %v4322 = vpow.pop %v4321
      %v4323 = vmul.f32 %v4243, 1.442695
      %v4324 = vpow.pop %v4323
      %v4325 = vmul.f32 %v4244, 1.442695
      %v4326 = vpow.pop %v4325
      %v4327 = vmul.f32 %v4245, 1.442695
      %v4328 = vpow.pop %v4327
      %v4329 = vmul.f32 %v4246, 1.442695
      %v4330 = vpow.pop %v4329
      %v4331 = vmul.f32 %v4247, 1.442695
      %v4332 = vpow.pop %v4331
      %v4333 = vmul.f32 %v4248, 1.442695
      %v4334 = vpow.pop %v4333
      %v4335 = vmul.f32 %v4249, 1.442695
      %v4336 = vpow.pop %v4335
      %v4337 = vmul.f32 %v4250, 1.442695
      %v4338 = vpow.pop %v4337
      %v4339 = vmul.f32 %v4251, 1.442695
      %v4340 = vpow.pop %v4339
      %v4341 = vmul.f32 %v4252, 1.442695
      %v4342 = vpow.pop %v4341
      %v4343 = vmul.f32 %v4253, 1.442695
      %v4344 = vpow.pop %v4343
      %v4345 = vmul.f32 %v4254, 1.442695
      %v4346 = vpow.pop %v4345
      %v4347 = vmul.f32 %v4255, 1.442695
      %v4348 = vpow.pop %v4347
      %v4349 = vmul.f32 %v4256, 1.442695
      %v4350 = vpow.pop %v4349
      %v4351 = vmul.f32 %v4257, 1.442695
      %v4352 = vpow.pop %v4351
      %v4353 = vmul.f32 %v4258, 1.442695
      %v4354 = vpow.pop %v4353
      %v4355 = vmul.f32 %v4259, 1.442695
      %v4356 = vpow.pop %v4355
      %v4357 = vmul.f32 %v4260, 1.442695
      %v4358 = vpow.pop %v4357
      %v4359 = vmul.f32 %v4261, 1.442695
      %v4360 = vpow.pop %v4359
      %v4361 = vmul.f32 %v4262, 1.442695
      %v4362 = vpow.pop %v4361
      %v4363 = vmul.f32 %v4263, 1.442695
      %v4364 = vpow.pop %v4363
      %v4365 = vmul.f32 %v4264, 1.442695
      %v4366 = vpow.pop %v4365
      %v4367 = vmul.f32 %v4265, 1.442695
      %v4368 = vpow.pop %v4367
      %v4369 = vmul.f32 %v4266, 1.442695
      %v4370 = vpow.pop %v4369
      %v4371 = vmul.f32 %v4267, 1.442695
      %v4372 = vpow.pop %v4371
      %v4373 = vmul.f32 %v4268, 1.442695
      %v4374 = vpow.pop %v4373
      %v4375 = vmul.f32 %v4269, 1.442695
      %v4376 = vpow.pop %v4375
      %v4377 = vmul.f32 %v4270, 1.442695
      %v4378 = vpow.pop %v4377
      %v4379 = vmul.f32 %v4271, 1.442695
      %v4380 = vpow.pop %v4379
      %v4381 = vmul.f32 %v4272, 1.442695
      %v4382 = vpow.pop %v4381
      %v4383 = vmul.f32 %v4273, 1.442695
      %v4384 = vpow.pop %v4383
      %v4385 = vmul.f32 %v4274, 1.442695
      %v4386 = vpow.pop %v4385
      %v4387 = vmul.f32 %v4275, 1.442695
      %v4388 = vpow.pop %v4387
      %v4389 = vmul.f32 %v4276, 1.442695
      %v4390 = vpow.pop %v4389
      %v4391 = vmul.f32 %v4277, 1.442695
      %v4392 = vpow.pop %v4391
      %v4393 = vmul.f32 %v4278, 1.442695
      %v4394 = vpow.pop %v4393
      %v4395 = vmul.f32 %v4279, 1.442695
      %v4396 = vpow.pop %v4395
      %v4397 = vmul.f32 %v4280, 1.442695
      %v4398 = vpow.pop %v4397
      %v4399 = vmul.f32 %v4281, 1.442695
      %v4400 = vpow.pop %v4399
      %v4401 = vmul.f32 %v4282, 1.442695
      %v4402 = vpow.pop %v4401
      %v4403 = vmul.f32 %v4283, 1.442695
      %v4404 = vpow.pop %v4403
      %v4405 = vmul.f32 %v4284, 1.442695
      %v4406 = vpow.pop %v4405
      %v4407 = vmul.f32 %v4285, 1.442695
      %v4408 = vpow.pop %v4407
      %v4409 = vmul.f32 %v4286, 1.442695
      %v4410 = vpow.pop %v4409
      %v4411 = vmul.f32 %v4287, 1.442695
      %v4412 = vpow.pop %v4411
      %v4413 = vmul.f32 %v4288, 1.442695
      %v4414 = vpow.pop %v4413
      %v4415 = vmul.f32 %v4289, 1.442695
      %v4416 = vpow.pop %v4415
      %v4417 = vmul.f32 %v4290, 1.442695
      %v4418 = vpow.pop %v4417
      %v4419 = vadd.f32 %v4292, 1.0
      %v4420 = vadd.f32 %v4294, 1.0
      %v4421 = vadd.f32 %v4296, 1.0
      %v4422 = vadd.f32 %v4298, 1.0
      %v4423 = vadd.f32 %v4300, 1.0
      %v4424 = vadd.f32 %v4302, 1.0
      %v4425 = vadd.f32 %v4304, 1.0
      %v4426 = vadd.f32 %v4306, 1.0
      %v4427 = vadd.f32 %v4308, 1.0
      %v4428 = vadd.f32 %v4310, 1.0
      %v4429 = vadd.f32 %v4312, 1.0
      %v4430 = vadd.f32 %v4314, 1.0
      %v4431 = vadd.f32 %v4316, 1.0
      %v4432 = vadd.f32 %v4318, 1.0
      %v4433 = vadd.f32 %v4320, 1.0
      %v4434 = vadd.f32 %v4322, 1.0
      %v4435 = vadd.f32 %v4324, 1.0
      %v4436 = vadd.f32 %v4326, 1.0
      %v4437 = vadd.f32 %v4328, 1.0
      %v4438 = vadd.f32 %v4330, 1.0
      %v4439 = vadd.f32 %v4332, 1.0
      %v4440 = vadd.f32 %v4334, 1.0
      %v4441 = vadd.f32 %v4336, 1.0
      %v4442 = vadd.f32 %v4338, 1.0
      %v4443 = vadd.f32 %v4340, 1.0
      %v4444 = vadd.f32 %v4342, 1.0
      %v4445 = vadd.f32 %v4344, 1.0
      %v4446 = vadd.f32 %v4346, 1.0
      %v4447 = vadd.f32 %v4348, 1.0
      %v4448 = vadd.f32 %v4350, 1.0
      %v4449 = vadd.f32 %v4352, 1.0
      %v4450 = vadd.f32 %v4354, 1.0
      %v4451 = vadd.f32 %v4356, 1.0
      %v4452 = vadd.f32 %v4358, 1.0
      %v4453 = vadd.f32 %v4360, 1.0
      %v4454 = vadd.f32 %v4362, 1.0
      %v4455 = vadd.f32 %v4364, 1.0
      %v4456 = vadd.f32 %v4366, 1.0
      %v4457 = vadd.f32 %v4368, 1.0
      %v4458 = vadd.f32 %v4370, 1.0
      %v4459 = vadd.f32 %v4372, 1.0
      %v4460 = vadd.f32 %v4374, 1.0
      %v4461 = vadd.f32 %v4376, 1.0
      %v4462 = vadd.f32 %v4378, 1.0
      %v4463 = vadd.f32 %v4380, 1.0
      %v4464 = vadd.f32 %v4382, 1.0
      %v4465 = vadd.f32 %v4384, 1.0
      %v4466 = vadd.f32 %v4386, 1.0
      %v4467 = vadd.f32 %v4388, 1.0
      %v4468 = vadd.f32 %v4390, 1.0
      %v4469 = vadd.f32 %v4392, 1.0
      %v4470 = vadd.f32 %v4394, 1.0
      %v4471 = vadd.f32 %v4396, 1.0
      %v4472 = vadd.f32 %v4398, 1.0
      %v4473 = vadd.f32 %v4400, 1.0
      %v4474 = vadd.f32 %v4402, 1.0
      %v4475 = vadd.f32 %v4404, 1.0
      %v4476 = vadd.f32 %v4406, 1.0
      %v4477 = vadd.f32 %v4408, 1.0
      %v4478 = vadd.f32 %v4410, 1.0
      %v4479 = vadd.f32 %v4412, 1.0
      %v4480 = vadd.f32 %v4414, 1.0
      %v4481 = vadd.f32 %v4416, 1.0
      %v4482 = vadd.f32 %v4418, 1.0
      %v4483 = vrcp.pop %v4419
      %v4484 = vmul.f32 1.0, %v4483
      %v4485 = vrcp.pop %v4420
      %v4486 = vmul.f32 1.0, %v4485
      %v4487 = vrcp.pop %v4421
      %v4488 = vmul.f32 1.0, %v4487
      %v4489 = vrcp.pop %v4422
      %v4490 = vmul.f32 1.0, %v4489
      %v4491 = vrcp.pop %v4423
      %v4492 = vmul.f32 1.0, %v4491
      %v4493 = vrcp.pop %v4424
      %v4494 = vmul.f32 1.0, %v4493
      %v4495 = vrcp.pop %v4425
      %v4496 = vmul.f32 1.0, %v4495
      %v4497 = vrcp.pop %v4426
      %v4498 = vmul.f32 1.0, %v4497
      %v4499 = vrcp.pop %v4427
      %v4500 = vmul.f32 1.0, %v4499
      %v4501 = vrcp.pop %v4428
      %v4502 = vmul.f32 1.0, %v4501
      %v4503 = vrcp.pop %v4429
      %v4504 = vmul.f32 1.0, %v4503
      %v4505 = vrcp.pop %v4430
      %v4506 = vmul.f32 1.0, %v4505
      %v4507 = vrcp.pop %v4431
      %v4508 = vmul.f32 1.0, %v4507
      %v4509 = vrcp.pop %v4432
      %v4510 = vmul.f32 1.0, %v4509
      %v4511 = vrcp.pop %v4433
      %v4512 = vmul.f32 1.0, %v4511
      %v4513 = vrcp.pop %v4434
      %v4514 = vmul.f32 1.0, %v4513
      %v4515 = vrcp.pop %v4435
      %v4516 = vmul.f32 1.0, %v4515
      %v4517 = vrcp.pop %v4436
      %v4518 = vmul.f32 1.0, %v4517
      %v4519 = vrcp.pop %v4437
      %v4520 = vmul.f32 1.0, %v4519
      %v4521 = vrcp.pop %v4438
      %v4522 = vmul.f32 1.0, %v4521
      %v4523 = vrcp.pop %v4439
      %v4524 = vmul.f32 1.0, %v4523
      %v4525 = vrcp.pop %v4440
      %v4526 = vmul.f32 1.0, %v4525
      %v4527 = vrcp.pop %v4441
      %v4528 = vmul.f32 1.0, %v4527
      %v4529 = vrcp.pop %v4442
      %v4530 = vmul.f32 1.0, %v4529
      %v4531 = vrcp.pop %v4443
      %v4532 = vmul.f32 1.0, %v4531
      %v4533 = vrcp.pop %v4444
      %v4534 = vmul.f32 1.0, %v4533
      %v4535 = vrcp.pop %v4445
      %v4536 = vmul.f32 1.0, %v4535
      %v4537 = vrcp.pop %v4446
      %v4538 = vmul.f32 1.0, %v4537
      %v4539 = vrcp.pop %v4447
      %v4540 = vmul.f32 1.0, %v4539
      %v4541 = vrcp.pop %v4448
      %v4542 = vmul.f32 1.0, %v4541
      %v4543 = vrcp.pop %v4449
      %v4544 = vmul.f32 1.0, %v4543
      %v4545 = vrcp.pop %v4450
      %v4546 = vmul.f32 1.0, %v4545
      %v4547 = vrcp.pop %v4451
      %v4548 = vmul.f32 1.0, %v4547
      %v4549 = vrcp.pop %v4452
      %v4550 = vmul.f32 1.0, %v4549
      %v4551 = vrcp.pop %v4453
      %v4552 = vmul.f32 1.0, %v4551
      %v4553 = vrcp.pop %v4454
      %v4554 = vmul.f32 1.0, %v4553
      %v4555 = vrcp.pop %v4455
      %v4556 = vmul.f32 1.0, %v4555
      %v4557 = vrcp.pop %v4456
      %v4558 = vmul.f32 1.0, %v4557
      %v4559 = vrcp.pop %v4457
      %v4560 = vmul.f32 1.0, %v4559
      %v4561 = vrcp.pop %v4458
      %v4562 = vmul.f32 1.0, %v4561
      %v4563 = vrcp.pop %v4459
      %v4564 = vmul.f32 1.0, %v4563
      %v4565 = vrcp.pop %v4460
      %v4566 = vmul.f32 1.0, %v4565
      %v4567 = vrcp.pop %v4461
      %v4568 = vmul.f32 1.0, %v4567
      %v4569 = vrcp.pop %v4462
      %v4570 = vmul.f32 1.0, %v4569
      %v4571 = vrcp.pop %v4463
      %v4572 = vmul.f32 1.0, %v4571
      %v4573 = vrcp.pop %v4464
      %v4574 = vmul.f32 1.0, %v4573
      %v4575 = vrcp.pop %v4465
      %v4576 = vmul.f32 1.0, %v4575
      %v4577 = vrcp.pop %v4466
      %v4578 = vmul.f32 1.0, %v4577
      %v4579 = vrcp.pop %v4467
      %v4580 = vmul.f32 1.0, %v4579
      %v4581 = vrcp.pop %v4468
      %v4582 = vmul.f32 1.0, %v4581
      %v4583 = vrcp.pop %v4469
      %v4584 = vmul.f32 1.0, %v4583
      %v4585 = vrcp.pop %v4470
      %v4586 = vmul.f32 1.0, %v4585
      %v4587 = vrcp.pop %v4471
      %v4588 = vmul.f32 1.0, %v4587
      %v4589 = vrcp.pop %v4472
      %v4590 = vmul.f32 1.0, %v4589
      %v4591 = vrcp.pop %v4473
      %v4592 = vmul.f32 1.0, %v4591
      %v4593 = vrcp.pop %v4474
      %v4594 = vmul.f32 1.0, %v4593
      %v4595 = vrcp.pop %v4475
      %v4596 = vmul.f32 1.0, %v4595
      %v4597 = vrcp.pop %v4476
      %v4598 = vmul.f32 1.0, %v4597
      %v4599 = vrcp.pop %v4477
      %v4600 = vmul.f32 1.0, %v4599
      %v4601 = vrcp.pop %v4478
      %v4602 = vmul.f32 1.0, %v4601
      %v4603 = vrcp.pop %v4479
      %v4604 = vmul.f32 1.0, %v4603
      %v4605 = vrcp.pop %v4480
      %v4606 = vmul.f32 1.0, %v4605
      %v4607 = vrcp.pop %v4481
      %v4608 = vmul.f32 1.0, %v4607
      %v4609 = vrcp.pop %v4482
      %v4610 = vmul.f32 1.0, %v4609
      %vm4611 = vcmask 23552
      %v4612 = vsel %vm4611, %v4484, %v1551
      %v4613 = vsel %vm4611, %v4486, %v1552
      %v4614 = vsel %vm4611, %v4488, %v1553
      %v4615 = vsel %vm4611, %v4490, %v1554
      %v4616 = vsel %vm4611, %v4492, %v1555
      %v4617 = vsel %vm4611, %v4494, %v1556
      %v4618 = vsel %vm4611, %v4496, %v1557
      %v4619 = vsel %vm4611, %v4498, %v1558
      %v4620 = vsel %vm4611, %v4500, %v1559
      %v4621 = vsel %vm4611, %v4502, %v1560
      %v4622 = vsel %vm4611, %v4504, %v1561
      %v4623 = vsel %vm4611, %v4506, %v1562
      %v4624 = vsel %vm4611, %v4508, %v1563
      %v4625 = vsel %vm4611, %v4510, %v1564
      %v4626 = vsel %vm4611, %v4512, %v1565
      %v4627 = vsel %vm4611, %v4514, %v1566
      %v4628 = vsel %vm4611, %v4516, %v1567
      %v4629 = vsel %vm4611, %v4518, %v1568
      %v4630 = vsel %vm4611, %v4520, %v1569
      %v4631 = vsel %vm4611, %v4522, %v1570
      %v4632 = vsel %vm4611, %v4524, %v1571
      %v4633 = vsel %vm4611, %v4526, %v1572
      %v4634 = vsel %vm4611, %v4528, %v1573
      %v4635 = vsel %vm4611, %v4530, %v1574
      %v4636 = vsel %vm4611, %v4532, %v1575
      %v4637 = vsel %vm4611, %v4534, %v1576
      %v4638 = vsel %vm4611, %v4536, %v1577
      %v4639 = vsel %vm4611, %v4538, %v1578
      %v4640 = vsel %vm4611, %v4540, %v1579
      %v4641 = vsel %vm4611, %v4542, %v1580
      %v4642 = vsel %vm4611, %v4544, %v1581
      %v4643 = vsel %vm4611, %v4546, %v1582
      %v4644 = vsel %vm4611, %v4548, %v1583
      %v4645 = vsel %vm4611, %v4550, %v1584
      %v4646 = vsel %vm4611, %v4552, %v1585
      %v4647 = vsel %vm4611, %v4554, %v1586
      %v4648 = vsel %vm4611, %v4556, %v1587
      %v4649 = vsel %vm4611, %v4558, %v1588
      %v4650 = vsel %vm4611, %v4560, %v1589
      %v4651 = vsel %vm4611, %v4562, %v1590
      %v4652 = vsel %vm4611, %v4564, %v1591
      %v4653 = vsel %vm4611, %v4566, %v1592
      %v4654 = vsel %vm4611, %v4568, %v1593
      %v4655 = vsel %vm4611, %v4570, %v1594
      %v4656 = vsel %vm4611, %v4572, %v1595
      %v4657 = vsel %vm4611, %v4574, %v1596
      %v4658 = vsel %vm4611, %v4576, %v1597
      %v4659 = vsel %vm4611, %v4578, %v1598
      %v4660 = vsel %vm4611, %v4580, %v1599
      %v4661 = vsel %vm4611, %v4582, %v1600
      %v4662 = vsel %vm4611, %v4584, %v1601
      %v4663 = vsel %vm4611, %v4586, %v1602
      %v4664 = vsel %vm4611, %v4588, %v1603
      %v4665 = vsel %vm4611, %v4590, %v1604
      %v4666 = vsel %vm4611, %v4592, %v1605
      %v4667 = vsel %vm4611, %v4594, %v1606
      %v4668 = vsel %vm4611, %v4596, %v1607
      %v4669 = vsel %vm4611, %v4598, %v1608
      %v4670 = vsel %vm4611, %v4600, %v1609
      %v4671 = vsel %vm4611, %v4602, %v1610
      %v4672 = vsel %vm4611, %v4604, %v1611
      %v4673 = vsel %vm4611, %v4606, %v1612
      %v4674 = vsel %vm4611, %v4608, %v1613
      %v4675 = vsel %vm4611, %v4610, %v1614
      %vm4676 = vcmask 31744
      %v4677 = vsel %vm4676, %v4612, 0.0
      %v4678 = vsel %vm4676, %v4613, 0.0
      %v4679 = vsel %vm4676, %v4614, 0.0
      %v4680 = vsel %vm4676, %v4615, 0.0
      %v4681 = vsel %vm4676, %v4616, 0.0
      %v4682 = vsel %vm4676, %v4617, 0.0
      %v4683 = vsel %vm4676, %v4618, 0.0
      %v4684 = vsel %vm4676, %v4619, 0.0
      %v4685 = vsel %vm4676, %v4620, 0.0
      %v4686 = vsel %vm4676, %v4621, 0.0
      %v4687 = vsel %vm4676, %v4622, 0.0
      %v4688 = vsel %vm4676, %v4623, 0.0
      %v4689 = vsel %vm4676, %v4624, 0.0
      %v4690 = vsel %vm4676, %v4625, 0.0
      %v4691 = vsel %vm4676, %v4626, 0.0
      %v4692 = vsel %vm4676, %v4627, 0.0
      %v4693 = vsel %vm4676, %v4628, 0.0
      %v4694 = vsel %vm4676, %v4629, 0.0
      %v4695 = vsel %vm4676, %v4630, 0.0
      %v4696 = vsel %vm4676, %v4631, 0.0
      %v4697 = vsel %vm4676, %v4632, 0.0
      %v4698 = vsel %vm4676, %v4633, 0.0
      %v4699 = vsel %vm4676, %v4634, 0.0
      %v4700 = vsel %vm4676, %v4635, 0.0
      %v4701 = vsel %vm4676, %v4636, 0.0
      %v4702 = vsel %vm4676, %v4637, 0.0
      %v4703 = vsel %vm4676, %v4638, 0.0
      %v4704 = vsel %vm4676, %v4639, 0.0
      %v4705 = vsel %vm4676, %v4640, 0.0
      %v4706 = vsel %vm4676, %v4641, 0.0
      %v4707 = vsel %vm4676, %v4642, 0.0
      %v4708 = vsel %vm4676, %v4643, 0.0
      %v4709 = vsel %vm4676, %v4644, 0.0
      %v4710 = vsel %vm4676, %v4645, 0.0
      %v4711 = vsel %vm4676, %v4646, 0.0
      %v4712 = vsel %vm4676, %v4647, 0.0
      %v4713 = vsel %vm4676, %v4648, 0.0
      %v4714 = vsel %vm4676, %v4649, 0.0
      %v4715 = vsel %vm4676, %v4650, 0.0
      %v4716 = vsel %vm4676, %v4651, 0.0
      %v4717 = vsel %vm4676, %v4652, 0.0
      %v4718 = vsel %vm4676, %v4653, 0.0
      %v4719 = vsel %vm4676, %v4654, 0.0
      %v4720 = vsel %vm4676, %v4655, 0.0
      %v4721 = vsel %vm4676, %v4656, 0.0
      %v4722 = vsel %vm4676, %v4657, 0.0
      %v4723 = vsel %vm4676, %v4658, 0.0
      %v4724 = vsel %vm4676, %v4659, 0.0
      %v4725 = vsel %vm4676, %v4660, 0.0
      %v4726 = vsel %vm4676, %v4661, 0.0
      %v4727 = vsel %vm4676, %v4662, 0.0
      %v4728 = vsel %vm4676, %v4663, 0.0
      %v4729 = vsel %vm4676, %v4664, 0.0
      %v4730 = vsel %vm4676, %v4665, 0.0
      %v4731 = vsel %vm4676, %v4666, 0.0
      %v4732 = vsel %vm4676, %v4667, 0.0
      %v4733 = vsel %vm4676, %v4668, 0.0
      %v4734 = vsel %vm4676, %v4669, 0.0
      %v4735 = vsel %vm4676, %v4670, 0.0
      %v4736 = vsel %vm4676, %v4671, 0.0
      %v4737 = vsel %vm4676, %v4672, 0.0
      %v4738 = vsel %vm4676, %v4673, 0.0
      %v4739 = vsel %vm4676, %v4674, 0.0
      %v4740 = vsel %vm4676, %v4675, 0.0
      %vm4741 = vcmask 64512
      %4742 = vst.msk [vmem:[%s307] sm:$0xff] %vm4741, %v4677
      %4743 = vst.msk [vmem:[%s307 + $0x8] sm:$0xff] %vm4741, %v4678
      %4744 = vst.msk [vmem:[%s307 + $0x10] sm:$0xff] %vm4741, %v4679
      %4745 = vst.msk [vmem:[%s307 + $0x18] sm:$0xff] %vm4741, %v4680
      %4746 = vst.msk [vmem:[%s307 + $0x20] sm:$0xff] %vm4741, %v4681
      %4747 = vst.msk [vmem:[%s307 + $0x28] sm:$0xff] %vm4741, %v4682
      %4748 = vst.msk [vmem:[%s307 + $0x30] sm:$0xff] %vm4741, %v4683
      %4749 = vst.msk [vmem:[%s307 + $0x38] sm:$0xff] %vm4741, %v4684
      %4750 = vst.msk [vmem:[%s307 + $0x40] sm:$0xff] %vm4741, %v4685
      %4751 = vst.msk [vmem:[%s307 + $0x48] sm:$0xff] %vm4741, %v4686
      %4752 = vst.msk [vmem:[%s307 + $0x50] sm:$0xff] %vm4741, %v4687
      %4753 = vst.msk [vmem:[%s307 + $0x58] sm:$0xff] %vm4741, %v4688
      %4754 = vst.msk [vmem:[%s307 + $0x60] sm:$0xff] %vm4741, %v4689
      %4755 = vst.msk [vmem:[%s307 + $0x68] sm:$0xff] %vm4741, %v4690
      %4756 = vst.msk [vmem:[%s307 + $0x70] sm:$0xff] %vm4741, %v4691
      %4757 = vst.msk [vmem:[%s307 + $0x78] sm:$0xff] %vm4741, %v4692
      %4758 = vst.msk [vmem:[%s307 + $0x80] sm:$0xff] %vm4741, %v4693
      %4759 = vst.msk [vmem:[%s307 + $0x88] sm:$0xff] %vm4741, %v4694
      %4760 = vst.msk [vmem:[%s307 + $0x90] sm:$0xff] %vm4741, %v4695
      %4761 = vst.msk [vmem:[%s307 + $0x98] sm:$0xff] %vm4741, %v4696
      %4762 = vst.msk [vmem:[%s307 + $0xa0] sm:$0xff] %vm4741, %v4697
      %4763 = vst.msk [vmem:[%s307 + $0xa8] sm:$0xff] %vm4741, %v4698
      %4764 = vst.msk [vmem:[%s307 + $0xb0] sm:$0xff] %vm4741, %v4699
      %4765 = vst.msk [vmem:[%s307 + $0xb8] sm:$0xff] %vm4741, %v4700
      %4766 = vst.msk [vmem:[%s307 + $0xc0] sm:$0xff] %vm4741, %v4701
      %4767 = vst.msk [vmem:[%s307 + $0xc8] sm:$0xff] %vm4741, %v4702
      %4768 = vst.msk [vmem:[%s307 + $0xd0] sm:$0xff] %vm4741, %v4703
      %4769 = vst.msk [vmem:[%s307 + $0xd8] sm:$0xff] %vm4741, %v4704
      %4770 = vst.msk [vmem:[%s307 + $0xe0] sm:$0xff] %vm4741, %v4705
      %4771 = vst.msk [vmem:[%s307 + $0xe8] sm:$0xff] %vm4741, %v4706
      %4772 = vst.msk [vmem:[%s307 + $0xf0] sm:$0xff] %vm4741, %v4707
      %4773 = vst.msk [vmem:[%s307 + $0xf8] sm:$0xff] %vm4741, %v4708
      %4774 = vst.msk [vmem:[%s307 + $0x100] sm:$0xff] %vm4741, %v4709
      %4775 = vst.msk [vmem:[%s307 + $0x108] sm:$0xff] %vm4741, %v4710
      %4776 = vst.msk [vmem:[%s307 + $0x110] sm:$0xff] %vm4741, %v4711
      %4777 = vst.msk [vmem:[%s307 + $0x118] sm:$0xff] %vm4741, %v4712
      %4778 = vst.msk [vmem:[%s307 + $0x120] sm:$0xff] %vm4741, %v4713
      %4779 = vst.msk [vmem:[%s307 + $0x128] sm:$0xff] %vm4741, %v4714
      %4780 = vst.msk [vmem:[%s307 + $0x130] sm:$0xff] %vm4741, %v4715
      %4781 = vst.msk [vmem:[%s307 + $0x138] sm:$0xff] %vm4741, %v4716
      %4782 = vst.msk [vmem:[%s307 + $0x140] sm:$0xff] %vm4741, %v4717
      %4783 = vst.msk [vmem:[%s307 + $0x148] sm:$0xff] %vm4741, %v4718
      %4784 = vst.msk [vmem:[%s307 + $0x150] sm:$0xff] %vm4741, %v4719
      %4785 = vst.msk [vmem:[%s307 + $0x158] sm:$0xff] %vm4741, %v4720
      %4786 = vst.msk [vmem:[%s307 + $0x160] sm:$0xff] %vm4741, %v4721
      %4787 = vst.msk [vmem:[%s307 + $0x168] sm:$0xff] %vm4741, %v4722
      %4788 = vst.msk [vmem:[%s307 + $0x170] sm:$0xff] %vm4741, %v4723
      %4789 = vst.msk [vmem:[%s307 + $0x178] sm:$0xff] %vm4741, %v4724
      %4790 = vst.msk [vmem:[%s307 + $0x180] sm:$0xff] %vm4741, %v4725
      %4791 = vst.msk [vmem:[%s307 + $0x188] sm:$0xff] %vm4741, %v4726
      %4792 = vst.msk [vmem:[%s307 + $0x190] sm:$0xff] %vm4741, %v4727
      %4793 = vst.msk [vmem:[%s307 + $0x198] sm:$0xff] %vm4741, %v4728
      %4794 = vst.msk [vmem:[%s307 + $0x1a0] sm:$0xff] %vm4741, %v4729
      %4795 = vst.msk [vmem:[%s307 + $0x1a8] sm:$0xff] %vm4741, %v4730
      %4796 = vst.msk [vmem:[%s307 + $0x1b0] sm:$0xff] %vm4741, %v4731
      %4797 = vst.msk [vmem:[%s307 + $0x1b8] sm:$0xff] %vm4741, %v4732
      %4798 = vst.msk [vmem:[%s307 + $0x1c0] sm:$0xff] %vm4741, %v4733
      %4799 = vst.msk [vmem:[%s307 + $0x1c8] sm:$0xff] %vm4741, %v4734
      %4800 = vst.msk [vmem:[%s307 + $0x1d0] sm:$0xff] %vm4741, %v4735
      %4801 = vst.msk [vmem:[%s307 + $0x1d8] sm:$0xff] %vm4741, %v4736
      %4802 = vst.msk [vmem:[%s307 + $0x1e0] sm:$0xff] %vm4741, %v4737
      %4803 = vst.msk [vmem:[%s307 + $0x1e8] sm:$0xff] %vm4741, %v4738
      %4804 = vst.msk [vmem:[%s307 + $0x1f0] sm:$0xff] %vm4741, %v4739
      %4805 = vst.msk [vmem:[%s307 + $0x1f8] sm:$0xff] %vm4741, %v4740
      %s4806 = smul.u32 64, %s19
      %p4807 = scmp.lt.s32.totalorder %s4806, 127
      %s4808 = scalar_select %p4807, %s4806, 127
      %s4809 = smul.addr %s4808, 8
      %s4810 = scalar_lea.vmem %s8, %s4809
      // Predicated region
      $region53: #{tiny_nerf_forward.1} parent=51 // pred_check
        %p4811 = pneg %p210
      $region54: #{tiny_nerf_forward.1} parent=51 // pred_check_branch
        %4813 = sbr.rel (%p4811) target = $region56
      $region55: #{tiny_nerf_forward.1} parent=51 // pred_region
        %s4814 = smul.u32 64, %s19
      $region56: #{tiny_nerf_forward.1} parent=51 // pred_fallthru
        _
    $region52: #{tiny_nerf_forward.1} parent=5 // pred_fallthru
      _
    %p4815 = scmp.le.s32.totalorder 2, %s14
    // Predicated region
    $region57: #{tiny_nerf_forward.1} parent=5 // pred_check
      %p4816 = pneg %p4815
    $region58: #{tiny_nerf_forward.1} parent=5 // pred_check_branch
      %4818 = sbr.rel (%p4816) target = $region60
    $region59: #{tiny_nerf_forward.1} parent=5 // pred_region
      %s4819 = ssub.s32 %s14, 2
      // Predicated region
      $region61: #{tiny_nerf_forward.1} parent=59 // pred_check
        %p4820 = pneg %p216
      $region62: #{tiny_nerf_forward.1} parent=59 // pred_check_branch
        %4822 = sbr.rel (%p4820) target = $region64
      $region63: #{tiny_nerf_forward.1} parent=59 // pred_region
        %s4823 = smul.u32 64, %s20
        %p4824 = scmp.lt.s32.totalorder %s4823, 127
        %s4825 = scalar_select %p4824, %s4823, 127
        %s4826 = smul.addr %s4825, 8
        %s4827 = scalar_lea.vmem %s8, %s4826
      $region64: #{tiny_nerf_forward.1} parent=59 // pred_fallthru
        _
    $region60: #{tiny_nerf_forward.1} parent=5 // pred_fallthru
      _
  $region6: #{tiny_nerf_forward.1} parent=0 // loop_footer
    %s18 = sadd.s32 1, %s14
  $region7: #{tiny_nerf_forward.1} parent=0 // loop_footer_branch
    %13 = sbr.rel target = $region3
  $region8: #{tiny_nerf_forward.1} parent=0 // loop_exit
    _

</llo_original>
